<compile_context>
chip_gen: v7x
topology: tpu7x:2x2x1
jax: 0.10.0
libtpu: 0.0.40
codegen_flags: <defaults>
</compile_context>

<pallas_src>
import functools

import jax
import jax.numpy as jnp
from jax.experimental import pallas as pl
from jax.experimental.pallas import tpu as pltpu


def _fused_kernel(x_ref, cw_ref, cb_ref, wc_ref, bc_ref, o_ref, *,
                  height, width, tile_b):
    # x_ref : (tile_b, (H+2)*(W+2), Cin) bf16  zero-padded images, row-major flat
    # cw_ref: (9, Cin, Cout)             bf16  3x3 stem conv weight, tap-major
    # cb_ref: (1, Cout)                  f32   stem conv bias
    # wc_ref: (Cout, NClsPad)            f32   fused head(FC+BN) @ classifier W
    # bc_ref: (1, NClsPad)               f32   fused head/classifier bias
    # o_ref : (1, tile_b, NClsPad)       f32   logits
    wp = width + 2
    p2 = (height + 2) * wp
    inv_hw = 1.0 / float(height * width)

    # Flattened padded position r = h*(W+2) + w is a valid conv output iff
    # h < H and w < W. Mask built once (hoisted out of the per-image loop).
    r_idx = jax.lax.broadcasted_iota(jnp.int32, (p2, 1), 0)
    valid = ((r_idx % wp) < width) & (r_idx < height * wp)

    pooled_rows = []
    for b in range(tile_b):
        x_img = x_ref[b]                                      # (P2, Cin) bf16
        # Backbone stem: 3x3, stride-1, pad-1 conv as 9 accumulating matmuls.
        # Tap (ky, kx) contributes x_pad[h+ky, w+kx] @ W[ky,kx]; aligning the
        # tap is a static sublane roll of the f32 partial result (XLU, cheap).
        acc = jnp.dot(x_img, cw_ref[0],
                      preferred_element_type=jnp.float32)     # tap (0, 0)
        for ky in range(3):
            for kx in range(3):
                off = ky * wp + kx
                if off == 0:
                    continue
                y = jnp.dot(x_img, cw_ref[ky * 3 + kx],
                            preferred_element_type=jnp.float32)
                acc = acc + pltpu.roll(y, shift=p2 - off, axis=0)
        conv = jnp.maximum(acc + cb_ref[...], 0.0)            # bias + ReLU (f32)
        conv = jnp.where(valid, conv, 0.0)                    # drop halo rows
        # SelectAdaptivePool2d('avg'): masked sum * 1/(H*W).
        pooled_rows.append(jnp.sum(conv, axis=0, keepdims=True) * inv_hw)

    pooled = jnp.concatenate(pooled_rows, axis=0)             # (tile_b, Cout) f32
    # ReductionFCBNHead (BN folded) + CE classifier, fused into one affine.
    logits = jnp.dot(pooled, wc_ref[...],
                     preferred_element_type=jnp.float32) + bc_ref[...]
    o_ref[0] = logits


@jax.jit
def build_model_forward(x_nchw, params):
    """Eval-mode BuildModel.forward(inputs) -> classifier logits (pred)."""
    n, cin, h, w = x_nchw.shape
    hp, wp = h + 2, w + 2
    p2 = hp * wp

    # NCHW -> NHWC, 1px zero halo, flatten spatially (row-major), cast to bf16.
    x_nhwc = jnp.transpose(x_nchw, (0, 2, 3, 1))
    x_pad = jnp.pad(x_nhwc, ((0, 0), (1, 1), (1, 1), (0, 0)))
    x_flat = x_pad.reshape(n, p2, cin).astype(jnp.bfloat16)

    cw = params["conv_w"].reshape(9, cin, -1).astype(jnp.bfloat16)   # (9,Cin,Cout)
    cout = cw.shape[2]
    cb = params["conv_b"].astype(jnp.float32)                        # (1, Cout)

    # Eval-mode head (Linear + folded BN) and CE classifier are both affine:
    # fuse them, and pad NumCls to a lane-dense multiple of 128 (zero columns).
    wc = jnp.dot(params["head_w"], params["cls_w"],
                 precision=jax.lax.Precision.HIGHEST)                # (Cout, NCls)
    bc = jnp.dot(params["head_b"], params["cls_w"],
                 precision=jax.lax.Precision.HIGHEST) + params["cls_b"]
    ncls = wc.shape[1]
    ncls_pad = ((ncls + 127) // 128) * 128
    wc = jnp.pad(wc, ((0, 0), (0, ncls_pad - ncls))).astype(jnp.float32)
    bc = jnp.pad(bc, ((0, 0), (0, ncls_pad - ncls))).astype(jnp.float32)

    # Batch tiling: keep >=2 grid steps when possible (v7x megacore) while
    # amortizing per-step overhead with up to 8 images per step.
    tile_b = max(1, min(8, pl.cdiv(n, 2)))
    num_b = pl.cdiv(n, tile_b)
    n_pad = num_b * tile_b
    if n_pad != n:
        x_flat = jnp.pad(x_flat, ((0, n_pad - n), (0, 0), (0, 0)))

    kernel = functools.partial(_fused_kernel, height=h, width=w, tile_b=tile_b)

    out = pl.pallas_call(
        kernel,
        out_shape=jax.ShapeDtypeStruct((num_b, tile_b, ncls_pad), jnp.float32),
        grid_spec=pltpu.PrefetchScalarGridSpec(
            num_scalar_prefetch=0,
            grid=(num_b,),
            in_specs=[
                pl.BlockSpec((tile_b, p2, cin), lambda b: (b, 0, 0)),
                pl.BlockSpec((9, cin, cout), lambda b: (0, 0, 0)),
                pl.BlockSpec((1, cout), lambda b: (0, 0)),
                pl.BlockSpec((cout, ncls_pad), lambda b: (0, 0)),
                pl.BlockSpec((1, ncls_pad), lambda b: (0, 0)),
            ],
            out_specs=pl.BlockSpec((1, tile_b, ncls_pad), lambda b: (b, 0, 0)),
        ),
        compiler_params=pltpu.CompilerParams(
            dimension_semantics=("parallel",)),
    )(x_flat, cw, cb, wc, bc)

    return out.reshape(n_pad, ncls_pad)[:n, :ncls]


def init_params(key, cin, cout, dh, ncls):
    """Deterministic synthetic parameters (shapes from the module __init__)."""
    k = jax.random.split(key, 6)
    conv_w = 0.1 * jax.random.normal(k[0], (3, 3, cin, cout), jnp.float32)
    conv_b = 0.01 * jax.random.normal(k[1], (cout,), jnp.float32)

    # ReductionFCBNHead: Linear(cout -> dh) followed by BatchNorm1d(dh).
    fc_w = 0.1 * jax.random.normal(k[2], (cout, dh), jnp.float32)
    fc_b = 0.01 * jax.random.normal(k[3], (dh,), jnp.float32)
    bn_gamma = jnp.ones((dh,), jnp.float32)
    bn_beta = jnp.zeros((dh,), jnp.float32)
    bn_mean = jnp.zeros((dh,), jnp.float32)
    bn_var = jnp.ones((dh,), jnp.float32)
    eps = 1e-5
    scale = bn_gamma / jnp.sqrt(bn_var + eps)
    head_w = fc_w * scale[None, :]                       # fold BN into FC
    head_b = (fc_b - bn_mean) * scale + bn_beta

    cls_w = 0.1 * jax.random.normal(k[4], (dh, ncls), jnp.float32)
    cls_b = 0.01 * jax.random.normal(k[5], (ncls,), jnp.float32)

    return {
        "conv_w": conv_w.reshape(9 * cin, cout),
        "conv_b": conv_b.reshape(1, cout),
        "head_w": head_w,
        "head_b": head_b.reshape(1, dh),
        "cls_w": cls_w,
        "cls_b": cls_b.reshape(1, ncls),
    }


def _im2col_3x3(x_nhwc):
    """Unfold 3x3, stride-1, pad-1 neighbourhoods: (N,H,W,C) -> (N, H*W, 9*C)."""
    n, h, w, c = x_nhwc.shape
    xp = jnp.pad(x_nhwc, ((0, 0), (1, 1), (1, 1), (0, 0)))
    taps = []
    for ky in range(3):
        for kx in range(3):
            taps.append(xp[:, ky:ky + h, kx:kx + w, :])
    patches = jnp.stack(taps, axis=-2)            # (N, H, W, 9, C)
    return patches.reshape(n, h * w, 9 * c)


def reference_forward(x_nchw, params):
    """Pure-JAX reference (mirrors the kernel's bf16 rounding of conv inputs)."""
    n, cin, h, w = x_nchw.shape
    x_nhwc = jnp.transpose(x_nchw, (0, 2, 3, 1))
    patches = _im2col_3x3(x_nhwc.astype(jnp.bfloat16)).astype(jnp.float32)
    cw = params["conv_w"].astype(jnp.bfloat16).astype(jnp.float32)
    conv = jnp.maximum(
        jnp.einsum("npk,kc->npc", patches, cw,
                   precision=jax.lax.Precision.HIGHEST) + params["conv_b"], 0.0)
    pooled = jnp.mean(conv, axis=1)                                  # (N, Cout)
    head = jnp.dot(pooled, params["head_w"],
                   precision=jax.lax.Precision.HIGHEST) + params["head_b"]
    return jnp.dot(head, params["cls_w"],
                   precision=jax.lax.Precision.HIGHEST) + params["cls_b"]


if __name__ == "__main__":
    # Small config consistent with the module:
    #   dims_pool (backbone output channels) = 32, dims_head = 32, num_classes = 16
    N, CIN, H, W = 2, 4, 16, 16
    COUT, DH, NCLS = 32, 32, 16

    key = jax.random.PRNGKey(0)
    kx, kp = jax.random.split(key)
    x = jax.random.normal(kx, (N, CIN, H, W), jnp.float32)
    params = init_params(kp, CIN, COUT, DH, NCLS)

    logits = build_model_forward(x, params)
    logits = jax.block_until_ready(logits)

    ref = reference_forward(x, params)
    assert logits.shape == (N, NCLS)
    assert jnp.allclose(logits, ref, atol=5e-3, rtol=5e-3), "mismatch vs reference"

    print("KERNEL_OK")
</pallas_src>

<mosaic_0001>
module attributes {stable_mosaic.version = 11 : i64} {
  func.func @_fused_kernel(%arg0: i32, %arg1: memref<1x324x4xbf16, #tpu.memory_space<vmem>>, %arg2: memref<9x4x32xbf16, #tpu.memory_space<vmem>>, %arg3: memref<1x32xf32, #tpu.memory_space<vmem>>, %arg4: memref<32x128xf32, #tpu.memory_space<vmem>>, %arg5: memref<1x128xf32, #tpu.memory_space<vmem>>, %arg6: memref<1x1x128xf32, #tpu.memory_space<vmem>>) attributes {dimension_semantics = [#tpu.dimension_semantics<parallel>], iteration_bounds = array<i64: 2>, scalar_prefetch = 0 : i64, scratch_operands = 0 : i64, tpu.core_type = #tpu.core_type<tc>, window_params = [{transform_indices = @transform_0, window_bounds = array<i64: 1, 324, 4>}, {pipeline_mode = #tpu.pipeline_mode<synchronous>, transform_indices = @transform_1, window_bounds = array<i64: 9, 4, 32>}, {pipeline_mode = #tpu.pipeline_mode<synchronous>, transform_indices = @transform_2, window_bounds = array<i64: 1, 32>}, {pipeline_mode = #tpu.pipeline_mode<synchronous>, transform_indices = @transform_3, window_bounds = array<i64: 32, 128>}, {pipeline_mode = #tpu.pipeline_mode<synchronous>, transform_indices = @transform_4, window_bounds = array<i64: 1, 128>}, {transform_indices = @transform_5, window_bounds = array<i64: 1, 1, 128>}]} {
    %0 = tpu.iota {dimensions = array<i32: 0>} : vector<324x1xi32>
    %c18_i32 = arith.constant 18 : i32
    %c0_i32 = arith.constant 0 : i32
    %1 = arith.cmpi eq, %c18_i32, %c0_i32 : i32
    %c1_i32 = arith.constant 1 : i32
    %2 = arith.select %1, %c1_i32, %c18_i32 : i32
    %3 = vector.broadcast %2 : i32 to vector<324x1xi32>
    %4 = arith.remsi %0, %3 : vector<324x1xi32>
    %c0_i32_0 = arith.constant 0 : i32
    %5 = vector.broadcast %c0_i32_0 : i32 to vector<324x1xi32>
    %6 = arith.cmpi ne, %4, %5 : vector<324x1xi32>
    %c0_i32_1 = arith.constant 0 : i32
    %7 = vector.broadcast %c0_i32_1 : i32 to vector<324x1xi32>
    %8 = arith.cmpi slt, %4, %7 : vector<324x1xi32>
    %c0_i32_2 = arith.constant 0 : i32
    %9 = arith.cmpi slt, %2, %c0_i32_2 : i32
    %10 = vector.broadcast %9 : i1 to vector<324x1xi1>
    %11 = vector.broadcast %10 : vector<324x1xi1> to vector<324x1xi1>
    %12 = arith.xori %8, %11 : vector<324x1xi1>
    %13 = arith.andi %12, %6 : vector<324x1xi1>
    %14 = vector.broadcast %2 : i32 to vector<324x1xi32>
    %15 = arith.addi %4, %14 : vector<324x1xi32>
    %16 = arith.select %13, %15, %4 : vector<324x1xi1>, vector<324x1xi32>
    %c16_i32 = arith.constant 16 : i32
    %17 = vector.broadcast %c16_i32 : i32 to vector<324x1xi32>
    %18 = arith.cmpi slt, %16, %17 : vector<324x1xi32>
    %c288_i32 = arith.constant 288 : i32
    %19 = vector.broadcast %c288_i32 : i32 to vector<324x1xi32>
    %20 = arith.cmpi slt, %0, %19 : vector<324x1xi32>
    %21 = arith.andi %18, %20 : vector<324x1xi1>
    %c0 = arith.constant 0 : index
    %c0_3 = arith.constant 0 : index
    %c0_4 = arith.constant 0 : index
    %22 = vector.load %arg1[%c0, %c0_3, %c0_4] : memref<1x324x4xbf16, #tpu.memory_space<vmem>>, vector<1x324x4xbf16>
    %23 = vector.shape_cast %22 : vector<1x324x4xbf16> to vector<324x4xbf16>
    %c0_5 = arith.constant 0 : index
    %c0_6 = arith.constant 0 : index
    %c0_7 = arith.constant 0 : index
    %24 = vector.load %arg2[%c0_5, %c0_6, %c0_7] : memref<9x4x32xbf16, #tpu.memory_space<vmem>>, vector<1x4x32xbf16>
    %25 = vector.shape_cast %24 : vector<1x4x32xbf16> to vector<4x32xbf16>
    %cst = arith.constant dense<0.000000e+00> : vector<324x32xf32>
    %26 = tpu.matmul %23, %25, %cst {dimension_numbers = #tpu.dot_dimension_numbers<[1], [0], [0], [1], [0, 0, 1, 1], [], []>} : vector<324x4xbf16>, vector<4x32xbf16>, vector<324x32xf32> -> vector<324x32xf32>
    %c1 = arith.constant 1 : index
    %c0_8 = arith.constant 0 : index
    %c0_9 = arith.constant 0 : index
    %27 = vector.load %arg2[%c1, %c0_8, %c0_9] : memref<9x4x32xbf16, #tpu.memory_space<vmem>>, vector<1x4x32xbf16>
    %28 = vector.shape_cast %27 : vector<1x4x32xbf16> to vector<4x32xbf16>
    %cst_10 = arith.constant dense<0.000000e+00> : vector<324x32xf32>
    %29 = tpu.matmul %23, %28, %cst_10 {dimension_numbers = #tpu.dot_dimension_numbers<[1], [0], [0], [1], [0, 0, 1, 1], [], []>} : vector<324x4xbf16>, vector<4x32xbf16>, vector<324x32xf32> -> vector<324x32xf32>
    %c323_i32 = arith.constant 323 : i32
    %30 = tpu.dynamic_rotate %29 by %c323_i32 dim 0 : vector<324x32xf32>, i32 -> vector<324x32xf32>
    %31 = arith.addf %26, %30 : vector<324x32xf32>
    %c2 = arith.constant 2 : index
    %c0_11 = arith.constant 0 : index
    %c0_12 = arith.constant 0 : index
    %32 = vector.load %arg2[%c2, %c0_11, %c0_12] : memref<9x4x32xbf16, #tpu.memory_space<vmem>>, vector<1x4x32xbf16>
    %33 = vector.shape_cast %32 : vector<1x4x32xbf16> to vector<4x32xbf16>
    %cst_13 = arith.constant dense<0.000000e+00> : vector<324x32xf32>
    %34 = tpu.matmul %23, %33, %cst_13 {dimension_numbers = #tpu.dot_dimension_numbers<[1], [0], [0], [1], [0, 0, 1, 1], [], []>} : vector<324x4xbf16>, vector<4x32xbf16>, vector<324x32xf32> -> vector<324x32xf32>
    %c322_i32 = arith.constant 322 : i32
    %35 = tpu.dynamic_rotate %34 by %c322_i32 dim 0 : vector<324x32xf32>, i32 -> vector<324x32xf32>
    %36 = arith.addf %31, %35 : vector<324x32xf32>
    %c3 = arith.constant 3 : index
    %c0_14 = arith.constant 0 : index
    %c0_15 = arith.constant 0 : index
    %37 = vector.load %arg2[%c3, %c0_14, %c0_15] : memref<9x4x32xbf16, #tpu.memory_space<vmem>>, vector<1x4x32xbf16>
    %38 = vector.shape_cast %37 : vector<1x4x32xbf16> to vector<4x32xbf16>
    %cst_16 = arith.constant dense<0.000000e+00> : vector<324x32xf32>
    %39 = tpu.matmul %23, %38, %cst_16 {dimension_numbers = #tpu.dot_dimension_numbers<[1], [0], [0], [1], [0, 0, 1, 1], [], []>} : vector<324x4xbf16>, vector<4x32xbf16>, vector<324x32xf32> -> vector<324x32xf32>
    %c306_i32 = arith.constant 306 : i32
    %40 = tpu.dynamic_rotate %39 by %c306_i32 dim 0 : vector<324x32xf32>, i32 -> vector<324x32xf32>
    %41 = arith.addf %36, %40 : vector<324x32xf32>
    %c4 = arith.constant 4 : index
    %c0_17 = arith.constant 0 : index
    %c0_18 = arith.constant 0 : index
    %42 = vector.load %arg2[%c4, %c0_17, %c0_18] : memref<9x4x32xbf16, #tpu.memory_space<vmem>>, vector<1x4x32xbf16>
    %43 = vector.shape_cast %42 : vector<1x4x32xbf16> to vector<4x32xbf16>
    %cst_19 = arith.constant dense<0.000000e+00> : vector<324x32xf32>
    %44 = tpu.matmul %23, %43, %cst_19 {dimension_numbers = #tpu.dot_dimension_numbers<[1], [0], [0], [1], [0, 0, 1, 1], [], []>} : vector<324x4xbf16>, vector<4x32xbf16>, vector<324x32xf32> -> vector<324x32xf32>
    %c305_i32 = arith.constant 305 : i32
    %45 = tpu.dynamic_rotate %44 by %c305_i32 dim 0 : vector<324x32xf32>, i32 -> vector<324x32xf32>
    %46 = arith.addf %41, %45 : vector<324x32xf32>
    %c5 = arith.constant 5 : index
    %c0_20 = arith.constant 0 : index
    %c0_21 = arith.constant 0 : index
    %47 = vector.load %arg2[%c5, %c0_20, %c0_21] : memref<9x4x32xbf16, #tpu.memory_space<vmem>>, vector<1x4x32xbf16>
    %48 = vector.shape_cast %47 : vector<1x4x32xbf16> to vector<4x32xbf16>
    %cst_22 = arith.constant dense<0.000000e+00> : vector<324x32xf32>
    %49 = tpu.matmul %23, %48, %cst_22 {dimension_numbers = #tpu.dot_dimension_numbers<[1], [0], [0], [1], [0, 0, 1, 1], [], []>} : vector<324x4xbf16>, vector<4x32xbf16>, vector<324x32xf32> -> vector<324x32xf32>
    %c304_i32 = arith.constant 304 : i32
    %50 = tpu.dynamic_rotate %49 by %c304_i32 dim 0 : vector<324x32xf32>, i32 -> vector<324x32xf32>
    %51 = arith.addf %46, %50 : vector<324x32xf32>
    %c6 = arith.constant 6 : index
    %c0_23 = arith.constant 0 : index
    %c0_24 = arith.constant 0 : index
    %52 = vector.load %arg2[%c6, %c0_23, %c0_24] : memref<9x4x32xbf16, #tpu.memory_space<vmem>>, vector<1x4x32xbf16>
    %53 = vector.shape_cast %52 : vector<1x4x32xbf16> to vector<4x32xbf16>
    %cst_25 = arith.constant dense<0.000000e+00> : vector<324x32xf32>
    %54 = tpu.matmul %23, %53, %cst_25 {dimension_numbers = #tpu.dot_dimension_numbers<[1], [0], [0], [1], [0, 0, 1, 1], [], []>} : vector<324x4xbf16>, vector<4x32xbf16>, vector<324x32xf32> -> vector<324x32xf32>
    %c288_i32_26 = arith.constant 288 : i32
    %55 = tpu.dynamic_rotate %54 by %c288_i32_26 dim 0 : vector<324x32xf32>, i32 -> vector<324x32xf32>
    %56 = arith.addf %51, %55 : vector<324x32xf32>
    %c7 = arith.constant 7 : index
    %c0_27 = arith.constant 0 : index
    %c0_28 = arith.constant 0 : index
    %57 = vector.load %arg2[%c7, %c0_27, %c0_28] : memref<9x4x32xbf16, #tpu.memory_space<vmem>>, vector<1x4x32xbf16>
    %58 = vector.shape_cast %57 : vector<1x4x32xbf16> to vector<4x32xbf16>
    %cst_29 = arith.constant dense<0.000000e+00> : vector<324x32xf32>
    %59 = tpu.matmul %23, %58, %cst_29 {dimension_numbers = #tpu.dot_dimension_numbers<[1], [0], [0], [1], [0, 0, 1, 1], [], []>} : vector<324x4xbf16>, vector<4x32xbf16>, vector<324x32xf32> -> vector<324x32xf32>
    %c287_i32 = arith.constant 287 : i32
    %60 = tpu.dynamic_rotate %59 by %c287_i32 dim 0 : vector<324x32xf32>, i32 -> vector<324x32xf32>
    %61 = arith.addf %56, %60 : vector<324x32xf32>
    %c8 = arith.constant 8 : index
    %c0_30 = arith.constant 0 : index
    %c0_31 = arith.constant 0 : index
    %62 = vector.load %arg2[%c8, %c0_30, %c0_31] : memref<9x4x32xbf16, #tpu.memory_space<vmem>>, vector<1x4x32xbf16>
    %63 = vector.shape_cast %62 : vector<1x4x32xbf16> to vector<4x32xbf16>
    %cst_32 = arith.constant dense<0.000000e+00> : vector<324x32xf32>
    %64 = tpu.matmul %23, %63, %cst_32 {dimension_numbers = #tpu.dot_dimension_numbers<[1], [0], [0], [1], [0, 0, 1, 1], [], []>} : vector<324x4xbf16>, vector<4x32xbf16>, vector<324x32xf32> -> vector<324x32xf32>
    %c286_i32 = arith.constant 286 : i32
    %65 = tpu.dynamic_rotate %64 by %c286_i32 dim 0 : vector<324x32xf32>, i32 -> vector<324x32xf32>
    %66 = arith.addf %61, %65 : vector<324x32xf32>
    %c0_33 = arith.constant 0 : index
    %c0_34 = arith.constant 0 : index
    %67 = vector.load %arg3[%c0_33, %c0_34] : memref<1x32xf32, #tpu.memory_space<vmem>>, vector<1x32xf32>
    %68 = vector.broadcast %67 : vector<1x32xf32> to vector<324x32xf32>
    %69 = arith.addf %66, %68 : vector<324x32xf32>
    %cst_35 = arith.constant 0.000000e+00 : f32
    %70 = vector.broadcast %cst_35 : f32 to vector<324x32xf32>
    %71 = arith.maximumf %69, %70 : vector<324x32xf32>
    %cst_36 = arith.constant 0.000000e+00 : f32
    %72 = vector.shape_cast %21 : vector<324x1xi1> to vector<324x1xi1>
    %73 = vector.broadcast %72 : vector<324x1xi1> to vector<324x32xi1>
    %74 = vector.broadcast %cst_36 : f32 to vector<324x32xf32>
    %75 = arith.select %73, %71, %74 : vector<324x32xi1>, vector<324x32xf32>
    %cst_37 = arith.constant dense<0.000000e+00> : vector<32xf32>
    %76 = vector.multi_reduction <add>, %75, %cst_37 [0] : vector<324x32xf32> to vector<32xf32>
    %77 = vector.shape_cast %76 : vector<32xf32> to vector<1x32xf32>
    %cst_38 = arith.constant 3.906250e-03 : f32
    %78 = vector.broadcast %cst_38 : f32 to vector<1x32xf32>
    %79 = arith.mulf %77, %78 : vector<1x32xf32>
    %c0_39 = arith.constant 0 : index
    %c0_40 = arith.constant 0 : index
    %80 = vector.load %arg4[%c0_39, %c0_40] : memref<32x128xf32, #tpu.memory_space<vmem>>, vector<32x128xf32>
    %cst_41 = arith.constant dense<0.000000e+00> : vector<1x128xf32>
    %81 = tpu.matmul %79, %80, %cst_41 {dimension_numbers = #tpu.dot_dimension_numbers<[1], [0], [0], [1], [0, 0, 1, 1], [], []>} : vector<1x32xf32>, vector<32x128xf32>, vector<1x128xf32> -> vector<1x128xf32>
    %c0_42 = arith.constant 0 : index
    %c0_43 = arith.constant 0 : index
    %82 = vector.load %arg5[%c0_42, %c0_43] : memref<1x128xf32, #tpu.memory_space<vmem>>, vector<1x128xf32>
    %83 = arith.addf %81, %82 : vector<1x128xf32>
    %c0_44 = arith.constant 0 : index
    %c0_45 = arith.constant 0 : index
    %c0_46 = arith.constant 0 : index
    %84 = vector.load %arg6[%c0_44, %c0_45, %c0_46] : memref<1x1x128xf32, #tpu.memory_space<vmem>>, vector<1x1x128xf32>
    %85 = vector.shape_cast %84 : vector<1x1x128xf32> to vector<1x128xf32>
    %86 = vector.shape_cast %83 : vector<1x128xf32> to vector<1x1x128xf32>
    tpu.vector_store %arg6[%c0_44, %c0_45, %c0_46], %86 {strides = array<i32>} : memref<1x1x128xf32, #tpu.memory_space<vmem>>, vector<1x1x128xf32>,
    return
  }
  func.func @transform_0(%arg0: i32) -> (i32, i32, i32) {
    %c0_i32 = arith.constant 0 : i32
    %c0_i32_0 = arith.constant 0 : i32
    %c0_i32_1 = arith.constant 0 : i32
    return %arg0, %c0_i32, %c0_i32_0 : i32, i32, i32
  }
  func.func @transform_1(%arg0: i32) -> (i32, i32, i32) {
    %c0_i32 = arith.constant 0 : i32
    %c0_i32_0 = arith.constant 0 : i32
    %c0_i32_1 = arith.constant 0 : i32
    %c0_i32_2 = arith.constant 0 : i32
    return %c0_i32, %c0_i32_0, %c0_i32_1 : i32, i32, i32
  }
  func.func @transform_2(%arg0: i32) -> (i32, i32) {
    %c0_i32 = arith.constant 0 : i32
    %c0_i32_0 = arith.constant 0 : i32
    %c0_i32_1 = arith.constant 0 : i32
    return %c0_i32, %c0_i32_0 : i32, i32
  }
  func.func @transform_3(%arg0: i32) -> (i32, i32) {
    %c0_i32 = arith.constant 0 : i32
    %c0_i32_0 = arith.constant 0 : i32
    %c0_i32_1 = arith.constant 0 : i32
    return %c0_i32, %c0_i32_0 : i32, i32
  }
  func.func @transform_4(%arg0: i32) -> (i32, i32) {
    %c0_i32 = arith.constant 0 : i32
    %c0_i32_0 = arith.constant 0 : i32
    %c0_i32_1 = arith.constant 0 : i32
    return %c0_i32, %c0_i32_0 : i32, i32
  }
  func.func @transform_5(%arg0: i32) -> (i32, i32, i32) {
    %c0_i32 = arith.constant 0 : i32
    %c0_i32_0 = arith.constant 0 : i32
    %c0_i32_1 = arith.constant 0 : i32
    return %arg0, %c0_i32, %c0_i32_0 : i32, i32, i32
  }
}

</mosaic_0001>

<llo_original>
// kernel: build_model_forward.1
$region0: #{build_model_forward.1}
  #allocation0 [shape = 'u32[]', space=smem, size = 0x4, offset = 0x4, fixed_abs, tag = 'smem constant byte address 0x4 - core index']
  #allocation1 [shape = 'u32[144,128]{1,0:T(1,128)}', space=vmem, size = 0x12000, scoped, tag = 'internal scratch']
  %s0 = inlined_call_operand.vmem [shape: bf16[2,324,4], index: 0, kind: input, shape index: {}]
  %s1 = inlined_call_operand.vmem [shape: bf16[9,4,32], index: 1, kind: input, shape index: {}]
  %s2 = inlined_call_operand.vmem [shape: f32[1,32], index: 2, kind: input, shape index: {}]
  %s3 = inlined_call_operand.vmem [shape: f32[32,128], index: 3, kind: input, shape index: {}]
  %s4 = inlined_call_operand.vmem [shape: f32[1,128], index: 4, kind: input, shape index: {}]
  %s5 = inlined_call_operand.hbm [shape: f32[2,1,128], index: 5, kind: output, shape index: {}]
  %s6 = sld [smem:[#allocation0]]
  $region53: #{build_model_forward.1} parent=0
    _
  %s8 = ssub.s32 1, %s6
  %s9 = scalar_select 0, %s8, %s6
  $region1: #{build_model_forward.1} parent=0
    #allocation2 [shape = 'u8[1024]{0}', space=vmem, size = 0x400, scoped, tag = 'output window, operand 0']
    #allocation3 [shape = 's32[2]{0}', space=sflag, size = 0x8, scoped, tag = 'scoped memory for build_model_forward.1']
    %10 = vsyncpa [#allocation3], 0
    %s11 = scalar_lea.sflag [#allocation3], 1
    %12 = vsyncpa %s11, 0
    loop: start=0, step=1, limit=4
    $region2: #{build_model_forward.1} parent=1 // loop_pre_header
      _
    $region3: #{build_model_forward.1} parent=1 // loop_header
      %s14 = sphi 0, %s18
      %p15 = scmp.ge.s32.totalorder %s14, 4
      %s24 = sphi 0, %s26
      %s27 = sphi 0, %s24
      %s28 = sphi 0, %s27
      %s44 = sphi 0, %s28
      %s48 = sphi 0, %s48
      %s50 = sphi 0, %s48
      %s51 = sphi 0, %s50
      %s65 = sphi 0, %s51
      %s69 = sphi 0, %s69
      %s71 = sphi 0, %s69
      %s72 = sphi 0, %s71
      %s86 = sphi 0, %s72
      %s90 = sphi 0, %s90
      %s92 = sphi 0, %s90
      %s93 = sphi 0, %s92
      %s107 = sphi 0, %s93
      %s111 = sphi 0, %s111
      %s113 = sphi 0, %s111
      %s114 = sphi 0, %s113
      %s128 = sphi 0, %s114
      %s134 = sphi 0, %s136
      %s137 = sphi 0, %s134
      %s138 = sphi 0, %s137
      %s154 = sphi 0, %s138
    $region4: #{build_model_forward.1} parent=1 // loop_header_branch
      %17 = sbr.rel (%p15) target = $region8
    $region5: #{build_model_forward.1} parent=1 // loop_body
      %s19 = ssub.s32 %s14, 1
      %s20 = ssub.s32 %s14, 2
      %s21 = sadd.s32 %s14, 1
      %s22 = ssub.s32 %s14, %s21
      %p23 = scmp.eq.s32.totalorder %s22, 0
      %s25 = sadd.s32 %s24, 1
      %s26 = scalar_select %p23, %s24, %s25
      %p29 = pneg %p23
      %p30 = scmp.eq.s32.totalorder %s14, 1
      %p31 = por %p29, %p30
      %p32 = scmp.ne.s32.totalorder %s24, %s27
      %p33 = scmp.eq.s32.totalorder %s14, 0
      %p34 = por %p32, %p33
      %p35 = scmp.ne.s32.totalorder %s24, %s27
      %p36 = scmp.eq.s32.totalorder %s19, 1
      %p37 = por %p35, %p36
      %p38 = scmp.ne.s32.totalorder %s27, %s28
      %p39 = scmp.eq.s32.totalorder %s19, 0
      %p40 = por %p38, %p39
      %p41 = scmp.ne.s32.totalorder %s27, %s28
      %p42 = scmp.eq.s32.totalorder %s20, 1
      %p43 = por %p41, %p42
      %p45 = scmp.ne.s32.totalorder %s28, %s44
      %p46 = scmp.eq.s32.totalorder %s20, 0
      %p47 = por %p45, %p46
      %s49 = sadd.s32 %s48, 1
      %p52 = scmp.eq.s32.totalorder %s14, 1
      %p53 = scmp.ne.s32.totalorder %s48, %s50
      %p54 = scmp.eq.s32.totalorder %s14, 0
      %p55 = por %p53, %p54
      %p56 = scmp.ne.s32.totalorder %s48, %s50
      %p57 = scmp.eq.s32.totalorder %s19, 1
      %p58 = por %p56, %p57
      %p59 = scmp.ne.s32.totalorder %s50, %s51
      %p60 = scmp.eq.s32.totalorder %s19, 0
      %p61 = por %p59, %p60
      %p62 = scmp.ne.s32.totalorder %s50, %s51
      %p63 = scmp.eq.s32.totalorder %s20, 1
      %p64 = por %p62, %p63
      %p66 = scmp.ne.s32.totalorder %s51, %s65
      %p67 = scmp.eq.s32.totalorder %s20, 0
      %p68 = por %p66, %p67
      %s70 = sadd.s32 %s69, 1
      %p73 = scmp.eq.s32.totalorder %s14, 1
      %p74 = scmp.ne.s32.totalorder %s69, %s71
      %p75 = scmp.eq.s32.totalorder %s14, 0
      %p76 = por %p74, %p75
      %p77 = scmp.ne.s32.totalorder %s69, %s71
      %p78 = scmp.eq.s32.totalorder %s19, 1
      %p79 = por %p77, %p78
      %p80 = scmp.ne.s32.totalorder %s71, %s72
      %p81 = scmp.eq.s32.totalorder %s19, 0
      %p82 = por %p80, %p81
      %p83 = scmp.ne.s32.totalorder %s71, %s72
      %p84 = scmp.eq.s32.totalorder %s20, 1
      %p85 = por %p83, %p84
      %p87 = scmp.ne.s32.totalorder %s72, %s86
      %p88 = scmp.eq.s32.totalorder %s20, 0
      %p89 = por %p87, %p88
      %s91 = sadd.s32 %s90, 1
      %p94 = scmp.eq.s32.totalorder %s14, 1
      %p95 = scmp.ne.s32.totalorder %s90, %s92
      %p96 = scmp.eq.s32.totalorder %s14, 0
      %p97 = por %p95, %p96
      %p98 = scmp.ne.s32.totalorder %s90, %s92
      %p99 = scmp.eq.s32.totalorder %s19, 1
      %p100 = por %p98, %p99
      %p101 = scmp.ne.s32.totalorder %s92, %s93
      %p102 = scmp.eq.s32.totalorder %s19, 0
      %p103 = por %p101, %p102
      %p104 = scmp.ne.s32.totalorder %s92, %s93
      %p105 = scmp.eq.s32.totalorder %s20, 1
      %p106 = por %p104, %p105
      %p108 = scmp.ne.s32.totalorder %s93, %s107
      %p109 = scmp.eq.s32.totalorder %s20, 0
      %p110 = por %p108, %p109
      %s112 = sadd.s32 %s111, 1
      %p115 = scmp.eq.s32.totalorder %s14, 1
      %p116 = scmp.ne.s32.totalorder %s111, %s113
      %p117 = scmp.eq.s32.totalorder %s14, 0
      %p118 = por %p116, %p117
      %p119 = scmp.ne.s32.totalorder %s111, %s113
      %p120 = scmp.eq.s32.totalorder %s19, 1
      %p121 = por %p119, %p120
      %p122 = scmp.ne.s32.totalorder %s113, %s114
      %p123 = scmp.eq.s32.totalorder %s19, 0
      %p124 = por %p122, %p123
      %p125 = scmp.ne.s32.totalorder %s113, %s114
      %p126 = scmp.eq.s32.totalorder %s20, 1
      %p127 = por %p125, %p126
      %p129 = scmp.ne.s32.totalorder %s114, %s128
      %p130 = scmp.eq.s32.totalorder %s20, 0
      %p131 = por %p129, %p130
      %s132 = ssub.s32 %s14, %s21
      %p133 = scmp.eq.s32.totalorder %s132, 0
      %s135 = sadd.s32 %s134, 1
      %s136 = scalar_select %p133, %s134, %s135
      %p139 = pneg %p133
      %p140 = scmp.eq.s32.totalorder %s14, 1
      %p141 = por %p139, %p140
      %p142 = scmp.ne.s32.totalorder %s134, %s137
      %p143 = scmp.eq.s32.totalorder %s14, 0
      %p144 = por %p142, %p143
      %p145 = scmp.ne.s32.totalorder %s134, %s137
      %p146 = scmp.eq.s32.totalorder %s19, 1
      %p147 = por %p145, %p146
      %p148 = scmp.ne.s32.totalorder %s137, %s138
      %p149 = scmp.eq.s32.totalorder %s19, 0
      %p150 = por %p148, %p149
      %p151 = scmp.ne.s32.totalorder %s137, %s138
      %p152 = scmp.eq.s32.totalorder %s20, 1
      %p153 = por %p151, %p152
      %p155 = scmp.ne.s32.totalorder %s138, %s154
      %p156 = scmp.eq.s32.totalorder %s20, 0
      %p157 = por %p155, %p156
      %p158 = scmp.le.s32.totalorder 1, %s14
      %p159 = scmp.lt.s32.totalorder %s14, 3
      %p160 = pnand %p158, %p159
      %p161 = pneg %p160
      // Predicated region
      $region9: #{build_model_forward.1} parent=5 // pred_check
        _
      $region10: #{build_model_forward.1} parent=5 // pred_check_branch
        %163 = sbr.rel (%p160) target = $region12
      $region11: #{build_model_forward.1} parent=5 // pred_region
        %s164 = ssub.s32 %s14, 1
        // Predicated region
        $region13: #{build_model_forward.1} parent=11 // pred_check
          %p165 = pneg %p61
        $region14: #{build_model_forward.1} parent=11 // pred_check_branch
          %167 = sbr.rel (%p165) target = $region16
        $region15: #{build_model_forward.1} parent=11 // pred_region
          _
        $region16: #{build_model_forward.1} parent=11 // pred_fallthru
          _
        // Predicated region
        $region17: #{build_model_forward.1} parent=11 // pred_check
          %p168 = pneg %p82
        $region18: #{build_model_forward.1} parent=11 // pred_check_branch
          %170 = sbr.rel (%p168) target = $region20
        $region19: #{build_model_forward.1} parent=11 // pred_region
          _
        $region20: #{build_model_forward.1} parent=11 // pred_fallthru
          _
        // Predicated region
        $region21: #{build_model_forward.1} parent=11 // pred_check
          %p171 = pneg %p103
        $region22: #{build_model_forward.1} parent=11 // pred_check_branch
          %173 = sbr.rel (%p171) target = $region24
        $region23: #{build_model_forward.1} parent=11 // pred_region
          _
        $region24: #{build_model_forward.1} parent=11 // pred_fallthru
          _
        // Predicated region
        $region25: #{build_model_forward.1} parent=11 // pred_check
          %p174 = pneg %p124
        $region26: #{build_model_forward.1} parent=11 // pred_check_branch
          %176 = sbr.rel (%p174) target = $region28
        $region27: #{build_model_forward.1} parent=11 // pred_region
          _
        $region28: #{build_model_forward.1} parent=11 // pred_fallthru
          _
      $region12: #{build_model_forward.1} parent=5 // pred_fallthru
        _
      %p177 = scmp.lt.s32.totalorder %s14, 2
      // Predicated region
      $region29: #{build_model_forward.1} parent=5 // pred_check
        %p178 = pneg %p177
      $region30: #{build_model_forward.1} parent=5 // pred_check_branch
        %180 = sbr.rel (%p178) target = $region32
      $region31: #{build_model_forward.1} parent=5 // pred_region
        // Predicated region
        $region33: #{build_model_forward.1} parent=31 // pred_check
          %p181 = pneg %p34
        $region34: #{build_model_forward.1} parent=31 // pred_check_branch
          %183 = sbr.rel (%p181) target = $region36
        $region35: #{build_model_forward.1} parent=31 // pred_region
          %p184 = scmp.lt.s32.totalorder %s14, 1
          %s185 = scalar_select %p184, %s14, 1
          %s186 = smul.addr %s185, 41
          %s187 = smul.addr %s186, 4
          %s188 = scalar_lea.vmem %s0, %s187
        $region36: #{build_model_forward.1} parent=31 // pred_fallthru
          _
      $region32: #{build_model_forward.1} parent=5 // pred_fallthru
        _
      %p189 = scmp.le.s32.totalorder 1, %s14
      %p190 = scmp.lt.s32.totalorder %s14, 3
      %p191 = pnand %p189, %p190
      %p192 = pneg %p191
      // Predicated region
      $region37: #{build_model_forward.1} parent=5 // pred_check
        _
      $region38: #{build_model_forward.1} parent=5 // pred_check_branch
        %194 = sbr.rel (%p191) target = $region40
      $region39: #{build_model_forward.1} parent=5 // pred_region
        %s195 = ssub.s32 %s14, 1
        %p196 = scmp.lt.s32.totalorder %s19, 1
        %s197 = scalar_select %p196, %s19, 1
        %s198 = smul.addr %s197, 41
        %s199 = smul.addr %s198, 4
        %s200 = scalar_lea.vmem %s0, %s199
        %p201 = pneg %p40
        %p202 = pneg %p37
        %p203 = pneg %p61
        %p204 = pneg %p58
        %p205 = pneg %p82
        %p206 = pneg %p79
        %p207 = pneg %p103
        %p208 = pneg %p100
        %p209 = pneg %p124
        %p210 = pneg %p121
        %p211 = pneg %p150
        %p212 = pneg %p147
        %s213 = sand.u32 %s137, 1
        %s214 = scalar_lea.sflag [#allocation3], %s213
        %s215 = sand.u32 %s137, 1
        %s216 = scalar_lea.vmem [#allocation2], %s215
        %p217 = scmp.lt.s32.totalorder %s19, 1
        %s218 = scalar_select %p217, %s19, 1
        %s219 = smul.addr %s218, 41
        %s220 = smul.addr %s219, 4
        %s221 = scalar_lea.vmem %s0, %s220
        %v223 = vlaneseq
        %v224 = vshrl.u32 %v223, 7
        %v225 = vadd.s32 %v224, 8
        %v226 = vadd.s32 %v224, 16
        %v227 = vadd.s32 %v224, 24
        %v228 = vadd.s32 %v224, 32
        %v229 = vadd.s32 %v224, 40
        %v230 = vadd.s32 %v224, 48
        %v231 = vadd.s32 %v224, 56
        %v232 = vadd.s32 %v224, 64
        %v233 = vadd.s32 %v224, 72
        %v234 = vadd.s32 %v224, 80
        %v235 = vadd.s32 %v224, 88
        %v236 = vadd.s32 %v224, 96
        %v237 = vadd.s32 %v224, 104
        %v238 = vadd.s32 %v224, 112
        %v239 = vadd.s32 %v224, 120
        %v240 = vadd.s32 %v224, 128
        %v241 = vadd.s32 %v224, 136
        %v242 = vadd.s32 %v224, 144
        %v243 = vadd.s32 %v224, 152
        %v244 = vadd.s32 %v224, 160
        %v245 = vadd.s32 %v224, 168
        %v246 = vadd.s32 %v224, 176
        %v247 = vadd.s32 %v224, 184
        %v248 = vadd.s32 %v224, 192
        %v249 = vadd.s32 %v224, 200
        %v250 = vadd.s32 %v224, 208
        %v251 = vadd.s32 %v224, 216
        %v252 = vadd.s32 %v224, 224
        %v253 = vadd.s32 %v224, 232
        %v254 = vadd.s32 %v224, 240
        %v255 = vadd.s32 %v224, 248
        %v256 = vadd.s32 %v224, 256
        %v257 = vadd.s32 %v224, 264
        %v258 = vadd.s32 %v224, 272
        %v259 = vadd.s32 %v224, 280
        %v260 = vadd.s32 %v224, 288
        %v261 = vadd.s32 %v224, 296
        %v262 = vadd.s32 %v224, 304
        %v263 = vadd.s32 %v224, 312
        %v264 = vadd.s32 %v224, 320
        %vm265 = vcmp.lt.s32.totalorder %v224, 0
        %v266 = vsub.s32 0, %v224
        %v267 = vsel %vm265, %v266, %v224
        %v268 = vmul.u32.u64.compose %v267, 3817748708
        %v269 = vextract.low.u32 %v268
        %v270 = vextract.high.u32 %v268
        %v271 = vshrl.u32 %v270, 4
        %v272 = vmul.u32 %v271, 18
        %v273 = vsub.s32 %v267, %v272
        %v274 = vsub.s32 0, %v273
        %v275 = vsel %vm265, %v274, %v273
        %vm276 = vcmp.lt.s32.totalorder %v225, 0
        %v277 = vsub.s32 0, %v225
        %v278 = vsel %vm276, %v277, %v225
        %v279 = vmul.u32.u64.compose %v278, 3817748708
        %v280 = vextract.low.u32 %v279
        %v281 = vextract.high.u32 %v279
        %v282 = vshrl.u32 %v281, 4
        %v283 = vmul.u32 %v282, 18
        %v284 = vsub.s32 %v278, %v283
        %v285 = vsub.s32 0, %v284
        %v286 = vsel %vm276, %v285, %v284
        %vm287 = vcmp.lt.s32.totalorder %v226, 0
        %v288 = vsub.s32 0, %v226
        %v289 = vsel %vm287, %v288, %v226
        %v290 = vmul.u32.u64.compose %v289, 3817748708
        %v291 = vextract.low.u32 %v290
        %v292 = vextract.high.u32 %v290
        %v293 = vshrl.u32 %v292, 4
        %v294 = vmul.u32 %v293, 18
        %v295 = vsub.s32 %v289, %v294
        %v296 = vsub.s32 0, %v295
        %v297 = vsel %vm287, %v296, %v295
        %vm298 = vcmp.lt.s32.totalorder %v227, 0
        %v299 = vsub.s32 0, %v227
        %v300 = vsel %vm298, %v299, %v227
        %v301 = vmul.u32.u64.compose %v300, 3817748708
        %v302 = vextract.low.u32 %v301
        %v303 = vextract.high.u32 %v301
        %v304 = vshrl.u32 %v303, 4
        %v305 = vmul.u32 %v304, 18
        %v306 = vsub.s32 %v300, %v305
        %v307 = vsub.s32 0, %v306
        %v308 = vsel %vm298, %v307, %v306
        %vm309 = vcmp.lt.s32.totalorder %v228, 0
        %v310 = vsub.s32 0, %v228
        %v311 = vsel %vm309, %v310, %v228
        %v312 = vmul.u32.u64.compose %v311, 3817748708
        %v313 = vextract.low.u32 %v312
        %v314 = vextract.high.u32 %v312
        %v315 = vshrl.u32 %v314, 4
        %v316 = vmul.u32 %v315, 18
        %v317 = vsub.s32 %v311, %v316
        %v318 = vsub.s32 0, %v317
        %v319 = vsel %vm309, %v318, %v317
        %vm320 = vcmp.lt.s32.totalorder %v229, 0
        %v321 = vsub.s32 0, %v229
        %v322 = vsel %vm320, %v321, %v229
        %v323 = vmul.u32.u64.compose %v322, 3817748708
        %v324 = vextract.low.u32 %v323
        %v325 = vextract.high.u32 %v323
        %v326 = vshrl.u32 %v325, 4
        %v327 = vmul.u32 %v326, 18
        %v328 = vsub.s32 %v322, %v327
        %v329 = vsub.s32 0, %v328
        %v330 = vsel %vm320, %v329, %v328
        %vm331 = vcmp.lt.s32.totalorder %v230, 0
        %v332 = vsub.s32 0, %v230
        %v333 = vsel %vm331, %v332, %v230
        %v334 = vmul.u32.u64.compose %v333, 3817748708
        %v335 = vextract.low.u32 %v334
        %v336 = vextract.high.u32 %v334
        %v337 = vshrl.u32 %v336, 4
        %v338 = vmul.u32 %v337, 18
        %v339 = vsub.s32 %v333, %v338
        %v340 = vsub.s32 0, %v339
        %v341 = vsel %vm331, %v340, %v339
        %vm342 = vcmp.lt.s32.totalorder %v231, 0
        %v343 = vsub.s32 0, %v231
        %v344 = vsel %vm342, %v343, %v231
        %v345 = vmul.u32.u64.compose %v344, 3817748708
        %v346 = vextract.low.u32 %v345
        %v347 = vextract.high.u32 %v345
        %v348 = vshrl.u32 %v347, 4
        %v349 = vmul.u32 %v348, 18
        %v350 = vsub.s32 %v344, %v349
        %v351 = vsub.s32 0, %v350
        %v352 = vsel %vm342, %v351, %v350
        %vm353 = vcmp.lt.s32.totalorder %v232, 0
        %v354 = vsub.s32 0, %v232
        %v355 = vsel %vm353, %v354, %v232
        %v356 = vmul.u32.u64.compose %v355, 3817748708
        %v357 = vextract.low.u32 %v356
        %v358 = vextract.high.u32 %v356
        %v359 = vshrl.u32 %v358, 4
        %v360 = vmul.u32 %v359, 18
        %v361 = vsub.s32 %v355, %v360
        %v362 = vsub.s32 0, %v361
        %v363 = vsel %vm353, %v362, %v361
        %vm364 = vcmp.lt.s32.totalorder %v233, 0
        %v365 = vsub.s32 0, %v233
        %v366 = vsel %vm364, %v365, %v233
        %v367 = vmul.u32.u64.compose %v366, 3817748708
        %v368 = vextract.low.u32 %v367
        %v369 = vextract.high.u32 %v367
        %v370 = vshrl.u32 %v369, 4
        %v371 = vmul.u32 %v370, 18
        %v372 = vsub.s32 %v366, %v371
        %v373 = vsub.s32 0, %v372
        %v374 = vsel %vm364, %v373, %v372
        %vm375 = vcmp.lt.s32.totalorder %v234, 0
        %v376 = vsub.s32 0, %v234
        %v377 = vsel %vm375, %v376, %v234
        %v378 = vmul.u32.u64.compose %v377, 3817748708
        %v379 = vextract.low.u32 %v378
        %v380 = vextract.high.u32 %v378
        %v381 = vshrl.u32 %v380, 4
        %v382 = vmul.u32 %v381, 18
        %v383 = vsub.s32 %v377, %v382
        %v384 = vsub.s32 0, %v383
        %v385 = vsel %vm375, %v384, %v383
        %vm386 = vcmp.lt.s32.totalorder %v235, 0
        %v387 = vsub.s32 0, %v235
        %v388 = vsel %vm386, %v387, %v235
        %v389 = vmul.u32.u64.compose %v388, 3817748708
        %v390 = vextract.low.u32 %v389
        %v391 = vextract.high.u32 %v389
        %v392 = vshrl.u32 %v391, 4
        %v393 = vmul.u32 %v392, 18
        %v394 = vsub.s32 %v388, %v393
        %v395 = vsub.s32 0, %v394
        %v396 = vsel %vm386, %v395, %v394
        %vm397 = vcmp.lt.s32.totalorder %v236, 0
        %v398 = vsub.s32 0, %v236
        %v399 = vsel %vm397, %v398, %v236
        %v400 = vmul.u32.u64.compose %v399, 3817748708
        %v401 = vextract.low.u32 %v400
        %v402 = vextract.high.u32 %v400
        %v403 = vshrl.u32 %v402, 4
        %v404 = vmul.u32 %v403, 18
        %v405 = vsub.s32 %v399, %v404
        %v406 = vsub.s32 0, %v405
        %v407 = vsel %vm397, %v406, %v405
        %vm408 = vcmp.lt.s32.totalorder %v237, 0
        %v409 = vsub.s32 0, %v237
        %v410 = vsel %vm408, %v409, %v237
        %v411 = vmul.u32.u64.compose %v410, 3817748708
        %v412 = vextract.low.u32 %v411
        %v413 = vextract.high.u32 %v411
        %v414 = vshrl.u32 %v413, 4
        %v415 = vmul.u32 %v414, 18
        %v416 = vsub.s32 %v410, %v415
        %v417 = vsub.s32 0, %v416
        %v418 = vsel %vm408, %v417, %v416
        %vm419 = vcmp.lt.s32.totalorder %v238, 0
        %v420 = vsub.s32 0, %v238
        %v421 = vsel %vm419, %v420, %v238
        %v422 = vmul.u32.u64.compose %v421, 3817748708
        %v423 = vextract.low.u32 %v422
        %v424 = vextract.high.u32 %v422
        %v425 = vshrl.u32 %v424, 4
        %v426 = vmul.u32 %v425, 18
        %v427 = vsub.s32 %v421, %v426
        %v428 = vsub.s32 0, %v427
        %v429 = vsel %vm419, %v428, %v427
        %vm430 = vcmp.lt.s32.totalorder %v239, 0
        %v431 = vsub.s32 0, %v239
        %v432 = vsel %vm430, %v431, %v239
        %v433 = vmul.u32.u64.compose %v432, 3817748708
        %v434 = vextract.low.u32 %v433
        %v435 = vextract.high.u32 %v433
        %v436 = vshrl.u32 %v435, 4
        %v437 = vmul.u32 %v436, 18
        %v438 = vsub.s32 %v432, %v437
        %v439 = vsub.s32 0, %v438
        %v440 = vsel %vm430, %v439, %v438
        %vm441 = vcmp.lt.s32.totalorder %v240, 0
        %v442 = vsub.s32 0, %v240
        %v443 = vsel %vm441, %v442, %v240
        %v444 = vmul.u32.u64.compose %v443, 3817748708
        %v445 = vextract.low.u32 %v444
        %v446 = vextract.high.u32 %v444
        %v447 = vshrl.u32 %v446, 4
        %v448 = vmul.u32 %v447, 18
        %v449 = vsub.s32 %v443, %v448
        %v450 = vsub.s32 0, %v449
        %v451 = vsel %vm441, %v450, %v449
        %vm452 = vcmp.lt.s32.totalorder %v241, 0
        %v453 = vsub.s32 0, %v241
        %v454 = vsel %vm452, %v453, %v241
        %v455 = vmul.u32.u64.compose %v454, 3817748708
        %v456 = vextract.low.u32 %v455
        %v457 = vextract.high.u32 %v455
        %v458 = vshrl.u32 %v457, 4
        %v459 = vmul.u32 %v458, 18
        %v460 = vsub.s32 %v454, %v459
        %v461 = vsub.s32 0, %v460
        %v462 = vsel %vm452, %v461, %v460
        %vm463 = vcmp.lt.s32.totalorder %v242, 0
        %v464 = vsub.s32 0, %v242
        %v465 = vsel %vm463, %v464, %v242
        %v466 = vmul.u32.u64.compose %v465, 3817748708
        %v467 = vextract.low.u32 %v466
        %v468 = vextract.high.u32 %v466
        %v469 = vshrl.u32 %v468, 4
        %v470 = vmul.u32 %v469, 18
        %v471 = vsub.s32 %v465, %v470
        %v472 = vsub.s32 0, %v471
        %v473 = vsel %vm463, %v472, %v471
        %vm474 = vcmp.lt.s32.totalorder %v243, 0
        %v475 = vsub.s32 0, %v243
        %v476 = vsel %vm474, %v475, %v243
        %v477 = vmul.u32.u64.compose %v476, 3817748708
        %v478 = vextract.low.u32 %v477
        %v479 = vextract.high.u32 %v477
        %v480 = vshrl.u32 %v479, 4
        %v481 = vmul.u32 %v480, 18
        %v482 = vsub.s32 %v476, %v481
        %v483 = vsub.s32 0, %v482
        %v484 = vsel %vm474, %v483, %v482
        %vm485 = vcmp.lt.s32.totalorder %v244, 0
        %v486 = vsub.s32 0, %v244
        %v487 = vsel %vm485, %v486, %v244
        %v488 = vmul.u32.u64.compose %v487, 3817748708
        %v489 = vextract.low.u32 %v488
        %v490 = vextract.high.u32 %v488
        %v491 = vshrl.u32 %v490, 4
        %v492 = vmul.u32 %v491, 18
        %v493 = vsub.s32 %v487, %v492
        %v494 = vsub.s32 0, %v493
        %v495 = vsel %vm485, %v494, %v493
        %vm496 = vcmp.lt.s32.totalorder %v245, 0
        %v497 = vsub.s32 0, %v245
        %v498 = vsel %vm496, %v497, %v245
        %v499 = vmul.u32.u64.compose %v498, 3817748708
        %v500 = vextract.low.u32 %v499
        %v501 = vextract.high.u32 %v499
        %v502 = vshrl.u32 %v501, 4
        %v503 = vmul.u32 %v502, 18
        %v504 = vsub.s32 %v498, %v503
        %v505 = vsub.s32 0, %v504
        %v506 = vsel %vm496, %v505, %v504
        %vm507 = vcmp.lt.s32.totalorder %v246, 0
        %v508 = vsub.s32 0, %v246
        %v509 = vsel %vm507, %v508, %v246
        %v510 = vmul.u32.u64.compose %v509, 3817748708
        %v511 = vextract.low.u32 %v510
        %v512 = vextract.high.u32 %v510
        %v513 = vshrl.u32 %v512, 4
        %v514 = vmul.u32 %v513, 18
        %v515 = vsub.s32 %v509, %v514
        %v516 = vsub.s32 0, %v515
        %v517 = vsel %vm507, %v516, %v515
        %vm518 = vcmp.lt.s32.totalorder %v247, 0
        %v519 = vsub.s32 0, %v247
        %v520 = vsel %vm518, %v519, %v247
        %v521 = vmul.u32.u64.compose %v520, 3817748708
        %v522 = vextract.low.u32 %v521
        %v523 = vextract.high.u32 %v521
        %v524 = vshrl.u32 %v523, 4
        %v525 = vmul.u32 %v524, 18
        %v526 = vsub.s32 %v520, %v525
        %v527 = vsub.s32 0, %v526
        %v528 = vsel %vm518, %v527, %v526
        %vm529 = vcmp.lt.s32.totalorder %v248, 0
        %v530 = vsub.s32 0, %v248
        %v531 = vsel %vm529, %v530, %v248
        %v532 = vmul.u32.u64.compose %v531, 3817748708
        %v533 = vextract.low.u32 %v532
        %v534 = vextract.high.u32 %v532
        %v535 = vshrl.u32 %v534, 4
        %v536 = vmul.u32 %v535, 18
        %v537 = vsub.s32 %v531, %v536
        %v538 = vsub.s32 0, %v537
        %v539 = vsel %vm529, %v538, %v537
        %vm540 = vcmp.lt.s32.totalorder %v249, 0
        %v541 = vsub.s32 0, %v249
        %v542 = vsel %vm540, %v541, %v249
        %v543 = vmul.u32.u64.compose %v542, 3817748708
        %v544 = vextract.low.u32 %v543
        %v545 = vextract.high.u32 %v543
        %v546 = vshrl.u32 %v545, 4
        %v547 = vmul.u32 %v546, 18
        %v548 = vsub.s32 %v542, %v547
        %v549 = vsub.s32 0, %v548
        %v550 = vsel %vm540, %v549, %v548
        %vm551 = vcmp.lt.s32.totalorder %v250, 0
        %v552 = vsub.s32 0, %v250
        %v553 = vsel %vm551, %v552, %v250
        %v554 = vmul.u32.u64.compose %v553, 3817748708
        %v555 = vextract.low.u32 %v554
        %v556 = vextract.high.u32 %v554
        %v557 = vshrl.u32 %v556, 4
        %v558 = vmul.u32 %v557, 18
        %v559 = vsub.s32 %v553, %v558
        %v560 = vsub.s32 0, %v559
        %v561 = vsel %vm551, %v560, %v559
        %vm562 = vcmp.lt.s32.totalorder %v251, 0
        %v563 = vsub.s32 0, %v251
        %v564 = vsel %vm562, %v563, %v251
        %v565 = vmul.u32.u64.compose %v564, 3817748708
        %v566 = vextract.low.u32 %v565
        %v567 = vextract.high.u32 %v565
        %v568 = vshrl.u32 %v567, 4
        %v569 = vmul.u32 %v568, 18
        %v570 = vsub.s32 %v564, %v569
        %v571 = vsub.s32 0, %v570
        %v572 = vsel %vm562, %v571, %v570
        %vm573 = vcmp.lt.s32.totalorder %v252, 0
        %v574 = vsub.s32 0, %v252
        %v575 = vsel %vm573, %v574, %v252
        %v576 = vmul.u32.u64.compose %v575, 3817748708
        %v577 = vextract.low.u32 %v576
        %v578 = vextract.high.u32 %v576
        %v579 = vshrl.u32 %v578, 4
        %v580 = vmul.u32 %v579, 18
        %v581 = vsub.s32 %v575, %v580
        %v582 = vsub.s32 0, %v581
        %v583 = vsel %vm573, %v582, %v581
        %vm584 = vcmp.lt.s32.totalorder %v253, 0
        %v585 = vsub.s32 0, %v253
        %v586 = vsel %vm584, %v585, %v253
        %v587 = vmul.u32.u64.compose %v586, 3817748708
        %v588 = vextract.low.u32 %v587
        %v589 = vextract.high.u32 %v587
        %v590 = vshrl.u32 %v589, 4
        %v591 = vmul.u32 %v590, 18
        %v592 = vsub.s32 %v586, %v591
        %v593 = vsub.s32 0, %v592
        %v594 = vsel %vm584, %v593, %v592
        %vm595 = vcmp.lt.s32.totalorder %v254, 0
        %v596 = vsub.s32 0, %v254
        %v597 = vsel %vm595, %v596, %v254
        %v598 = vmul.u32.u64.compose %v597, 3817748708
        %v599 = vextract.low.u32 %v598
        %v600 = vextract.high.u32 %v598
        %v601 = vshrl.u32 %v600, 4
        %v602 = vmul.u32 %v601, 18
        %v603 = vsub.s32 %v597, %v602
        %v604 = vsub.s32 0, %v603
        %v605 = vsel %vm595, %v604, %v603
        %vm606 = vcmp.lt.s32.totalorder %v255, 0
        %v607 = vsub.s32 0, %v255
        %v608 = vsel %vm606, %v607, %v255
        %v609 = vmul.u32.u64.compose %v608, 3817748708
        %v610 = vextract.low.u32 %v609
        %v611 = vextract.high.u32 %v609
        %v612 = vshrl.u32 %v611, 4
        %v613 = vmul.u32 %v612, 18
        %v614 = vsub.s32 %v608, %v613
        %v615 = vsub.s32 0, %v614
        %v616 = vsel %vm606, %v615, %v614
        %vm617 = vcmp.lt.s32.totalorder %v256, 0
        %v618 = vsub.s32 0, %v256
        %v619 = vsel %vm617, %v618, %v256
        %v620 = vmul.u32.u64.compose %v619, 3817748708
        %v621 = vextract.low.u32 %v620
        %v622 = vextract.high.u32 %v620
        %v623 = vshrl.u32 %v622, 4
        %v624 = vmul.u32 %v623, 18
        %v625 = vsub.s32 %v619, %v624
        %v626 = vsub.s32 0, %v625
        %v627 = vsel %vm617, %v626, %v625
        %vm628 = vcmp.lt.s32.totalorder %v257, 0
        %v629 = vsub.s32 0, %v257
        %v630 = vsel %vm628, %v629, %v257
        %v631 = vmul.u32.u64.compose %v630, 3817748708
        %v632 = vextract.low.u32 %v631
        %v633 = vextract.high.u32 %v631
        %v634 = vshrl.u32 %v633, 4
        %v635 = vmul.u32 %v634, 18
        %v636 = vsub.s32 %v630, %v635
        %v637 = vsub.s32 0, %v636
        %v638 = vsel %vm628, %v637, %v636
        %vm639 = vcmp.lt.s32.totalorder %v258, 0
        %v640 = vsub.s32 0, %v258
        %v641 = vsel %vm639, %v640, %v258
        %v642 = vmul.u32.u64.compose %v641, 3817748708
        %v643 = vextract.low.u32 %v642
        %v644 = vextract.high.u32 %v642
        %v645 = vshrl.u32 %v644, 4
        %v646 = vmul.u32 %v645, 18
        %v647 = vsub.s32 %v641, %v646
        %v648 = vsub.s32 0, %v647
        %v649 = vsel %vm639, %v648, %v647
        %vm650 = vcmp.lt.s32.totalorder %v259, 0
        %v651 = vsub.s32 0, %v259
        %v652 = vsel %vm650, %v651, %v259
        %v653 = vmul.u32.u64.compose %v652, 3817748708
        %v654 = vextract.low.u32 %v653
        %v655 = vextract.high.u32 %v653
        %v656 = vshrl.u32 %v655, 4
        %v657 = vmul.u32 %v656, 18
        %v658 = vsub.s32 %v652, %v657
        %v659 = vsub.s32 0, %v658
        %v660 = vsel %vm650, %v659, %v658
        %vm661 = vcmp.lt.s32.totalorder %v260, 0
        %v662 = vsub.s32 0, %v260
        %v663 = vsel %vm661, %v662, %v260
        %v664 = vmul.u32.u64.compose %v663, 3817748708
        %v665 = vextract.low.u32 %v664
        %v666 = vextract.high.u32 %v664
        %v667 = vshrl.u32 %v666, 4
        %v668 = vmul.u32 %v667, 18
        %v669 = vsub.s32 %v663, %v668
        %v670 = vsub.s32 0, %v669
        %v671 = vsel %vm661, %v670, %v669
        %vm672 = vcmp.lt.s32.totalorder %v261, 0
        %v673 = vsub.s32 0, %v261
        %v674 = vsel %vm672, %v673, %v261
        %v675 = vmul.u32.u64.compose %v674, 3817748708
        %v676 = vextract.low.u32 %v675
        %v677 = vextract.high.u32 %v675
        %v678 = vshrl.u32 %v677, 4
        %v679 = vmul.u32 %v678, 18
        %v680 = vsub.s32 %v674, %v679
        %v681 = vsub.s32 0, %v680
        %v682 = vsel %vm672, %v681, %v680
        %vm683 = vcmp.lt.s32.totalorder %v262, 0
        %v684 = vsub.s32 0, %v262
        %v685 = vsel %vm683, %v684, %v262
        %v686 = vmul.u32.u64.compose %v685, 3817748708
        %v687 = vextract.low.u32 %v686
        %v688 = vextract.high.u32 %v686
        %v689 = vshrl.u32 %v688, 4
        %v690 = vmul.u32 %v689, 18
        %v691 = vsub.s32 %v685, %v690
        %v692 = vsub.s32 0, %v691
        %v693 = vsel %vm683, %v692, %v691
        %vm694 = vcmp.lt.s32.totalorder %v263, 0
        %v695 = vsub.s32 0, %v263
        %v696 = vsel %vm694, %v695, %v263
        %v697 = vmul.u32.u64.compose %v696, 3817748708
        %v698 = vextract.low.u32 %v697
        %v699 = vextract.high.u32 %v697
        %v700 = vshrl.u32 %v699, 4
        %v701 = vmul.u32 %v700, 18
        %v702 = vsub.s32 %v696, %v701
        %v703 = vsub.s32 0, %v702
        %v704 = vsel %vm694, %v703, %v702
        %vm705 = vcmp.lt.s32.totalorder %v264, 0
        %v706 = vsub.s32 0, %v264
        %v707 = vsel %vm705, %v706, %v264
        %v708 = vmul.u32.u64.compose %v707, 3817748708
        %v709 = vextract.low.u32 %v708
        %v710 = vextract.high.u32 %v708
        %v711 = vshrl.u32 %v710, 4
        %v712 = vmul.u32 %v711, 18
        %v713 = vsub.s32 %v707, %v712
        %v714 = vsub.s32 0, %v713
        %v715 = vsel %vm705, %v714, %v713
        %vm716 = vcmp.ne.s32.totalorder %v275, 0
        %vm717 = vcmp.ne.s32.totalorder %v286, 0
        %vm718 = vcmp.ne.s32.totalorder %v297, 0
        %vm719 = vcmp.ne.s32.totalorder %v308, 0
        %vm720 = vcmp.ne.s32.totalorder %v319, 0
        %vm721 = vcmp.ne.s32.totalorder %v330, 0
        %vm722 = vcmp.ne.s32.totalorder %v341, 0
        %vm723 = vcmp.ne.s32.totalorder %v352, 0
        %vm724 = vcmp.ne.s32.totalorder %v363, 0
        %vm725 = vcmp.ne.s32.totalorder %v374, 0
        %vm726 = vcmp.ne.s32.totalorder %v385, 0
        %vm727 = vcmp.ne.s32.totalorder %v396, 0
        %vm728 = vcmp.ne.s32.totalorder %v407, 0
        %vm729 = vcmp.ne.s32.totalorder %v418, 0
        %vm730 = vcmp.ne.s32.totalorder %v429, 0
        %vm731 = vcmp.ne.s32.totalorder %v440, 0
        %vm732 = vcmp.ne.s32.totalorder %v451, 0
        %vm733 = vcmp.ne.s32.totalorder %v462, 0
        %vm734 = vcmp.ne.s32.totalorder %v473, 0
        %vm735 = vcmp.ne.s32.totalorder %v484, 0
        %vm736 = vcmp.ne.s32.totalorder %v495, 0
        %vm737 = vcmp.ne.s32.totalorder %v506, 0
        %vm738 = vcmp.ne.s32.totalorder %v517, 0
        %vm739 = vcmp.ne.s32.totalorder %v528, 0
        %vm740 = vcmp.ne.s32.totalorder %v539, 0
        %vm741 = vcmp.ne.s32.totalorder %v550, 0
        %vm742 = vcmp.ne.s32.totalorder %v561, 0
        %vm743 = vcmp.ne.s32.totalorder %v572, 0
        %vm744 = vcmp.ne.s32.totalorder %v583, 0
        %vm745 = vcmp.ne.s32.totalorder %v594, 0
        %vm746 = vcmp.ne.s32.totalorder %v605, 0
        %vm747 = vcmp.ne.s32.totalorder %v616, 0
        %vm748 = vcmp.ne.s32.totalorder %v627, 0
        %vm749 = vcmp.ne.s32.totalorder %v638, 0
        %vm750 = vcmp.ne.s32.totalorder %v649, 0
        %vm751 = vcmp.ne.s32.totalorder %v660, 0
        %vm752 = vcmp.ne.s32.totalorder %v671, 0
        %vm753 = vcmp.ne.s32.totalorder %v682, 0
        %vm754 = vcmp.ne.s32.totalorder %v693, 0
        %vm755 = vcmp.ne.s32.totalorder %v704, 0
        %vm756 = vcmp.ne.s32.totalorder %v715, 0
        %vm757 = vcmp.lt.s32.totalorder %v275, 0
        %vm758 = vcmp.lt.s32.totalorder %v286, 0
        %vm759 = vcmp.lt.s32.totalorder %v297, 0
        %vm760 = vcmp.lt.s32.totalorder %v308, 0
        %vm761 = vcmp.lt.s32.totalorder %v319, 0
        %vm762 = vcmp.lt.s32.totalorder %v330, 0
        %vm763 = vcmp.lt.s32.totalorder %v341, 0
        %vm764 = vcmp.lt.s32.totalorder %v352, 0
        %vm765 = vcmp.lt.s32.totalorder %v363, 0
        %vm766 = vcmp.lt.s32.totalorder %v374, 0
        %vm767 = vcmp.lt.s32.totalorder %v385, 0
        %vm768 = vcmp.lt.s32.totalorder %v396, 0
        %vm769 = vcmp.lt.s32.totalorder %v407, 0
        %vm770 = vcmp.lt.s32.totalorder %v418, 0
        %vm771 = vcmp.lt.s32.totalorder %v429, 0
        %vm772 = vcmp.lt.s32.totalorder %v440, 0
        %vm773 = vcmp.lt.s32.totalorder %v451, 0
        %vm774 = vcmp.lt.s32.totalorder %v462, 0
        %vm775 = vcmp.lt.s32.totalorder %v473, 0
        %vm776 = vcmp.lt.s32.totalorder %v484, 0
        %vm777 = vcmp.lt.s32.totalorder %v495, 0
        %vm778 = vcmp.lt.s32.totalorder %v506, 0
        %vm779 = vcmp.lt.s32.totalorder %v517, 0
        %vm780 = vcmp.lt.s32.totalorder %v528, 0
        %vm781 = vcmp.lt.s32.totalorder %v539, 0
        %vm782 = vcmp.lt.s32.totalorder %v550, 0
        %vm783 = vcmp.lt.s32.totalorder %v561, 0
        %vm784 = vcmp.lt.s32.totalorder %v572, 0
        %vm785 = vcmp.lt.s32.totalorder %v583, 0
        %vm786 = vcmp.lt.s32.totalorder %v594, 0
        %vm787 = vcmp.lt.s32.totalorder %v605, 0
        %vm788 = vcmp.lt.s32.totalorder %v616, 0
        %vm789 = vcmp.lt.s32.totalorder %v627, 0
        %vm790 = vcmp.lt.s32.totalorder %v638, 0
        %vm791 = vcmp.lt.s32.totalorder %v649, 0
        %vm792 = vcmp.lt.s32.totalorder %v660, 0
        %vm793 = vcmp.lt.s32.totalorder %v671, 0
        %vm794 = vcmp.lt.s32.totalorder %v682, 0
        %vm795 = vcmp.lt.s32.totalorder %v693, 0
        %vm796 = vcmp.lt.s32.totalorder %v704, 0
        %vm797 = vcmp.lt.s32.totalorder %v715, 0
        %vm798 = vmand %vm757, %vm716
        %vm799 = vmand %vm758, %vm717
        %vm800 = vmand %vm759, %vm718
        %vm801 = vmand %vm760, %vm719
        %vm802 = vmand %vm761, %vm720
        %vm803 = vmand %vm762, %vm721
        %vm804 = vmand %vm763, %vm722
        %vm805 = vmand %vm764, %vm723
        %vm806 = vmand %vm765, %vm724
        %vm807 = vmand %vm766, %vm725
        %vm808 = vmand %vm767, %vm726
        %vm809 = vmand %vm768, %vm727
        %vm810 = vmand %vm769, %vm728
        %vm811 = vmand %vm770, %vm729
        %vm812 = vmand %vm771, %vm730
        %vm813 = vmand %vm772, %vm731
        %vm814 = vmand %vm773, %vm732
        %vm815 = vmand %vm774, %vm733
        %vm816 = vmand %vm775, %vm734
        %vm817 = vmand %vm776, %vm735
        %vm818 = vmand %vm777, %vm736
        %vm819 = vmand %vm778, %vm737
        %vm820 = vmand %vm779, %vm738
        %vm821 = vmand %vm780, %vm739
        %vm822 = vmand %vm781, %vm740
        %vm823 = vmand %vm782, %vm741
        %vm824 = vmand %vm783, %vm742
        %vm825 = vmand %vm784, %vm743
        %vm826 = vmand %vm785, %vm744
        %vm827 = vmand %vm786, %vm745
        %vm828 = vmand %vm787, %vm746
        %vm829 = vmand %vm788, %vm747
        %vm830 = vmand %vm789, %vm748
        %vm831 = vmand %vm790, %vm749
        %vm832 = vmand %vm791, %vm750
        %vm833 = vmand %vm792, %vm751
        %vm834 = vmand %vm793, %vm752
        %vm835 = vmand %vm794, %vm753
        %vm836 = vmand %vm795, %vm754
        %vm837 = vmand %vm796, %vm755
        %vm838 = vmand %vm797, %vm756
        %v839 = vadd.s32 %v275, 18
        %v840 = vadd.s32 %v286, 18
        %v841 = vadd.s32 %v297, 18
        %v842 = vadd.s32 %v308, 18
        %v843 = vadd.s32 %v319, 18
        %v844 = vadd.s32 %v330, 18
        %v845 = vadd.s32 %v341, 18
        %v846 = vadd.s32 %v352, 18
        %v847 = vadd.s32 %v363, 18
        %v848 = vadd.s32 %v374, 18
        %v849 = vadd.s32 %v385, 18
        %v850 = vadd.s32 %v396, 18
        %v851 = vadd.s32 %v407, 18
        %v852 = vadd.s32 %v418, 18
        %v853 = vadd.s32 %v429, 18
        %v854 = vadd.s32 %v440, 18
        %v855 = vadd.s32 %v451, 18
        %v856 = vadd.s32 %v462, 18
        %v857 = vadd.s32 %v473, 18
        %v858 = vadd.s32 %v484, 18
        %v859 = vadd.s32 %v495, 18
        %v860 = vadd.s32 %v506, 18
        %v861 = vadd.s32 %v517, 18
        %v862 = vadd.s32 %v528, 18
        %v863 = vadd.s32 %v539, 18
        %v864 = vadd.s32 %v550, 18
        %v865 = vadd.s32 %v561, 18
        %v866 = vadd.s32 %v572, 18
        %v867 = vadd.s32 %v583, 18
        %v868 = vadd.s32 %v594, 18
        %v869 = vadd.s32 %v605, 18
        %v870 = vadd.s32 %v616, 18
        %v871 = vadd.s32 %v627, 18
        %v872 = vadd.s32 %v638, 18
        %v873 = vadd.s32 %v649, 18
        %v874 = vadd.s32 %v660, 18
        %v875 = vadd.s32 %v671, 18
        %v876 = vadd.s32 %v682, 18
        %v877 = vadd.s32 %v693, 18
        %v878 = vadd.s32 %v704, 18
        %v879 = vadd.s32 %v715, 18
        %v880 = vsel %vm798, %v839, %v275
        %v881 = vsel %vm799, %v840, %v286
        %v882 = vsel %vm800, %v841, %v297
        %v883 = vsel %vm801, %v842, %v308
        %v884 = vsel %vm802, %v843, %v319
        %v885 = vsel %vm803, %v844, %v330
        %v886 = vsel %vm804, %v845, %v341
        %v887 = vsel %vm805, %v846, %v352
        %v888 = vsel %vm806, %v847, %v363
        %v889 = vsel %vm807, %v848, %v374
        %v890 = vsel %vm808, %v849, %v385
        %v891 = vsel %vm809, %v850, %v396
        %v892 = vsel %vm810, %v851, %v407
        %v893 = vsel %vm811, %v852, %v418
        %v894 = vsel %vm812, %v853, %v429
        %v895 = vsel %vm813, %v854, %v440
        %v896 = vsel %vm814, %v855, %v451
        %v897 = vsel %vm815, %v856, %v462
        %v898 = vsel %vm816, %v857, %v473
        %v899 = vsel %vm817, %v858, %v484
        %v900 = vsel %vm818, %v859, %v495
        %v901 = vsel %vm819, %v860, %v506
        %v902 = vsel %vm820, %v861, %v517
        %v903 = vsel %vm821, %v862, %v528
        %v904 = vsel %vm822, %v863, %v539
        %v905 = vsel %vm823, %v864, %v550
        %v906 = vsel %vm824, %v865, %v561
        %v907 = vsel %vm825, %v866, %v572
        %v908 = vsel %vm826, %v867, %v583
        %v909 = vsel %vm827, %v868, %v594
        %v910 = vsel %vm828, %v869, %v605
        %v911 = vsel %vm829, %v870, %v616
        %v912 = vsel %vm830, %v871, %v627
        %v913 = vsel %vm831, %v872, %v638
        %v914 = vsel %vm832, %v873, %v649
        %v915 = vsel %vm833, %v874, %v660
        %v916 = vsel %vm834, %v875, %v671
        %v917 = vsel %vm835, %v876, %v682
        %v918 = vsel %vm836, %v877, %v693
        %v919 = vsel %vm837, %v878, %v704
        %v920 = vsel %vm838, %v879, %v715
        %vm921 = vcmp.lt.s32.totalorder %v880, 16
        %vm922 = vcmp.lt.s32.totalorder %v881, 16
        %vm923 = vcmp.lt.s32.totalorder %v882, 16
        %vm924 = vcmp.lt.s32.totalorder %v883, 16
        %vm925 = vcmp.lt.s32.totalorder %v884, 16
        %vm926 = vcmp.lt.s32.totalorder %v885, 16
        %vm927 = vcmp.lt.s32.totalorder %v886, 16
        %vm928 = vcmp.lt.s32.totalorder %v887, 16
        %vm929 = vcmp.lt.s32.totalorder %v888, 16
        %vm930 = vcmp.lt.s32.totalorder %v889, 16
        %vm931 = vcmp.lt.s32.totalorder %v890, 16
        %vm932 = vcmp.lt.s32.totalorder %v891, 16
        %vm933 = vcmp.lt.s32.totalorder %v892, 16
        %vm934 = vcmp.lt.s32.totalorder %v893, 16
        %vm935 = vcmp.lt.s32.totalorder %v894, 16
        %vm936 = vcmp.lt.s32.totalorder %v895, 16
        %vm937 = vcmp.lt.s32.totalorder %v896, 16
        %vm938 = vcmp.lt.s32.totalorder %v897, 16
        %vm939 = vcmp.lt.s32.totalorder %v898, 16
        %vm940 = vcmp.lt.s32.totalorder %v899, 16
        %vm941 = vcmp.lt.s32.totalorder %v900, 16
        %vm942 = vcmp.lt.s32.totalorder %v901, 16
        %vm943 = vcmp.lt.s32.totalorder %v902, 16
        %vm944 = vcmp.lt.s32.totalorder %v903, 16
        %vm945 = vcmp.lt.s32.totalorder %v904, 16
        %vm946 = vcmp.lt.s32.totalorder %v905, 16
        %vm947 = vcmp.lt.s32.totalorder %v906, 16
        %vm948 = vcmp.lt.s32.totalorder %v907, 16
        %vm949 = vcmp.lt.s32.totalorder %v908, 16
        %vm950 = vcmp.lt.s32.totalorder %v909, 16
        %vm951 = vcmp.lt.s32.totalorder %v910, 16
        %vm952 = vcmp.lt.s32.totalorder %v911, 16
        %vm953 = vcmp.lt.s32.totalorder %v912, 16
        %vm954 = vcmp.lt.s32.totalorder %v913, 16
        %vm955 = vcmp.lt.s32.totalorder %v914, 16
        %vm956 = vcmp.lt.s32.totalorder %v915, 16
        %vm957 = vcmp.lt.s32.totalorder %v916, 16
        %vm958 = vcmp.lt.s32.totalorder %v917, 16
        %vm959 = vcmp.lt.s32.totalorder %v918, 16
        %vm960 = vcmp.lt.s32.totalorder %v919, 16
        %vm961 = vcmp.lt.s32.totalorder %v920, 16
        %vm962 = vcmp.lt.s32.totalorder %v224, 288
        %vm963 = vcmp.lt.s32.totalorder %v225, 288
        %vm964 = vcmp.lt.s32.totalorder %v226, 288
        %vm965 = vcmp.lt.s32.totalorder %v227, 288
        %vm966 = vcmp.lt.s32.totalorder %v228, 288
        %vm967 = vcmp.lt.s32.totalorder %v229, 288
        %vm968 = vcmp.lt.s32.totalorder %v230, 288
        %vm969 = vcmp.lt.s32.totalorder %v231, 288
        %vm970 = vcmp.lt.s32.totalorder %v232, 288
        %vm971 = vcmp.lt.s32.totalorder %v233, 288
        %vm972 = vcmp.lt.s32.totalorder %v234, 288
        %vm973 = vcmp.lt.s32.totalorder %v235, 288
        %vm974 = vcmp.lt.s32.totalorder %v236, 288
        %vm975 = vcmp.lt.s32.totalorder %v237, 288
        %vm976 = vcmp.lt.s32.totalorder %v238, 288
        %vm977 = vcmp.lt.s32.totalorder %v239, 288
        %vm978 = vcmp.lt.s32.totalorder %v240, 288
        %vm979 = vcmp.lt.s32.totalorder %v241, 288
        %vm980 = vcmp.lt.s32.totalorder %v242, 288
        %vm981 = vcmp.lt.s32.totalorder %v243, 288
        %vm982 = vcmp.lt.s32.totalorder %v244, 288
        %vm983 = vcmp.lt.s32.totalorder %v245, 288
        %vm984 = vcmp.lt.s32.totalorder %v246, 288
        %vm985 = vcmp.lt.s32.totalorder %v247, 288
        %vm986 = vcmp.lt.s32.totalorder %v248, 288
        %vm987 = vcmp.lt.s32.totalorder %v249, 288
        %vm988 = vcmp.lt.s32.totalorder %v250, 288
        %vm989 = vcmp.lt.s32.totalorder %v251, 288
        %vm990 = vcmp.lt.s32.totalorder %v252, 288
        %vm991 = vcmp.lt.s32.totalorder %v253, 288
        %vm992 = vcmp.lt.s32.totalorder %v254, 288
        %vm993 = vcmp.lt.s32.totalorder %v255, 288
        %vm994 = vcmp.lt.s32.totalorder %v256, 288
        %vm995 = vcmp.lt.s32.totalorder %v257, 288
        %vm996 = vcmp.lt.s32.totalorder %v258, 288
        %vm997 = vcmp.lt.s32.totalorder %v259, 288
        %vm998 = vcmp.lt.s32.totalorder %v260, 288
        %vm999 = vcmp.lt.s32.totalorder %v261, 288
        %vm1000 = vcmp.lt.s32.totalorder %v262, 288
        %vm1001 = vcmp.lt.s32.totalorder %v263, 288
        %vm1002 = vcmp.lt.s32.totalorder %v264, 288
        %vm1003 = vmand %vm921, %vm962
        %vm1004 = vmand %vm922, %vm963
        %vm1005 = vmand %vm923, %vm964
        %vm1006 = vmand %vm924, %vm965
        %vm1007 = vmand %vm925, %vm966
        %vm1008 = vmand %vm926, %vm967
        %vm1009 = vmand %vm927, %vm968
        %vm1010 = vmand %vm928, %vm969
        %vm1011 = vmand %vm929, %vm970
        %vm1012 = vmand %vm930, %vm971
        %vm1013 = vmand %vm931, %vm972
        %vm1014 = vmand %vm932, %vm973
        %vm1015 = vmand %vm933, %vm974
        %vm1016 = vmand %vm934, %vm975
        %vm1017 = vmand %vm935, %vm976
        %vm1018 = vmand %vm936, %vm977
        %vm1019 = vmand %vm937, %vm978
        %vm1020 = vmand %vm938, %vm979
        %vm1021 = vmand %vm939, %vm980
        %vm1022 = vmand %vm940, %vm981
        %vm1023 = vmand %vm941, %vm982
        %vm1024 = vmand %vm942, %vm983
        %vm1025 = vmand %vm943, %vm984
        %vm1026 = vmand %vm944, %vm985
        %vm1027 = vmand %vm945, %vm986
        %vm1028 = vmand %vm946, %vm987
        %vm1029 = vmand %vm947, %vm988
        %vm1030 = vmand %vm948, %vm989
        %vm1031 = vmand %vm949, %vm990
        %vm1032 = vmand %vm950, %vm991
        %vm1033 = vmand %vm951, %vm992
        %vm1034 = vmand %vm952, %vm993
        %vm1035 = vmand %vm953, %vm994
        %vm1036 = vmand %vm954, %vm995
        %vm1037 = vmand %vm955, %vm996
        %vm1038 = vmand %vm956, %vm997
        %vm1039 = vmand %vm957, %vm998
        %vm1040 = vmand %vm958, %vm999
        %vm1041 = vmand %vm959, %vm1000
        %vm1042 = vmand %vm960, %vm1001
        %vm1043 = vmand %vm961, %vm1002
        %v1044 = vld [vmem:[%s221] sm:$0xf]
        %v1045 = vld [vmem:[%s221 + $0x4] sm:$0xf]
        %v1046 = vld [vmem:[%s221 + $0x8] sm:$0xf]
        %v1047 = vld [vmem:[%s221 + $0xc] sm:$0xf]
        %v1048 = vld [vmem:[%s221 + $0x10] sm:$0xf]
        %v1049 = vld [vmem:[%s221 + $0x14] sm:$0xf]
        %v1050 = vld [vmem:[%s221 + $0x18] sm:$0xf]
        %v1051 = vld [vmem:[%s221 + $0x1c] sm:$0xf]
        %v1052 = vld [vmem:[%s221 + $0x20] sm:$0xf]
        %v1053 = vld [vmem:[%s221 + $0x24] sm:$0xf]
        %v1054 = vld [vmem:[%s221 + $0x28] sm:$0xf]
        %v1055 = vld [vmem:[%s221 + $0x2c] sm:$0xf]
        %v1056 = vld [vmem:[%s221 + $0x30] sm:$0xf]
        %v1057 = vld [vmem:[%s221 + $0x34] sm:$0xf]
        %v1058 = vld [vmem:[%s221 + $0x38] sm:$0xf]
        %v1059 = vld [vmem:[%s221 + $0x3c] sm:$0xf]
        %v1060 = vld [vmem:[%s221 + $0x40] sm:$0xf]
        %v1061 = vld [vmem:[%s221 + $0x44] sm:$0xf]
        %v1062 = vld [vmem:[%s221 + $0x48] sm:$0xf]
        %v1063 = vld [vmem:[%s221 + $0x4c] sm:$0xf]
        %v1064 = vld [vmem:[%s221 + $0x50] sm:$0xf]
        %v1065 = vld [vmem:[%s221 + $0x54] sm:$0xf]
        %v1066 = vld [vmem:[%s221 + $0x58] sm:$0xf]
        %v1067 = vld [vmem:[%s221 + $0x5c] sm:$0xf]
        %v1068 = vld [vmem:[%s221 + $0x60] sm:$0xf]
        %v1069 = vld [vmem:[%s221 + $0x64] sm:$0xf]
        %v1070 = vld [vmem:[%s221 + $0x68] sm:$0xf]
        %v1071 = vld [vmem:[%s221 + $0x6c] sm:$0xf]
        %v1072 = vld [vmem:[%s221 + $0x70] sm:$0xf]
        %v1073 = vld [vmem:[%s221 + $0x74] sm:$0xf]
        %v1074 = vld [vmem:[%s221 + $0x78] sm:$0xf]
        %v1075 = vld [vmem:[%s221 + $0x7c] sm:$0xf]
        %v1076 = vld [vmem:[%s221 + $0x80] sm:$0xf]
        %v1077 = vld [vmem:[%s221 + $0x84] sm:$0xf]
        %v1078 = vld [vmem:[%s221 + $0x88] sm:$0xf]
        %v1079 = vld [vmem:[%s221 + $0x8c] sm:$0xf]
        %v1080 = vld [vmem:[%s221 + $0x90] sm:$0xf]
        %v1081 = vld [vmem:[%s221 + $0x94] sm:$0xf]
        %v1082 = vld [vmem:[%s221 + $0x98] sm:$0xf]
        %v1083 = vld [vmem:[%s221 + $0x9c] sm:$0xf]
        %v1084 = vld [vmem:[%s221 + $0xa0] sm:$0x3]
        %v1085 = vld [vmem:[%s1] sm:$0x3]
        %s1086 = scalar_lea.vmem %s1, 2
        %v1087 = vld [vmem:[%s1086] sm:$0x3]
        %v1129 = vunpack.c.l.b16 %v1044
        %v1130 = vunpack.c.l.b16 %v1045
        %v1131 = vunpack.c.l.b16 %v1046
        %v1132 = vunpack.c.l.b16 %v1047
        %v1133 = vunpack.c.l.b16 %v1048
        %v1134 = vunpack.c.l.b16 %v1049
        %v1135 = vunpack.c.l.b16 %v1050
        %v1136 = vunpack.c.l.b16 %v1051
        %v1137 = vunpack.c.l.b16 %v1052
        %v1138 = vunpack.c.l.b16 %v1053
        %v1139 = vunpack.c.l.b16 %v1054
        %v1140 = vunpack.c.l.b16 %v1055
        %v1141 = vunpack.c.l.b16 %v1056
        %v1142 = vunpack.c.l.b16 %v1057
        %v1143 = vunpack.c.l.b16 %v1058
        %v1144 = vunpack.c.l.b16 %v1059
        %v1145 = vunpack.c.l.b16 %v1060
        %v1146 = vunpack.c.l.b16 %v1061
        %v1147 = vunpack.c.l.b16 %v1062
        %v1148 = vunpack.c.l.b16 %v1063
        %v1149 = vunpack.c.l.b16 %v1064
        %v1150 = vunpack.c.l.b16 %v1065
        %v1151 = vunpack.c.l.b16 %v1066
        %v1152 = vunpack.c.l.b16 %v1067
        %v1153 = vunpack.c.l.b16 %v1068
        %v1154 = vunpack.c.l.b16 %v1069
        %v1155 = vunpack.c.l.b16 %v1070
        %v1156 = vunpack.c.l.b16 %v1071
        %v1157 = vunpack.c.l.b16 %v1072
        %v1158 = vunpack.c.l.b16 %v1073
        %v1159 = vunpack.c.l.b16 %v1074
        %v1160 = vunpack.c.l.b16 %v1075
        %v1161 = vunpack.c.l.b16 %v1076
        %v1162 = vunpack.c.l.b16 %v1077
        %v1163 = vunpack.c.l.b16 %v1078
        %v1164 = vunpack.c.l.b16 %v1079
        %v1165 = vunpack.c.l.b16 %v1080
        %v1166 = vunpack.c.l.b16 %v1081
        %v1167 = vunpack.c.l.b16 %v1082
        %v1168 = vunpack.c.l.b16 %v1083
        %v1169 = vunpack.c.l.b16 %v1084
        %v1170 = vpack.c.b16 %v1130, %v1129
        %v1171 = vpack.c.b16 %v1132, %v1131
        %v1172 = vpack.c.b16 %v1134, %v1133
        %v1173 = vpack.c.b16 %v1136, %v1135
        %v1174 = vpack.c.b16 %v1138, %v1137
        %v1175 = vpack.c.b16 %v1140, %v1139
        %v1176 = vpack.c.b16 %v1142, %v1141
        %v1177 = vpack.c.b16 %v1144, %v1143
        %v1178 = vpack.c.b16 %v1146, %v1145
        %v1179 = vpack.c.b16 %v1148, %v1147
        %v1180 = vpack.c.b16 %v1150, %v1149
        %v1181 = vpack.c.b16 %v1152, %v1151
        %v1182 = vpack.c.b16 %v1154, %v1153
        %v1183 = vpack.c.b16 %v1156, %v1155
        %v1184 = vpack.c.b16 %v1158, %v1157
        %v1185 = vpack.c.b16 %v1160, %v1159
        %v1186 = vpack.c.b16 %v1162, %v1161
        %v1187 = vpack.c.b16 %v1164, %v1163
        %v1188 = vpack.c.b16 %v1166, %v1165
        %v1189 = vpack.c.b16 %v1168, %v1167
        %v1190 = vpack.c.b16 %v1169, %v1169
        %vm1191 = vcmask 31744
        %v1193 = vsel %vm1191, %v1170, 0
        %v1196 = vsel %vm1191, %v1171, 0
        %v1199 = vsel %vm1191, %v1172, 0
        %v1202 = vsel %vm1191, %v1173, 0
        %v1205 = vsel %vm1191, %v1174, 0
        %v1208 = vsel %vm1191, %v1175, 0
        %v1211 = vsel %vm1191, %v1176, 0
        %v1214 = vsel %vm1191, %v1177, 0
        %v1217 = vsel %vm1191, %v1178, 0
        %v1220 = vsel %vm1191, %v1179, 0
        %v1223 = vsel %vm1191, %v1180, 0
        %v1226 = vsel %vm1191, %v1181, 0
        %v1229 = vsel %vm1191, %v1182, 0
        %v1232 = vsel %vm1191, %v1183, 0
        %v1235 = vsel %vm1191, %v1184, 0
        %v1238 = vsel %vm1191, %v1185, 0
        %v1241 = vsel %vm1191, %v1186, 0
        %v1244 = vsel %vm1191, %v1187, 0
        %v1247 = vsel %vm1191, %v1188, 0
        %v1250 = vsel %vm1191, %v1189, 0
        %v1253 = vsel %vm1191, %v1190, 0
        %vm1255 = vcmask 1041408
        %v1257 = vsel %vm1255, %v1087, 0
        %1259 = vmatprep.subr.bf16.mxu0 0
        %1260 = vmatpush1.bf16.msra.mxu0 %v1257
        %1261 = vmatprep.subr.bf16.mxu0 0
        %1262 = vmatpush1.bf16.msra.mxu0 0
        %1263 = vmatprep.subr.bf16.mxu0 0
        %1264 = vmatpush1.bf16.msra.mxu0 0
        %1265 = vmatprep.subr.bf16.mxu0 0
        %1266 = vmatpush1.bf16.msra.mxu0 0
        %1267 = vmatprep.subr.bf16.mxu0 0
        %1268 = vmatpush1.bf16.msra.mxu0 0
        %1269 = vmatprep.subr.bf16.mxu0 0
        %1270 = vmatpush1.bf16.msra.mxu0 0
        %1271 = vmatprep.subr.bf16.mxu0 0
        %1272 = vmatpush1.bf16.msra.mxu0 0
        %1273 = vmatprep.subr.bf16.mxu0 0
        %1274 = vmatpush1.bf16.msra.mxu0 0
        %1275 = vmatprep.subr.bf16.mxu0 0
        %1276 = vmatpush1.bf16.msra.mxu0 0
        %1277 = vmatprep.subr.bf16.mxu0 0
        %1278 = vmatpush1.bf16.msra.mxu0 0
        %1279 = vmatprep.subr.bf16.mxu0 0
        %1280 = vmatpush1.bf16.msra.mxu0 0
        %1281 = vmatprep.subr.bf16.mxu0 0
        %1282 = vmatpush1.bf16.msra.mxu0 0
        %1283 = vmatprep.subr.bf16.mxu0 0
        %1284 = vmatpush1.bf16.msra.mxu0 0
        %1285 = vmatprep.subr.bf16.mxu0 0
        %1286 = vmatpush1.bf16.msra.mxu0 0
        %1287 = vmatprep.subr.bf16.mxu0 0
        %1288 = vmatpush1.bf16.msra.mxu0 0
        %1289 = vmatprep.subr.bf16.mxu0 0
        %1290 = vmatpush1.bf16.msra.mxu0 0
        %1291 = vmatprep.mubr.bf16.mxu0 0
        %1292 = vmatmul.mubr.bf16.gmra.mrb[0].mxu0 %v1193
        %v1293 = vpop.f32.mrb[0].mxu0
        %v1294 = vadd.f32 0.0, %v1293
        %v1295 = vpop.f32.mrb[0].mxu0
        %v1296 = vpop.f32.mrb[0].mxu0
        %v1297 = vadd.f32 0.0, %v1296
        %v1298 = vpop.f32.mrb[0].mxu0
        %1299 = vmatprep.mubr.bf16.mxu0 0
        %1300 = vmatmul.mubr.bf16.gmra.mrb[0].mxu0 %v1196
        %v1301 = vpop.f32.mrb[0].mxu0
        %v1302 = vadd.f32 0.0, %v1301
        %v1303 = vpop.f32.mrb[0].mxu0
        %v1304 = vpop.f32.mrb[0].mxu0
        %v1305 = vadd.f32 0.0, %v1304
        %v1306 = vpop.f32.mrb[0].mxu0
        %1307 = vmatprep.mubr.bf16.mxu0 0
        %1308 = vmatmul.mubr.bf16.gmra.mrb[0].mxu0 %v1199
        %v1309 = vpop.f32.mrb[0].mxu0
        %v1310 = vadd.f32 0.0, %v1309
        %v1311 = vpop.f32.mrb[0].mxu0
        %v1312 = vpop.f32.mrb[0].mxu0
        %v1313 = vadd.f32 0.0, %v1312
        %v1314 = vpop.f32.mrb[0].mxu0
        %1315 = vmatprep.mubr.bf16.mxu0 0
        %1316 = vmatmul.mubr.bf16.gmra.mrb[0].mxu0 %v1202
        %v1317 = vpop.f32.mrb[0].mxu0
        %v1318 = vadd.f32 0.0, %v1317
        %v1319 = vpop.f32.mrb[0].mxu0
        %v1320 = vpop.f32.mrb[0].mxu0
        %v1321 = vadd.f32 0.0, %v1320
        %v1322 = vpop.f32.mrb[0].mxu0
        %1323 = vmatprep.mubr.bf16.mxu0 0
        %1324 = vmatmul.mubr.bf16.gmra.mrb[0].mxu0 %v1205
        %v1325 = vpop.f32.mrb[0].mxu0
        %v1326 = vadd.f32 0.0, %v1325
        %v1327 = vpop.f32.mrb[0].mxu0
        %v1328 = vpop.f32.mrb[0].mxu0
        %v1329 = vadd.f32 0.0, %v1328
        %v1330 = vpop.f32.mrb[0].mxu0
        %1331 = vmatprep.mubr.bf16.mxu0 0
        %1332 = vmatmul.mubr.bf16.gmra.mrb[0].mxu0 %v1208
        %v1333 = vpop.f32.mrb[0].mxu0
        %v1334 = vadd.f32 0.0, %v1333
        %v1335 = vpop.f32.mrb[0].mxu0
        %v1336 = vpop.f32.mrb[0].mxu0
        %v1337 = vadd.f32 0.0, %v1336
        %v1338 = vpop.f32.mrb[0].mxu0
        %1339 = vmatprep.mubr.bf16.mxu0 0
        %1340 = vmatmul.mubr.bf16.gmra.mrb[0].mxu0 %v1211
        %v1341 = vpop.f32.mrb[0].mxu0
        %v1342 = vadd.f32 0.0, %v1341
        %v1343 = vpop.f32.mrb[0].mxu0
        %v1344 = vpop.f32.mrb[0].mxu0
        %v1345 = vadd.f32 0.0, %v1344
        %v1346 = vpop.f32.mrb[0].mxu0
        %1347 = vmatprep.mubr.bf16.mxu0 0
        %1348 = vmatmul.mubr.bf16.gmra.mrb[0].mxu0 %v1214
        %v1349 = vpop.f32.mrb[0].mxu0
        %v1350 = vadd.f32 0.0, %v1349
        %v1351 = vpop.f32.mrb[0].mxu0
        %v1352 = vpop.f32.mrb[0].mxu0
        %v1353 = vadd.f32 0.0, %v1352
        %v1354 = vpop.f32.mrb[0].mxu0
        %1355 = vmatprep.mubr.bf16.mxu0 0
        %1356 = vmatmul.mubr.bf16.gmra.mrb[0].mxu0 %v1217
        %v1357 = vpop.f32.mrb[0].mxu0
        %v1358 = vadd.f32 0.0, %v1357
        %v1359 = vpop.f32.mrb[0].mxu0
        %v1360 = vpop.f32.mrb[0].mxu0
        %v1361 = vadd.f32 0.0, %v1360
        %v1362 = vpop.f32.mrb[0].mxu0
        %1363 = vmatprep.mubr.bf16.mxu0 0
        %1364 = vmatmul.mubr.bf16.gmra.mrb[0].mxu0 %v1220
        %v1365 = vpop.f32.mrb[0].mxu0
        %v1366 = vadd.f32 0.0, %v1365
        %v1367 = vpop.f32.mrb[0].mxu0
        %v1368 = vpop.f32.mrb[0].mxu0
        %v1369 = vadd.f32 0.0, %v1368
        %v1370 = vpop.f32.mrb[0].mxu0
        %1371 = vmatprep.mubr.bf16.mxu0 0
        %1372 = vmatmul.mubr.bf16.gmra.mrb[0].mxu0 %v1223
        %v1373 = vpop.f32.mrb[0].mxu0
        %v1374 = vadd.f32 0.0, %v1373
        %v1375 = vpop.f32.mrb[0].mxu0
        %v1376 = vpop.f32.mrb[0].mxu0
        %v1377 = vadd.f32 0.0, %v1376
        %v1378 = vpop.f32.mrb[0].mxu0
        %1379 = vmatprep.mubr.bf16.mxu0 0
        %1380 = vmatmul.mubr.bf16.gmra.mrb[0].mxu0 %v1226
        %v1381 = vpop.f32.mrb[0].mxu0
        %v1382 = vadd.f32 0.0, %v1381
        %v1383 = vpop.f32.mrb[0].mxu0
        %v1384 = vpop.f32.mrb[0].mxu0
        %v1385 = vadd.f32 0.0, %v1384
        %v1386 = vpop.f32.mrb[0].mxu0
        %1387 = vmatprep.mubr.bf16.mxu0 0
        %1388 = vmatmul.mubr.bf16.gmra.mrb[0].mxu0 %v1229
        %v1389 = vpop.f32.mrb[0].mxu0
        %v1390 = vadd.f32 0.0, %v1389
        %v1391 = vpop.f32.mrb[0].mxu0
        %v1392 = vpop.f32.mrb[0].mxu0
        %v1393 = vadd.f32 0.0, %v1392
        %v1394 = vpop.f32.mrb[0].mxu0
        %1395 = vmatprep.mubr.bf16.mxu0 0
        %1396 = vmatmul.mubr.bf16.gmra.mrb[0].mxu0 %v1232
        %v1397 = vpop.f32.mrb[0].mxu0
        %v1398 = vadd.f32 0.0, %v1397
        %v1399 = vpop.f32.mrb[0].mxu0
        %v1400 = vpop.f32.mrb[0].mxu0
        %v1401 = vadd.f32 0.0, %v1400
        %v1402 = vpop.f32.mrb[0].mxu0
        %1403 = vmatprep.mubr.bf16.mxu0 0
        %1404 = vmatmul.mubr.bf16.gmra.mrb[0].mxu0 %v1235
        %v1405 = vpop.f32.mrb[0].mxu0
        %v1406 = vadd.f32 0.0, %v1405
        %v1407 = vpop.f32.mrb[0].mxu0
        %v1408 = vpop.f32.mrb[0].mxu0
        %v1409 = vadd.f32 0.0, %v1408
        %v1410 = vpop.f32.mrb[0].mxu0
        %1411 = vmatprep.mubr.bf16.mxu0 0
        %1412 = vmatmul.mubr.bf16.gmra.mrb[0].mxu0 %v1238
        %v1413 = vpop.f32.mrb[0].mxu0
        %v1414 = vadd.f32 0.0, %v1413
        %v1415 = vpop.f32.mrb[0].mxu0
        %v1416 = vpop.f32.mrb[0].mxu0
        %v1417 = vadd.f32 0.0, %v1416
        %v1418 = vpop.f32.mrb[0].mxu0
        %1419 = vmatprep.mubr.bf16.mxu0 0
        %1420 = vmatmul.mubr.bf16.gmra.mrb[0].mxu0 %v1241
        %v1421 = vpop.f32.mrb[0].mxu0
        %v1422 = vadd.f32 0.0, %v1421
        %v1423 = vpop.f32.mrb[0].mxu0
        %v1424 = vpop.f32.mrb[0].mxu0
        %v1425 = vadd.f32 0.0, %v1424
        %v1426 = vpop.f32.mrb[0].mxu0
        %1427 = vmatprep.mubr.bf16.mxu0 0
        %1428 = vmatmul.mubr.bf16.gmra.mrb[0].mxu0 %v1244
        %v1429 = vpop.f32.mrb[0].mxu0
        %v1430 = vadd.f32 0.0, %v1429
        %v1431 = vpop.f32.mrb[0].mxu0
        %v1432 = vpop.f32.mrb[0].mxu0
        %v1433 = vadd.f32 0.0, %v1432
        %v1434 = vpop.f32.mrb[0].mxu0
        %1435 = vmatprep.mubr.bf16.mxu0 0
        %1436 = vmatmul.mubr.bf16.gmra.mrb[0].mxu0 %v1247
        %v1437 = vpop.f32.mrb[0].mxu0
        %v1438 = vadd.f32 0.0, %v1437
        %v1439 = vpop.f32.mrb[0].mxu0
        %v1440 = vpop.f32.mrb[0].mxu0
        %v1441 = vadd.f32 0.0, %v1440
        %v1442 = vpop.f32.mrb[0].mxu0
        %1443 = vmatprep.mubr.bf16.mxu0 0
        %1444 = vmatmul.mubr.bf16.gmra.mrb[0].mxu0 %v1250
        %v1445 = vpop.f32.mrb[0].mxu0
        %v1446 = vadd.f32 0.0, %v1445
        %v1447 = vpop.f32.mrb[0].mxu0
        %v1448 = vpop.f32.mrb[0].mxu0
        %v1449 = vadd.f32 0.0, %v1448
        %v1450 = vpop.f32.mrb[0].mxu0
        %1451 = vmatprep.mubr.bf16.mxu0 0
        %1452 = vmatmul.mubr.bf16.gmra.mrb[0].mxu0 %v1253
        %v1453 = vpop.f32.mrb[0].mxu0
        %v1454 = vadd.f32 0.0, %v1453
        %v1455 = vpop.f32.mrb[0].mxu0
        %v1456 = vpop.f32.mrb[0].mxu0
        %v1457 = vpop.f32.mrb[0].mxu0
        %1458 = vdwg.mxu0
        %vm1459 = vcmask 1047556
        %v1460 = vrot.slane %v1294, 4
        %v1461 = vsel %vm1459, %v1460, %v1454
        %vm1503 = vcmask 1046528
        %v1504 = vrot.slane %v1294, 1
        %v1505 = vrot.slane %v1297, 1
        %v1506 = vsel %vm1503, %v1504, %v1505
        %v1507 = vrot.slane %v1302, 1
        %v1508 = vsel %vm1503, %v1505, %v1507
        %v1509 = vrot.slane %v1305, 1
        %v1510 = vsel %vm1503, %v1507, %v1509
        %v1511 = vrot.slane %v1310, 1
        %v1512 = vsel %vm1503, %v1509, %v1511
        %v1513 = vrot.slane %v1313, 1
        %v1514 = vsel %vm1503, %v1511, %v1513
        %v1515 = vrot.slane %v1318, 1
        %v1516 = vsel %vm1503, %v1513, %v1515
        %v1517 = vrot.slane %v1321, 1
        %v1518 = vsel %vm1503, %v1515, %v1517
        %v1519 = vrot.slane %v1326, 1
        %v1520 = vsel %vm1503, %v1517, %v1519
        %v1521 = vrot.slane %v1329, 1
        %v1522 = vsel %vm1503, %v1519, %v1521
        %v1523 = vrot.slane %v1334, 1
        %v1524 = vsel %vm1503, %v1521, %v1523
        %v1525 = vrot.slane %v1337, 1
        %v1526 = vsel %vm1503, %v1523, %v1525
        %v1527 = vrot.slane %v1342, 1
        %v1528 = vsel %vm1503, %v1525, %v1527
        %v1529 = vrot.slane %v1345, 1
        %v1530 = vsel %vm1503, %v1527, %v1529
        %v1531 = vrot.slane %v1350, 1
        %v1532 = vsel %vm1503, %v1529, %v1531
        %v1533 = vrot.slane %v1353, 1
        %v1534 = vsel %vm1503, %v1531, %v1533
        %v1535 = vrot.slane %v1358, 1
        %v1536 = vsel %vm1503, %v1533, %v1535
        %v1537 = vrot.slane %v1361, 1
        %v1538 = vsel %vm1503, %v1535, %v1537
        %v1539 = vrot.slane %v1366, 1
        %v1540 = vsel %vm1503, %v1537, %v1539
        %v1541 = vrot.slane %v1369, 1
        %v1542 = vsel %vm1503, %v1539, %v1541
        %v1543 = vrot.slane %v1374, 1
        %v1544 = vsel %vm1503, %v1541, %v1543
        %v1545 = vrot.slane %v1377, 1
        %v1546 = vsel %vm1503, %v1543, %v1545
        %v1547 = vrot.slane %v1382, 1
        %v1548 = vsel %vm1503, %v1545, %v1547
        %v1549 = vrot.slane %v1385, 1
        %v1550 = vsel %vm1503, %v1547, %v1549
        %v1551 = vrot.slane %v1390, 1
        %v1552 = vsel %vm1503, %v1549, %v1551
        %v1553 = vrot.slane %v1393, 1
        %v1554 = vsel %vm1503, %v1551, %v1553
        %v1555 = vrot.slane %v1398, 1
        %v1556 = vsel %vm1503, %v1553, %v1555
        %v1557 = vrot.slane %v1401, 1
        %v1558 = vsel %vm1503, %v1555, %v1557
        %v1559 = vrot.slane %v1406, 1
        %v1560 = vsel %vm1503, %v1557, %v1559
        %v1561 = vrot.slane %v1409, 1
        %v1562 = vsel %vm1503, %v1559, %v1561
        %v1563 = vrot.slane %v1414, 1
        %v1564 = vsel %vm1503, %v1561, %v1563
        %v1565 = vrot.slane %v1417, 1
        %v1566 = vsel %vm1503, %v1563, %v1565
        %v1567 = vrot.slane %v1422, 1
        %v1568 = vsel %vm1503, %v1565, %v1567
        %v1569 = vrot.slane %v1425, 1
        %v1570 = vsel %vm1503, %v1567, %v1569
        %v1571 = vrot.slane %v1430, 1
        %v1572 = vsel %vm1503, %v1569, %v1571
        %v1573 = vrot.slane %v1433, 1
        %v1574 = vsel %vm1503, %v1571, %v1573
        %v1575 = vrot.slane %v1438, 1
        %v1576 = vsel %vm1503, %v1573, %v1575
        %v1577 = vrot.slane %v1441, 1
        %v1578 = vsel %vm1503, %v1575, %v1577
        %v1579 = vrot.slane %v1446, 1
        %v1580 = vsel %vm1503, %v1577, %v1579
        %v1581 = vrot.slane %v1449, 1
        %v1582 = vsel %vm1503, %v1579, %v1581
        %v1583 = vrot.slane %v1461, 1
        %v1584 = vsel %vm1503, %v1581, %v1583
        %v1627 = vsel %vm1255, %v1085, 0
        %1629 = vmatprep.subr.bf16.mxu0 0
        %1630 = vmatpush1.bf16.msra.mxu0 %v1627
        %1631 = vmatprep.subr.bf16.mxu0 0
        %1632 = vmatpush1.bf16.msra.mxu0 0
        %1633 = vmatprep.subr.bf16.mxu0 0
        %1634 = vmatpush1.bf16.msra.mxu0 0
        %1635 = vmatprep.subr.bf16.mxu0 0
        %1636 = vmatpush1.bf16.msra.mxu0 0
        %1637 = vmatprep.subr.bf16.mxu0 0
        %1638 = vmatpush1.bf16.msra.mxu0 0
        %1639 = vmatprep.subr.bf16.mxu0 0
        %1640 = vmatpush1.bf16.msra.mxu0 0
        %1641 = vmatprep.subr.bf16.mxu0 0
        %1642 = vmatpush1.bf16.msra.mxu0 0
        %1643 = vmatprep.subr.bf16.mxu0 0
        %1644 = vmatpush1.bf16.msra.mxu0 0
        %1645 = vmatprep.subr.bf16.mxu0 0
        %1646 = vmatpush1.bf16.msra.mxu0 0
        %1647 = vmatprep.subr.bf16.mxu0 0
        %1648 = vmatpush1.bf16.msra.mxu0 0
        %1649 = vmatprep.subr.bf16.mxu0 0
        %1650 = vmatpush1.bf16.msra.mxu0 0
        %1651 = vmatprep.subr.bf16.mxu0 0
        %1652 = vmatpush1.bf16.msra.mxu0 0
        %1653 = vmatprep.subr.bf16.mxu0 0
        %1654 = vmatpush1.bf16.msra.mxu0 0
        %1655 = vmatprep.subr.bf16.mxu0 0
        %1656 = vmatpush1.bf16.msra.mxu0 0
        %1657 = vmatprep.subr.bf16.mxu0 0
        %1658 = vmatpush1.bf16.msra.mxu0 0
        %1659 = vmatprep.subr.bf16.mxu0 0
        %1660 = vmatpush1.bf16.msra.mxu0 0
        %1661 = vmatprep.mubr.bf16.mxu0 0
        %1662 = vmatmul.mubr.bf16.gmra.mrb[0].mxu0 %v1193
        %v1663 = vpop.f32.mrb[0].mxu0
        %v1664 = vadd.f32 %v1506, %v1663
        %v1665 = vpop.f32.mrb[0].mxu0
        %v1666 = vpop.f32.mrb[0].mxu0
        %v1667 = vadd.f32 %v1508, %v1666
        %v1668 = vpop.f32.mrb[0].mxu0
        %1669 = vmatprep.mubr.bf16.mxu0 0
        %1670 = vmatmul.mubr.bf16.gmra.mrb[0].mxu0 %v1196
        %v1671 = vpop.f32.mrb[0].mxu0
        %v1672 = vadd.f32 %v1510, %v1671
        %v1673 = vpop.f32.mrb[0].mxu0
        %v1674 = vpop.f32.mrb[0].mxu0
        %v1675 = vadd.f32 %v1512, %v1674
        %v1676 = vpop.f32.mrb[0].mxu0
        %1677 = vmatprep.mubr.bf16.mxu0 0
        %1678 = vmatmul.mubr.bf16.gmra.mrb[0].mxu0 %v1199
        %v1679 = vpop.f32.mrb[0].mxu0
        %v1680 = vadd.f32 %v1514, %v1679
        %v1681 = vpop.f32.mrb[0].mxu0
        %v1682 = vpop.f32.mrb[0].mxu0
        %v1683 = vadd.f32 %v1516, %v1682
        %v1684 = vpop.f32.mrb[0].mxu0
        %1685 = vmatprep.mubr.bf16.mxu0 0
        %1686 = vmatmul.mubr.bf16.gmra.mrb[0].mxu0 %v1202
        %v1687 = vpop.f32.mrb[0].mxu0
        %v1688 = vadd.f32 %v1518, %v1687
        %v1689 = vpop.f32.mrb[0].mxu0
        %v1690 = vpop.f32.mrb[0].mxu0
        %v1691 = vadd.f32 %v1520, %v1690
        %v1692 = vpop.f32.mrb[0].mxu0
        %1693 = vmatprep.mubr.bf16.mxu0 0
        %1694 = vmatmul.mubr.bf16.gmra.mrb[0].mxu0 %v1205
        %v1695 = vpop.f32.mrb[0].mxu0
        %v1696 = vadd.f32 %v1522, %v1695
        %v1697 = vpop.f32.mrb[0].mxu0
        %v1698 = vpop.f32.mrb[0].mxu0
        %v1699 = vadd.f32 %v1524, %v1698
        %v1700 = vpop.f32.mrb[0].mxu0
        %1701 = vmatprep.mubr.bf16.mxu0 0
        %1702 = vmatmul.mubr.bf16.gmra.mrb[0].mxu0 %v1208
        %v1703 = vpop.f32.mrb[0].mxu0
        %v1704 = vadd.f32 %v1526, %v1703
        %v1705 = vpop.f32.mrb[0].mxu0
        %v1706 = vpop.f32.mrb[0].mxu0
        %v1707 = vadd.f32 %v1528, %v1706
        %v1708 = vpop.f32.mrb[0].mxu0
        %1709 = vmatprep.mubr.bf16.mxu0 0
        %1710 = vmatmul.mubr.bf16.gmra.mrb[0].mxu0 %v1211
        %v1711 = vpop.f32.mrb[0].mxu0
        %v1712 = vadd.f32 %v1530, %v1711
        %v1713 = vpop.f32.mrb[0].mxu0
        %v1714 = vpop.f32.mrb[0].mxu0
        %v1715 = vadd.f32 %v1532, %v1714
        %v1716 = vpop.f32.mrb[0].mxu0
        %1717 = vmatprep.mubr.bf16.mxu0 0
        %1718 = vmatmul.mubr.bf16.gmra.mrb[0].mxu0 %v1214
        %v1719 = vpop.f32.mrb[0].mxu0
        %v1720 = vadd.f32 %v1534, %v1719
        %v1721 = vpop.f32.mrb[0].mxu0
        %v1722 = vpop.f32.mrb[0].mxu0
        %v1723 = vadd.f32 %v1536, %v1722
        %v1724 = vpop.f32.mrb[0].mxu0
        %1725 = vmatprep.mubr.bf16.mxu0 0
        %1726 = vmatmul.mubr.bf16.gmra.mrb[0].mxu0 %v1217
        %v1727 = vpop.f32.mrb[0].mxu0
        %v1728 = vadd.f32 %v1538, %v1727
        %v1729 = vpop.f32.mrb[0].mxu0
        %v1730 = vpop.f32.mrb[0].mxu0
        %v1731 = vadd.f32 %v1540, %v1730
        %v1732 = vpop.f32.mrb[0].mxu0
        %1733 = vmatprep.mubr.bf16.mxu0 0
        %1734 = vmatmul.mubr.bf16.gmra.mrb[0].mxu0 %v1220
        %v1735 = vpop.f32.mrb[0].mxu0
        %v1736 = vadd.f32 %v1542, %v1735
        %v1737 = vpop.f32.mrb[0].mxu0
        %v1738 = vpop.f32.mrb[0].mxu0
        %v1739 = vadd.f32 %v1544, %v1738
        %v1740 = vpop.f32.mrb[0].mxu0
        %1741 = vmatprep.mubr.bf16.mxu0 0
        %1742 = vmatmul.mubr.bf16.gmra.mrb[0].mxu0 %v1223
        %v1743 = vpop.f32.mrb[0].mxu0
        %v1744 = vadd.f32 %v1546, %v1743
        %v1745 = vpop.f32.mrb[0].mxu0
        %v1746 = vpop.f32.mrb[0].mxu0
        %v1747 = vadd.f32 %v1548, %v1746
        %v1748 = vpop.f32.mrb[0].mxu0
        %1749 = vmatprep.mubr.bf16.mxu0 0
        %1750 = vmatmul.mubr.bf16.gmra.mrb[0].mxu0 %v1226
        %v1751 = vpop.f32.mrb[0].mxu0
        %v1752 = vadd.f32 %v1550, %v1751
        %v1753 = vpop.f32.mrb[0].mxu0
        %v1754 = vpop.f32.mrb[0].mxu0
        %v1755 = vadd.f32 %v1552, %v1754
        %v1756 = vpop.f32.mrb[0].mxu0
        %1757 = vmatprep.mubr.bf16.mxu0 0
        %1758 = vmatmul.mubr.bf16.gmra.mrb[0].mxu0 %v1229
        %v1759 = vpop.f32.mrb[0].mxu0
        %v1760 = vadd.f32 %v1554, %v1759
        %v1761 = vpop.f32.mrb[0].mxu0
        %v1762 = vpop.f32.mrb[0].mxu0
        %v1763 = vadd.f32 %v1556, %v1762
        %v1764 = vpop.f32.mrb[0].mxu0
        %1765 = vmatprep.mubr.bf16.mxu0 0
        %1766 = vmatmul.mubr.bf16.gmra.mrb[0].mxu0 %v1232
        %v1767 = vpop.f32.mrb[0].mxu0
        %v1768 = vadd.f32 %v1558, %v1767
        %v1769 = vpop.f32.mrb[0].mxu0
        %v1770 = vpop.f32.mrb[0].mxu0
        %v1771 = vadd.f32 %v1560, %v1770
        %v1772 = vpop.f32.mrb[0].mxu0
        %1773 = vmatprep.mubr.bf16.mxu0 0
        %1774 = vmatmul.mubr.bf16.gmra.mrb[0].mxu0 %v1235
        %v1775 = vpop.f32.mrb[0].mxu0
        %v1776 = vadd.f32 %v1562, %v1775
        %v1777 = vpop.f32.mrb[0].mxu0
        %v1778 = vpop.f32.mrb[0].mxu0
        %v1779 = vadd.f32 %v1564, %v1778
        %v1780 = vpop.f32.mrb[0].mxu0
        %1781 = vmatprep.mubr.bf16.mxu0 0
        %1782 = vmatmul.mubr.bf16.gmra.mrb[0].mxu0 %v1238
        %v1783 = vpop.f32.mrb[0].mxu0
        %v1784 = vadd.f32 %v1566, %v1783
        %v1785 = vpop.f32.mrb[0].mxu0
        %v1786 = vpop.f32.mrb[0].mxu0
        %v1787 = vadd.f32 %v1568, %v1786
        %v1788 = vpop.f32.mrb[0].mxu0
        %1789 = vmatprep.mubr.bf16.mxu0 0
        %1790 = vmatmul.mubr.bf16.gmra.mrb[0].mxu0 %v1241
        %v1791 = vpop.f32.mrb[0].mxu0
        %v1792 = vadd.f32 %v1570, %v1791
        %v1793 = vpop.f32.mrb[0].mxu0
        %v1794 = vpop.f32.mrb[0].mxu0
        %v1795 = vadd.f32 %v1572, %v1794
        %v1796 = vpop.f32.mrb[0].mxu0
        %1797 = vmatprep.mubr.bf16.mxu0 0
        %1798 = vmatmul.mubr.bf16.gmra.mrb[0].mxu0 %v1244
        %v1799 = vpop.f32.mrb[0].mxu0
        %v1800 = vadd.f32 %v1574, %v1799
        %v1801 = vpop.f32.mrb[0].mxu0
        %v1802 = vpop.f32.mrb[0].mxu0
        %v1803 = vadd.f32 %v1576, %v1802
        %v1804 = vpop.f32.mrb[0].mxu0
        %1805 = vmatprep.mubr.bf16.mxu0 0
        %1806 = vmatmul.mubr.bf16.gmra.mrb[0].mxu0 %v1247
        %v1807 = vpop.f32.mrb[0].mxu0
        %v1808 = vadd.f32 %v1578, %v1807
        %v1809 = vpop.f32.mrb[0].mxu0
        %v1810 = vpop.f32.mrb[0].mxu0
        %v1811 = vadd.f32 %v1580, %v1810
        %v1812 = vpop.f32.mrb[0].mxu0
        %1813 = vmatprep.mubr.bf16.mxu0 0
        %1814 = vmatmul.mubr.bf16.gmra.mrb[0].mxu0 %v1250
        %v1815 = vpop.f32.mrb[0].mxu0
        %v1816 = vadd.f32 %v1582, %v1815
        %v1817 = vpop.f32.mrb[0].mxu0
        %v1818 = vpop.f32.mrb[0].mxu0
        %v1819 = vadd.f32 %v1584, %v1818
        %v1820 = vpop.f32.mrb[0].mxu0
        %1821 = vmatprep.mubr.bf16.mxu0 0
        %1822 = vmatmul.mubr.bf16.gmra.mrb[0].mxu0 %v1253
        %v1823 = vpop.f32.mrb[0].mxu0
        %v1824 = vadd.f32 %v1583, %v1823
        %v1825 = vpop.f32.mrb[0].mxu0
        %v1826 = vpop.f32.mrb[0].mxu0
        %v1827 = vpop.f32.mrb[0].mxu0
        %1828 = vdwg.mxu0
        %s1829 = scalar_lea.vmem %s1, 4
        %v1830 = vld [vmem:[%s1829] sm:$0x3]
        %v1832 = vsel %vm1255, %v1830, 0
        %1834 = vmatprep.subr.bf16.mxu0 0
        %1835 = vmatpush1.bf16.msra.mxu0 %v1832
        %1836 = vmatprep.subr.bf16.mxu0 0
        %1837 = vmatpush1.bf16.msra.mxu0 0
        %1838 = vmatprep.subr.bf16.mxu0 0
        %1839 = vmatpush1.bf16.msra.mxu0 0
        %1840 = vmatprep.subr.bf16.mxu0 0
        %1841 = vmatpush1.bf16.msra.mxu0 0
        %1842 = vmatprep.subr.bf16.mxu0 0
        %1843 = vmatpush1.bf16.msra.mxu0 0
        %1844 = vmatprep.subr.bf16.mxu0 0
        %1845 = vmatpush1.bf16.msra.mxu0 0
        %1846 = vmatprep.subr.bf16.mxu0 0
        %1847 = vmatpush1.bf16.msra.mxu0 0
        %1848 = vmatprep.subr.bf16.mxu0 0
        %1849 = vmatpush1.bf16.msra.mxu0 0
        %1850 = vmatprep.subr.bf16.mxu0 0
        %1851 = vmatpush1.bf16.msra.mxu0 0
        %1852 = vmatprep.subr.bf16.mxu0 0
        %1853 = vmatpush1.bf16.msra.mxu0 0
        %1854 = vmatprep.subr.bf16.mxu0 0
        %1855 = vmatpush1.bf16.msra.mxu0 0
        %1856 = vmatprep.subr.bf16.mxu0 0
        %1857 = vmatpush1.bf16.msra.mxu0 0
        %1858 = vmatprep.subr.bf16.mxu0 0
        %1859 = vmatpush1.bf16.msra.mxu0 0
        %1860 = vmatprep.subr.bf16.mxu0 0
        %1861 = vmatpush1.bf16.msra.mxu0 0
        %1862 = vmatprep.subr.bf16.mxu0 0
        %1863 = vmatpush1.bf16.msra.mxu0 0
        %1864 = vmatprep.subr.bf16.mxu0 0
        %1865 = vmatpush1.bf16.msra.mxu0 0
        %1866 = vmatprep.mubr.bf16.mxu0 0
        %1867 = vmatmul.mubr.bf16.gmra.mrb[0].mxu0 %v1193
        %v1868 = vpop.f32.mrb[0].mxu0
        %v1869 = vadd.f32 0.0, %v1868
        %v1870 = vpop.f32.mrb[0].mxu0
        %v1871 = vpop.f32.mrb[0].mxu0
        %v1872 = vadd.f32 0.0, %v1871
        %v1873 = vpop.f32.mrb[0].mxu0
        %1874 = vmatprep.mubr.bf16.mxu0 0
        %1875 = vmatmul.mubr.bf16.gmra.mrb[0].mxu0 %v1196
        %v1876 = vpop.f32.mrb[0].mxu0
        %v1877 = vadd.f32 0.0, %v1876
        %v1878 = vpop.f32.mrb[0].mxu0
        %v1879 = vpop.f32.mrb[0].mxu0
        %v1880 = vadd.f32 0.0, %v1879
        %v1881 = vpop.f32.mrb[0].mxu0
        %1882 = vmatprep.mubr.bf16.mxu0 0
        %1883 = vmatmul.mubr.bf16.gmra.mrb[0].mxu0 %v1199
        %v1884 = vpop.f32.mrb[0].mxu0
        %v1885 = vadd.f32 0.0, %v1884
        %v1886 = vpop.f32.mrb[0].mxu0
        %v1887 = vpop.f32.mrb[0].mxu0
        %v1888 = vadd.f32 0.0, %v1887
        %v1889 = vpop.f32.mrb[0].mxu0
        %1890 = vmatprep.mubr.bf16.mxu0 0
        %1891 = vmatmul.mubr.bf16.gmra.mrb[0].mxu0 %v1202
        %v1892 = vpop.f32.mrb[0].mxu0
        %v1893 = vadd.f32 0.0, %v1892
        %v1894 = vpop.f32.mrb[0].mxu0
        %v1895 = vpop.f32.mrb[0].mxu0
        %v1896 = vadd.f32 0.0, %v1895
        %v1897 = vpop.f32.mrb[0].mxu0
        %1898 = vmatprep.mubr.bf16.mxu0 0
        %1899 = vmatmul.mubr.bf16.gmra.mrb[0].mxu0 %v1205
        %v1900 = vpop.f32.mrb[0].mxu0
        %v1901 = vadd.f32 0.0, %v1900
        %v1902 = vpop.f32.mrb[0].mxu0
        %v1903 = vpop.f32.mrb[0].mxu0
        %v1904 = vadd.f32 0.0, %v1903
        %v1905 = vpop.f32.mrb[0].mxu0
        %1906 = vmatprep.mubr.bf16.mxu0 0
        %1907 = vmatmul.mubr.bf16.gmra.mrb[0].mxu0 %v1208
        %v1908 = vpop.f32.mrb[0].mxu0
        %v1909 = vadd.f32 0.0, %v1908
        %v1910 = vpop.f32.mrb[0].mxu0
        %v1911 = vpop.f32.mrb[0].mxu0
        %v1912 = vadd.f32 0.0, %v1911
        %v1913 = vpop.f32.mrb[0].mxu0
        %1914 = vmatprep.mubr.bf16.mxu0 0
        %1915 = vmatmul.mubr.bf16.gmra.mrb[0].mxu0 %v1211
        %v1916 = vpop.f32.mrb[0].mxu0
        %v1917 = vadd.f32 0.0, %v1916
        %v1918 = vpop.f32.mrb[0].mxu0
        %v1919 = vpop.f32.mrb[0].mxu0
        %v1920 = vadd.f32 0.0, %v1919
        %v1921 = vpop.f32.mrb[0].mxu0
        %1922 = vmatprep.mubr.bf16.mxu0 0
        %1923 = vmatmul.mubr.bf16.gmra.mrb[0].mxu0 %v1214
        %v1924 = vpop.f32.mrb[0].mxu0
        %v1925 = vadd.f32 0.0, %v1924
        %v1926 = vpop.f32.mrb[0].mxu0
        %v1927 = vpop.f32.mrb[0].mxu0
        %v1928 = vadd.f32 0.0, %v1927
        %v1929 = vpop.f32.mrb[0].mxu0
        %1930 = vmatprep.mubr.bf16.mxu0 0
        %1931 = vmatmul.mubr.bf16.gmra.mrb[0].mxu0 %v1217
        %v1932 = vpop.f32.mrb[0].mxu0
        %v1933 = vadd.f32 0.0, %v1932
        %v1934 = vpop.f32.mrb[0].mxu0
        %v1935 = vpop.f32.mrb[0].mxu0
        %v1936 = vadd.f32 0.0, %v1935
        %v1937 = vpop.f32.mrb[0].mxu0
        %1938 = vmatprep.mubr.bf16.mxu0 0
        %1939 = vmatmul.mubr.bf16.gmra.mrb[0].mxu0 %v1220
        %v1940 = vpop.f32.mrb[0].mxu0
        %v1941 = vadd.f32 0.0, %v1940
        %v1942 = vpop.f32.mrb[0].mxu0
        %v1943 = vpop.f32.mrb[0].mxu0
        %v1944 = vadd.f32 0.0, %v1943
        %v1945 = vpop.f32.mrb[0].mxu0
        %1946 = vmatprep.mubr.bf16.mxu0 0
        %1947 = vmatmul.mubr.bf16.gmra.mrb[0].mxu0 %v1223
        %v1948 = vpop.f32.mrb[0].mxu0
        %v1949 = vadd.f32 0.0, %v1948
        %v1950 = vpop.f32.mrb[0].mxu0
        %v1951 = vpop.f32.mrb[0].mxu0
        %v1952 = vadd.f32 0.0, %v1951
        %v1953 = vpop.f32.mrb[0].mxu0
        %1954 = vmatprep.mubr.bf16.mxu0 0
        %1955 = vmatmul.mubr.bf16.gmra.mrb[0].mxu0 %v1226
        %v1956 = vpop.f32.mrb[0].mxu0
        %v1957 = vadd.f32 0.0, %v1956
        %v1958 = vpop.f32.mrb[0].mxu0
        %v1959 = vpop.f32.mrb[0].mxu0
        %v1960 = vadd.f32 0.0, %v1959
        %v1961 = vpop.f32.mrb[0].mxu0
        %1962 = vmatprep.mubr.bf16.mxu0 0
        %1963 = vmatmul.mubr.bf16.gmra.mrb[0].mxu0 %v1229
        %v1964 = vpop.f32.mrb[0].mxu0
        %v1965 = vadd.f32 0.0, %v1964
        %v1966 = vpop.f32.mrb[0].mxu0
        %v1967 = vpop.f32.mrb[0].mxu0
        %v1968 = vadd.f32 0.0, %v1967
        %v1969 = vpop.f32.mrb[0].mxu0
        %1970 = vmatprep.mubr.bf16.mxu0 0
        %1971 = vmatmul.mubr.bf16.gmra.mrb[0].mxu0 %v1232
        %v1972 = vpop.f32.mrb[0].mxu0
        %v1973 = vadd.f32 0.0, %v1972
        %v1974 = vpop.f32.mrb[0].mxu0
        %v1975 = vpop.f32.mrb[0].mxu0
        %v1976 = vadd.f32 0.0, %v1975
        %v1977 = vpop.f32.mrb[0].mxu0
        %1978 = vmatprep.mubr.bf16.mxu0 0
        %1979 = vmatmul.mubr.bf16.gmra.mrb[0].mxu0 %v1235
        %v1980 = vpop.f32.mrb[0].mxu0
        %v1981 = vadd.f32 0.0, %v1980
        %v1982 = vpop.f32.mrb[0].mxu0
        %v1983 = vpop.f32.mrb[0].mxu0
        %v1984 = vadd.f32 0.0, %v1983
        %v1985 = vpop.f32.mrb[0].mxu0
        %1986 = vmatprep.mubr.bf16.mxu0 0
        %1987 = vmatmul.mubr.bf16.gmra.mrb[0].mxu0 %v1238
        %v1988 = vpop.f32.mrb[0].mxu0
        %v1989 = vadd.f32 0.0, %v1988
        %v1990 = vpop.f32.mrb[0].mxu0
        %v1991 = vpop.f32.mrb[0].mxu0
        %v1992 = vadd.f32 0.0, %v1991
        %v1993 = vpop.f32.mrb[0].mxu0
        %1994 = vmatprep.mubr.bf16.mxu0 0
        %1995 = vmatmul.mubr.bf16.gmra.mrb[0].mxu0 %v1241
        %v1996 = vpop.f32.mrb[0].mxu0
        %v1997 = vadd.f32 0.0, %v1996
        %v1998 = vpop.f32.mrb[0].mxu0
        %v1999 = vpop.f32.mrb[0].mxu0
        %v2000 = vadd.f32 0.0, %v1999
        %v2001 = vpop.f32.mrb[0].mxu0
        %2002 = vmatprep.mubr.bf16.mxu0 0
        %2003 = vmatmul.mubr.bf16.gmra.mrb[0].mxu0 %v1244
        %v2004 = vpop.f32.mrb[0].mxu0
        %v2005 = vadd.f32 0.0, %v2004
        %v2006 = vpop.f32.mrb[0].mxu0
        %v2007 = vpop.f32.mrb[0].mxu0
        %v2008 = vadd.f32 0.0, %v2007
        %v2009 = vpop.f32.mrb[0].mxu0
        %2010 = vmatprep.mubr.bf16.mxu0 0
        %2011 = vmatmul.mubr.bf16.gmra.mrb[0].mxu0 %v1247
        %v2012 = vpop.f32.mrb[0].mxu0
        %v2013 = vadd.f32 0.0, %v2012
        %v2014 = vpop.f32.mrb[0].mxu0
        %v2015 = vpop.f32.mrb[0].mxu0
        %v2016 = vadd.f32 0.0, %v2015
        %v2017 = vpop.f32.mrb[0].mxu0
        %2018 = vmatprep.mubr.bf16.mxu0 0
        %2019 = vmatmul.mubr.bf16.gmra.mrb[0].mxu0 %v1250
        %v2020 = vpop.f32.mrb[0].mxu0
        %v2021 = vadd.f32 0.0, %v2020
        %v2022 = vpop.f32.mrb[0].mxu0
        %v2023 = vpop.f32.mrb[0].mxu0
        %v2024 = vadd.f32 0.0, %v2023
        %v2025 = vpop.f32.mrb[0].mxu0
        %2026 = vmatprep.mubr.bf16.mxu0 0
        %2027 = vmatmul.mubr.bf16.gmra.mrb[0].mxu0 %v1253
        %v2028 = vpop.f32.mrb[0].mxu0
        %v2029 = vadd.f32 0.0, %v2028
        %v2030 = vpop.f32.mrb[0].mxu0
        %v2031 = vpop.f32.mrb[0].mxu0
        %v2032 = vpop.f32.mrb[0].mxu0
        %2033 = vdwg.mxu0
        %v2034 = vrot.slane %v1869, 4
        %v2035 = vsel %vm1459, %v2034, %v2029
        %vm2077 = vcmask 1045504
        %v2078 = vrot.slane %v1869, 2
        %v2079 = vrot.slane %v1872, 2
        %v2080 = vsel %vm2077, %v2078, %v2079
        %v2081 = vrot.slane %v1877, 2
        %v2082 = vsel %vm2077, %v2079, %v2081
        %v2083 = vrot.slane %v1880, 2
        %v2084 = vsel %vm2077, %v2081, %v2083
        %v2085 = vrot.slane %v1885, 2
        %v2086 = vsel %vm2077, %v2083, %v2085
        %v2087 = vrot.slane %v1888, 2
        %v2088 = vsel %vm2077, %v2085, %v2087
        %v2089 = vrot.slane %v1893, 2
        %v2090 = vsel %vm2077, %v2087, %v2089
        %v2091 = vrot.slane %v1896, 2
        %v2092 = vsel %vm2077, %v2089, %v2091
        %v2093 = vrot.slane %v1901, 2
        %v2094 = vsel %vm2077, %v2091, %v2093
        %v2095 = vrot.slane %v1904, 2
        %v2096 = vsel %vm2077, %v2093, %v2095
        %v2097 = vrot.slane %v1909, 2
        %v2098 = vsel %vm2077, %v2095, %v2097
        %v2099 = vrot.slane %v1912, 2
        %v2100 = vsel %vm2077, %v2097, %v2099
        %v2101 = vrot.slane %v1917, 2
        %v2102 = vsel %vm2077, %v2099, %v2101
        %v2103 = vrot.slane %v1920, 2
        %v2104 = vsel %vm2077, %v2101, %v2103
        %v2105 = vrot.slane %v1925, 2
        %v2106 = vsel %vm2077, %v2103, %v2105
        %v2107 = vrot.slane %v1928, 2
        %v2108 = vsel %vm2077, %v2105, %v2107
        %v2109 = vrot.slane %v1933, 2
        %v2110 = vsel %vm2077, %v2107, %v2109
        %v2111 = vrot.slane %v1936, 2
        %v2112 = vsel %vm2077, %v2109, %v2111
        %v2113 = vrot.slane %v1941, 2
        %v2114 = vsel %vm2077, %v2111, %v2113
        %v2115 = vrot.slane %v1944, 2
        %v2116 = vsel %vm2077, %v2113, %v2115
        %v2117 = vrot.slane %v1949, 2
        %v2118 = vsel %vm2077, %v2115, %v2117
        %v2119 = vrot.slane %v1952, 2
        %v2120 = vsel %vm2077, %v2117, %v2119
        %v2121 = vrot.slane %v1957, 2
        %v2122 = vsel %vm2077, %v2119, %v2121
        %v2123 = vrot.slane %v1960, 2
        %v2124 = vsel %vm2077, %v2121, %v2123
        %v2125 = vrot.slane %v1965, 2
        %v2126 = vsel %vm2077, %v2123, %v2125
        %v2127 = vrot.slane %v1968, 2
        %v2128 = vsel %vm2077, %v2125, %v2127
        %v2129 = vrot.slane %v1973, 2
        %v2130 = vsel %vm2077, %v2127, %v2129
        %v2131 = vrot.slane %v1976, 2
        %v2132 = vsel %vm2077, %v2129, %v2131
        %v2133 = vrot.slane %v1981, 2
        %v2134 = vsel %vm2077, %v2131, %v2133
        %v2135 = vrot.slane %v1984, 2
        %v2136 = vsel %vm2077, %v2133, %v2135
        %v2137 = vrot.slane %v1989, 2
        %v2138 = vsel %vm2077, %v2135, %v2137
        %v2139 = vrot.slane %v1992, 2
        %v2140 = vsel %vm2077, %v2137, %v2139
        %v2141 = vrot.slane %v1997, 2
        %v2142 = vsel %vm2077, %v2139, %v2141
        %v2143 = vrot.slane %v2000, 2
        %v2144 = vsel %vm2077, %v2141, %v2143
        %v2145 = vrot.slane %v2005, 2
        %v2146 = vsel %vm2077, %v2143, %v2145
        %v2147 = vrot.slane %v2008, 2
        %v2148 = vsel %vm2077, %v2145, %v2147
        %v2149 = vrot.slane %v2013, 2
        %v2150 = vsel %vm2077, %v2147, %v2149
        %v2151 = vrot.slane %v2016, 2
        %v2152 = vsel %vm2077, %v2149, %v2151
        %v2153 = vrot.slane %v2021, 2
        %v2154 = vsel %vm2077, %v2151, %v2153
        %v2155 = vrot.slane %v2024, 2
        %v2156 = vsel %vm2077, %v2153, %v2155
        %v2157 = vrot.slane %v2035, 2
        %v2158 = vsel %vm2077, %v2155, %v2157
        %v2200 = vadd.f32 %v1664, %v2080
        %v2201 = vadd.f32 %v1667, %v2082
        %v2202 = vadd.f32 %v1672, %v2084
        %v2203 = vadd.f32 %v1675, %v2086
        %v2204 = vadd.f32 %v1680, %v2088
        %v2205 = vadd.f32 %v1683, %v2090
        %v2206 = vadd.f32 %v1688, %v2092
        %v2207 = vadd.f32 %v1691, %v2094
        %v2208 = vadd.f32 %v1696, %v2096
        %v2209 = vadd.f32 %v1699, %v2098
        %v2210 = vadd.f32 %v1704, %v2100
        %v2211 = vadd.f32 %v1707, %v2102
        %v2212 = vadd.f32 %v1712, %v2104
        %v2213 = vadd.f32 %v1715, %v2106
        %v2214 = vadd.f32 %v1720, %v2108
        %v2215 = vadd.f32 %v1723, %v2110
        %v2216 = vadd.f32 %v1728, %v2112
        %v2217 = vadd.f32 %v1731, %v2114
        %v2218 = vadd.f32 %v1736, %v2116
        %v2219 = vadd.f32 %v1739, %v2118
        %v2220 = vadd.f32 %v1744, %v2120
        %v2221 = vadd.f32 %v1747, %v2122
        %v2222 = vadd.f32 %v1752, %v2124
        %v2223 = vadd.f32 %v1755, %v2126
        %v2224 = vadd.f32 %v1760, %v2128
        %v2225 = vadd.f32 %v1763, %v2130
        %v2226 = vadd.f32 %v1768, %v2132
        %v2227 = vadd.f32 %v1771, %v2134
        %v2228 = vadd.f32 %v1776, %v2136
        %v2229 = vadd.f32 %v1779, %v2138
        %v2230 = vadd.f32 %v1784, %v2140
        %v2231 = vadd.f32 %v1787, %v2142
        %v2232 = vadd.f32 %v1792, %v2144
        %v2233 = vadd.f32 %v1795, %v2146
        %v2234 = vadd.f32 %v1800, %v2148
        %v2235 = vadd.f32 %v1803, %v2150
        %v2236 = vadd.f32 %v1808, %v2152
        %v2237 = vadd.f32 %v1811, %v2154
        %v2238 = vadd.f32 %v1816, %v2156
        %v2239 = vadd.f32 %v1819, %v2158
        %v2240 = vadd.f32 %v1824, %v2157
        %s2241 = scalar_lea.vmem %s1, 6
        %v2242 = vld [vmem:[%s2241] sm:$0x3]
        %v2244 = vsel %vm1255, %v2242, 0
        %2246 = vmatprep.subr.bf16.mxu0 0
        %2247 = vmatpush1.bf16.msra.mxu0 %v2244
        %2248 = vmatprep.subr.bf16.mxu0 0
        %2249 = vmatpush1.bf16.msra.mxu0 0
        %2250 = vmatprep.subr.bf16.mxu0 0
        %2251 = vmatpush1.bf16.msra.mxu0 0
        %2252 = vmatprep.subr.bf16.mxu0 0
        %2253 = vmatpush1.bf16.msra.mxu0 0
        %2254 = vmatprep.subr.bf16.mxu0 0
        %2255 = vmatpush1.bf16.msra.mxu0 0
        %2256 = vmatprep.subr.bf16.mxu0 0
        %2257 = vmatpush1.bf16.msra.mxu0 0
        %2258 = vmatprep.subr.bf16.mxu0 0
        %2259 = vmatpush1.bf16.msra.mxu0 0
        %2260 = vmatprep.subr.bf16.mxu0 0
        %2261 = vmatpush1.bf16.msra.mxu0 0
        %2262 = vmatprep.subr.bf16.mxu0 0
        %2263 = vmatpush1.bf16.msra.mxu0 0
        %2264 = vmatprep.subr.bf16.mxu0 0
        %2265 = vmatpush1.bf16.msra.mxu0 0
        %2266 = vmatprep.subr.bf16.mxu0 0
        %2267 = vmatpush1.bf16.msra.mxu0 0
        %2268 = vmatprep.subr.bf16.mxu0 0
        %2269 = vmatpush1.bf16.msra.mxu0 0
        %2270 = vmatprep.subr.bf16.mxu0 0
        %2271 = vmatpush1.bf16.msra.mxu0 0
        %2272 = vmatprep.subr.bf16.mxu0 0
        %2273 = vmatpush1.bf16.msra.mxu0 0
        %2274 = vmatprep.subr.bf16.mxu0 0
        %2275 = vmatpush1.bf16.msra.mxu0 0
        %2276 = vmatprep.subr.bf16.mxu0 0
        %2277 = vmatpush1.bf16.msra.mxu0 0
        %2278 = vmatprep.mubr.bf16.mxu0 0
        %2279 = vmatmul.mubr.bf16.gmra.mrb[0].mxu0 %v1193
        %v2280 = vpop.f32.mrb[0].mxu0
        %v2281 = vadd.f32 0.0, %v2280
        %v2282 = vpop.f32.mrb[0].mxu0
        %v2283 = vpop.f32.mrb[0].mxu0
        %v2284 = vadd.f32 0.0, %v2283
        %v2285 = vpop.f32.mrb[0].mxu0
        %2286 = vmatprep.mubr.bf16.mxu0 0
        %2287 = vmatmul.mubr.bf16.gmra.mrb[0].mxu0 %v1196
        %v2288 = vpop.f32.mrb[0].mxu0
        %v2289 = vadd.f32 0.0, %v2288
        %v2290 = vpop.f32.mrb[0].mxu0
        %v2291 = vpop.f32.mrb[0].mxu0
        %v2292 = vadd.f32 0.0, %v2291
        %v2293 = vpop.f32.mrb[0].mxu0
        %2294 = vmatprep.mubr.bf16.mxu0 0
        %2295 = vmatmul.mubr.bf16.gmra.mrb[0].mxu0 %v1199
        %v2296 = vpop.f32.mrb[0].mxu0
        %v2297 = vadd.f32 0.0, %v2296
        %v2298 = vpop.f32.mrb[0].mxu0
        %v2299 = vpop.f32.mrb[0].mxu0
        %v2300 = vadd.f32 0.0, %v2299
        %v2301 = vpop.f32.mrb[0].mxu0
        %2302 = vmatprep.mubr.bf16.mxu0 0
        %2303 = vmatmul.mubr.bf16.gmra.mrb[0].mxu0 %v1202
        %v2304 = vpop.f32.mrb[0].mxu0
        %v2305 = vadd.f32 0.0, %v2304
        %v2306 = vpop.f32.mrb[0].mxu0
        %v2307 = vpop.f32.mrb[0].mxu0
        %v2308 = vadd.f32 0.0, %v2307
        %v2309 = vpop.f32.mrb[0].mxu0
        %2310 = vmatprep.mubr.bf16.mxu0 0
        %2311 = vmatmul.mubr.bf16.gmra.mrb[0].mxu0 %v1205
        %v2312 = vpop.f32.mrb[0].mxu0
        %v2313 = vadd.f32 0.0, %v2312
        %v2314 = vpop.f32.mrb[0].mxu0
        %v2315 = vpop.f32.mrb[0].mxu0
        %v2316 = vadd.f32 0.0, %v2315
        %v2317 = vpop.f32.mrb[0].mxu0
        %2318 = vmatprep.mubr.bf16.mxu0 0
        %2319 = vmatmul.mubr.bf16.gmra.mrb[0].mxu0 %v1208
        %v2320 = vpop.f32.mrb[0].mxu0
        %v2321 = vadd.f32 0.0, %v2320
        %v2322 = vpop.f32.mrb[0].mxu0
        %v2323 = vpop.f32.mrb[0].mxu0
        %v2324 = vadd.f32 0.0, %v2323
        %v2325 = vpop.f32.mrb[0].mxu0
        %2326 = vmatprep.mubr.bf16.mxu0 0
        %2327 = vmatmul.mubr.bf16.gmra.mrb[0].mxu0 %v1211
        %v2328 = vpop.f32.mrb[0].mxu0
        %v2329 = vadd.f32 0.0, %v2328
        %v2330 = vpop.f32.mrb[0].mxu0
        %v2331 = vpop.f32.mrb[0].mxu0
        %v2332 = vadd.f32 0.0, %v2331
        %v2333 = vpop.f32.mrb[0].mxu0
        %2334 = vmatprep.mubr.bf16.mxu0 0
        %2335 = vmatmul.mubr.bf16.gmra.mrb[0].mxu0 %v1214
        %v2336 = vpop.f32.mrb[0].mxu0
        %v2337 = vadd.f32 0.0, %v2336
        %v2338 = vpop.f32.mrb[0].mxu0
        %v2339 = vpop.f32.mrb[0].mxu0
        %v2340 = vadd.f32 0.0, %v2339
        %v2341 = vpop.f32.mrb[0].mxu0
        %2342 = vmatprep.mubr.bf16.mxu0 0
        %2343 = vmatmul.mubr.bf16.gmra.mrb[0].mxu0 %v1217
        %v2344 = vpop.f32.mrb[0].mxu0
        %v2345 = vadd.f32 0.0, %v2344
        %v2346 = vpop.f32.mrb[0].mxu0
        %v2347 = vpop.f32.mrb[0].mxu0
        %v2348 = vadd.f32 0.0, %v2347
        %v2349 = vpop.f32.mrb[0].mxu0
        %2350 = vmatprep.mubr.bf16.mxu0 0
        %2351 = vmatmul.mubr.bf16.gmra.mrb[0].mxu0 %v1220
        %v2352 = vpop.f32.mrb[0].mxu0
        %v2353 = vadd.f32 0.0, %v2352
        %v2354 = vpop.f32.mrb[0].mxu0
        %v2355 = vpop.f32.mrb[0].mxu0
        %v2356 = vadd.f32 0.0, %v2355
        %v2357 = vpop.f32.mrb[0].mxu0
        %2358 = vmatprep.mubr.bf16.mxu0 0
        %2359 = vmatmul.mubr.bf16.gmra.mrb[0].mxu0 %v1223
        %v2360 = vpop.f32.mrb[0].mxu0
        %v2361 = vadd.f32 0.0, %v2360
        %v2362 = vpop.f32.mrb[0].mxu0
        %v2363 = vpop.f32.mrb[0].mxu0
        %v2364 = vadd.f32 0.0, %v2363
        %v2365 = vpop.f32.mrb[0].mxu0
        %2366 = vmatprep.mubr.bf16.mxu0 0
        %2367 = vmatmul.mubr.bf16.gmra.mrb[0].mxu0 %v1226
        %v2368 = vpop.f32.mrb[0].mxu0
        %v2369 = vadd.f32 0.0, %v2368
        %v2370 = vpop.f32.mrb[0].mxu0
        %v2371 = vpop.f32.mrb[0].mxu0
        %v2372 = vadd.f32 0.0, %v2371
        %v2373 = vpop.f32.mrb[0].mxu0
        %2374 = vmatprep.mubr.bf16.mxu0 0
        %2375 = vmatmul.mubr.bf16.gmra.mrb[0].mxu0 %v1229
        %v2376 = vpop.f32.mrb[0].mxu0
        %v2377 = vadd.f32 0.0, %v2376
        %v2378 = vpop.f32.mrb[0].mxu0
        %v2379 = vpop.f32.mrb[0].mxu0
        %v2380 = vadd.f32 0.0, %v2379
        %v2381 = vpop.f32.mrb[0].mxu0
        %2382 = vmatprep.mubr.bf16.mxu0 0
        %2383 = vmatmul.mubr.bf16.gmra.mrb[0].mxu0 %v1232
        %v2384 = vpop.f32.mrb[0].mxu0
        %v2385 = vadd.f32 0.0, %v2384
        %v2386 = vpop.f32.mrb[0].mxu0
        %v2387 = vpop.f32.mrb[0].mxu0
        %v2388 = vadd.f32 0.0, %v2387
        %v2389 = vpop.f32.mrb[0].mxu0
        %2390 = vmatprep.mubr.bf16.mxu0 0
        %2391 = vmatmul.mubr.bf16.gmra.mrb[0].mxu0 %v1235
        %v2392 = vpop.f32.mrb[0].mxu0
        %v2393 = vadd.f32 0.0, %v2392
        %v2394 = vpop.f32.mrb[0].mxu0
        %v2395 = vpop.f32.mrb[0].mxu0
        %v2396 = vadd.f32 0.0, %v2395
        %v2397 = vpop.f32.mrb[0].mxu0
        %2398 = vmatprep.mubr.bf16.mxu0 0
        %2399 = vmatmul.mubr.bf16.gmra.mrb[0].mxu0 %v1238
        %v2400 = vpop.f32.mrb[0].mxu0
        %v2401 = vadd.f32 0.0, %v2400
        %v2402 = vpop.f32.mrb[0].mxu0
        %v2403 = vpop.f32.mrb[0].mxu0
        %v2404 = vadd.f32 0.0, %v2403
        %v2405 = vpop.f32.mrb[0].mxu0
        %2406 = vmatprep.mubr.bf16.mxu0 0
        %2407 = vmatmul.mubr.bf16.gmra.mrb[0].mxu0 %v1241
        %v2408 = vpop.f32.mrb[0].mxu0
        %v2409 = vadd.f32 0.0, %v2408
        %v2410 = vpop.f32.mrb[0].mxu0
        %v2411 = vpop.f32.mrb[0].mxu0
        %v2412 = vadd.f32 0.0, %v2411
        %v2413 = vpop.f32.mrb[0].mxu0
        %2414 = vmatprep.mubr.bf16.mxu0 0
        %2415 = vmatmul.mubr.bf16.gmra.mrb[0].mxu0 %v1244
        %v2416 = vpop.f32.mrb[0].mxu0
        %v2417 = vadd.f32 0.0, %v2416
        %v2418 = vpop.f32.mrb[0].mxu0
        %v2419 = vpop.f32.mrb[0].mxu0
        %v2420 = vadd.f32 0.0, %v2419
        %v2421 = vpop.f32.mrb[0].mxu0
        %2422 = vmatprep.mubr.bf16.mxu0 0
        %2423 = vmatmul.mubr.bf16.gmra.mrb[0].mxu0 %v1247
        %v2424 = vpop.f32.mrb[0].mxu0
        %v2425 = vadd.f32 0.0, %v2424
        %v2426 = vpop.f32.mrb[0].mxu0
        %v2427 = vpop.f32.mrb[0].mxu0
        %v2428 = vadd.f32 0.0, %v2427
        %v2429 = vpop.f32.mrb[0].mxu0
        %2430 = vmatprep.mubr.bf16.mxu0 0
        %2431 = vmatmul.mubr.bf16.gmra.mrb[0].mxu0 %v1250
        %v2432 = vpop.f32.mrb[0].mxu0
        %v2433 = vadd.f32 0.0, %v2432
        %v2434 = vpop.f32.mrb[0].mxu0
        %v2435 = vpop.f32.mrb[0].mxu0
        %v2436 = vadd.f32 0.0, %v2435
        %v2437 = vpop.f32.mrb[0].mxu0
        %2438 = vmatprep.mubr.bf16.mxu0 0
        %2439 = vmatmul.mubr.bf16.gmra.mrb[0].mxu0 %v1253
        %v2440 = vpop.f32.mrb[0].mxu0
        %v2441 = vadd.f32 0.0, %v2440
        %v2442 = vpop.f32.mrb[0].mxu0
        %v2443 = vpop.f32.mrb[0].mxu0
        %v2444 = vpop.f32.mrb[0].mxu0
        %2445 = vdwg.mxu0
        %v2446 = vrot.slane %v2281, 4
        %v2447 = vrot.slane %v2284, 4
        %v2448 = vrot.slane %v2289, 4
        %v2449 = vsel %vm1459, %v2446, %v2441
        %v2450 = vsel %vm1459, %v2447, %v2446
        %v2451 = vsel %vm1459, %v2448, %v2447
        %v2493 = vrot.slane %v2289, 2
        %v2494 = vrot.slane %v2292, 2
        %v2495 = vsel %vm2077, %v2493, %v2494
        %v2496 = vrot.slane %v2297, 2
        %v2497 = vsel %vm2077, %v2494, %v2496
        %v2498 = vrot.slane %v2300, 2
        %v2499 = vsel %vm2077, %v2496, %v2498
        %v2500 = vrot.slane %v2305, 2
        %v2501 = vsel %vm2077, %v2498, %v2500
        %v2502 = vrot.slane %v2308, 2
        %v2503 = vsel %vm2077, %v2500, %v2502
        %v2504 = vrot.slane %v2313, 2
        %v2505 = vsel %vm2077, %v2502, %v2504
        %v2506 = vrot.slane %v2316, 2
        %v2507 = vsel %vm2077, %v2504, %v2506
        %v2508 = vrot.slane %v2321, 2
        %v2509 = vsel %vm2077, %v2506, %v2508
        %v2510 = vrot.slane %v2324, 2
        %v2511 = vsel %vm2077, %v2508, %v2510
        %v2512 = vrot.slane %v2329, 2
        %v2513 = vsel %vm2077, %v2510, %v2512
        %v2514 = vrot.slane %v2332, 2
        %v2515 = vsel %vm2077, %v2512, %v2514
        %v2516 = vrot.slane %v2337, 2
        %v2517 = vsel %vm2077, %v2514, %v2516
        %v2518 = vrot.slane %v2340, 2
        %v2519 = vsel %vm2077, %v2516, %v2518
        %v2520 = vrot.slane %v2345, 2
        %v2521 = vsel %vm2077, %v2518, %v2520
        %v2522 = vrot.slane %v2348, 2
        %v2523 = vsel %vm2077, %v2520, %v2522
        %v2524 = vrot.slane %v2353, 2
        %v2525 = vsel %vm2077, %v2522, %v2524
        %v2526 = vrot.slane %v2356, 2
        %v2527 = vsel %vm2077, %v2524, %v2526
        %v2528 = vrot.slane %v2361, 2
        %v2529 = vsel %vm2077, %v2526, %v2528
        %v2530 = vrot.slane %v2364, 2
        %v2531 = vsel %vm2077, %v2528, %v2530
        %v2532 = vrot.slane %v2369, 2
        %v2533 = vsel %vm2077, %v2530, %v2532
        %v2534 = vrot.slane %v2372, 2
        %v2535 = vsel %vm2077, %v2532, %v2534
        %v2536 = vrot.slane %v2377, 2
        %v2537 = vsel %vm2077, %v2534, %v2536
        %v2538 = vrot.slane %v2380, 2
        %v2539 = vsel %vm2077, %v2536, %v2538
        %v2540 = vrot.slane %v2385, 2
        %v2541 = vsel %vm2077, %v2538, %v2540
        %v2542 = vrot.slane %v2388, 2
        %v2543 = vsel %vm2077, %v2540, %v2542
        %v2544 = vrot.slane %v2393, 2
        %v2545 = vsel %vm2077, %v2542, %v2544
        %v2546 = vrot.slane %v2396, 2
        %v2547 = vsel %vm2077, %v2544, %v2546
        %v2548 = vrot.slane %v2401, 2
        %v2549 = vsel %vm2077, %v2546, %v2548
        %v2550 = vrot.slane %v2404, 2
        %v2551 = vsel %vm2077, %v2548, %v2550
        %v2552 = vrot.slane %v2409, 2
        %v2553 = vsel %vm2077, %v2550, %v2552
        %v2554 = vrot.slane %v2412, 2
        %v2555 = vsel %vm2077, %v2552, %v2554
        %v2556 = vrot.slane %v2417, 2
        %v2557 = vsel %vm2077, %v2554, %v2556
        %v2558 = vrot.slane %v2420, 2
        %v2559 = vsel %vm2077, %v2556, %v2558
        %v2560 = vrot.slane %v2425, 2
        %v2561 = vsel %vm2077, %v2558, %v2560
        %v2562 = vrot.slane %v2428, 2
        %v2563 = vsel %vm2077, %v2560, %v2562
        %v2564 = vrot.slane %v2433, 2
        %v2565 = vsel %vm2077, %v2562, %v2564
        %v2566 = vrot.slane %v2436, 2
        %v2567 = vsel %vm2077, %v2564, %v2566
        %v2568 = vrot.slane %v2449, 2
        %v2569 = vsel %vm2077, %v2566, %v2568
        %v2570 = vrot.slane %v2450, 2
        %v2571 = vsel %vm2077, %v2568, %v2570
        %v2572 = vrot.slane %v2451, 2
        %v2573 = vsel %vm2077, %v2570, %v2572
        %v2615 = vadd.f32 %v2200, %v2495
        %v2616 = vadd.f32 %v2201, %v2497
        %v2617 = vadd.f32 %v2202, %v2499
        %v2618 = vadd.f32 %v2203, %v2501
        %v2619 = vadd.f32 %v2204, %v2503
        %v2620 = vadd.f32 %v2205, %v2505
        %v2621 = vadd.f32 %v2206, %v2507
        %v2622 = vadd.f32 %v2207, %v2509
        %v2623 = vadd.f32 %v2208, %v2511
        %v2624 = vadd.f32 %v2209, %v2513
        %v2625 = vadd.f32 %v2210, %v2515
        %v2626 = vadd.f32 %v2211, %v2517
        %v2627 = vadd.f32 %v2212, %v2519
        %v2628 = vadd.f32 %v2213, %v2521
        %v2629 = vadd.f32 %v2214, %v2523
        %v2630 = vadd.f32 %v2215, %v2525
        %v2631 = vadd.f32 %v2216, %v2527
        %v2632 = vadd.f32 %v2217, %v2529
        %v2633 = vadd.f32 %v2218, %v2531
        %v2634 = vadd.f32 %v2219, %v2533
        %v2635 = vadd.f32 %v2220, %v2535
        %v2636 = vadd.f32 %v2221, %v2537
        %v2637 = vadd.f32 %v2222, %v2539
        %v2638 = vadd.f32 %v2223, %v2541
        %v2639 = vadd.f32 %v2224, %v2543
        %v2640 = vadd.f32 %v2225, %v2545
        %v2641 = vadd.f32 %v2226, %v2547
        %v2642 = vadd.f32 %v2227, %v2549
        %v2643 = vadd.f32 %v2228, %v2551
        %v2644 = vadd.f32 %v2229, %v2553
        %v2645 = vadd.f32 %v2230, %v2555
        %v2646 = vadd.f32 %v2231, %v2557
        %v2647 = vadd.f32 %v2232, %v2559
        %v2648 = vadd.f32 %v2233, %v2561
        %v2649 = vadd.f32 %v2234, %v2563
        %v2650 = vadd.f32 %v2235, %v2565
        %v2651 = vadd.f32 %v2236, %v2567
        %v2652 = vadd.f32 %v2237, %v2569
        %v2653 = vadd.f32 %v2238, %v2571
        %v2654 = vadd.f32 %v2239, %v2573
        %v2655 = vadd.f32 %v2240, %v2572
        %s2656 = scalar_lea.vmem %s1, 8
        %v2657 = vld [vmem:[%s2656] sm:$0x3]
        %v2659 = vsel %vm1255, %v2657, 0
        %2661 = vmatprep.subr.bf16.mxu0 0
        %2662 = vmatpush1.bf16.msra.mxu0 %v2659
        %2663 = vmatprep.subr.bf16.mxu0 0
        %2664 = vmatpush1.bf16.msra.mxu0 0
        %2665 = vmatprep.subr.bf16.mxu0 0
        %2666 = vmatpush1.bf16.msra.mxu0 0
        %2667 = vmatprep.subr.bf16.mxu0 0
        %2668 = vmatpush1.bf16.msra.mxu0 0
        %2669 = vmatprep.subr.bf16.mxu0 0
        %2670 = vmatpush1.bf16.msra.mxu0 0
        %2671 = vmatprep.subr.bf16.mxu0 0
        %2672 = vmatpush1.bf16.msra.mxu0 0
        %2673 = vmatprep.subr.bf16.mxu0 0
        %2674 = vmatpush1.bf16.msra.mxu0 0
        %2675 = vmatprep.subr.bf16.mxu0 0
        %2676 = vmatpush1.bf16.msra.mxu0 0
        %2677 = vmatprep.subr.bf16.mxu0 0
        %2678 = vmatpush1.bf16.msra.mxu0 0
        %2679 = vmatprep.subr.bf16.mxu0 0
        %2680 = vmatpush1.bf16.msra.mxu0 0
        %2681 = vmatprep.subr.bf16.mxu0 0
        %2682 = vmatpush1.bf16.msra.mxu0 0
        %2683 = vmatprep.subr.bf16.mxu0 0
        %2684 = vmatpush1.bf16.msra.mxu0 0
        %2685 = vmatprep.subr.bf16.mxu0 0
        %2686 = vmatpush1.bf16.msra.mxu0 0
        %2687 = vmatprep.subr.bf16.mxu0 0
        %2688 = vmatpush1.bf16.msra.mxu0 0
        %2689 = vmatprep.subr.bf16.mxu0 0
        %2690 = vmatpush1.bf16.msra.mxu0 0
        %2691 = vmatprep.subr.bf16.mxu0 0
        %2692 = vmatpush1.bf16.msra.mxu0 0
        %2693 = vmatprep.mubr.bf16.mxu0 0
        %2694 = vmatmul.mubr.bf16.gmra.mrb[0].mxu0 %v1193
        %v2695 = vpop.f32.mrb[0].mxu0
        %v2696 = vadd.f32 0.0, %v2695
        %v2697 = vpop.f32.mrb[0].mxu0
        %v2698 = vpop.f32.mrb[0].mxu0
        %v2699 = vadd.f32 0.0, %v2698
        %v2700 = vpop.f32.mrb[0].mxu0
        %2701 = vmatprep.mubr.bf16.mxu0 0
        %2702 = vmatmul.mubr.bf16.gmra.mrb[0].mxu0 %v1196
        %v2703 = vpop.f32.mrb[0].mxu0
        %v2704 = vadd.f32 0.0, %v2703
        %v2705 = vpop.f32.mrb[0].mxu0
        %v2706 = vpop.f32.mrb[0].mxu0
        %v2707 = vadd.f32 0.0, %v2706
        %v2708 = vpop.f32.mrb[0].mxu0
        %2709 = vmatprep.mubr.bf16.mxu0 0
        %2710 = vmatmul.mubr.bf16.gmra.mrb[0].mxu0 %v1199
        %v2711 = vpop.f32.mrb[0].mxu0
        %v2712 = vadd.f32 0.0, %v2711
        %v2713 = vpop.f32.mrb[0].mxu0
        %v2714 = vpop.f32.mrb[0].mxu0
        %v2715 = vadd.f32 0.0, %v2714
        %v2716 = vpop.f32.mrb[0].mxu0
        %2717 = vmatprep.mubr.bf16.mxu0 0
        %2718 = vmatmul.mubr.bf16.gmra.mrb[0].mxu0 %v1202
        %v2719 = vpop.f32.mrb[0].mxu0
        %v2720 = vadd.f32 0.0, %v2719
        %v2721 = vpop.f32.mrb[0].mxu0
        %v2722 = vpop.f32.mrb[0].mxu0
        %v2723 = vadd.f32 0.0, %v2722
        %v2724 = vpop.f32.mrb[0].mxu0
        %2725 = vmatprep.mubr.bf16.mxu0 0
        %2726 = vmatmul.mubr.bf16.gmra.mrb[0].mxu0 %v1205
        %v2727 = vpop.f32.mrb[0].mxu0
        %v2728 = vadd.f32 0.0, %v2727
        %v2729 = vpop.f32.mrb[0].mxu0
        %v2730 = vpop.f32.mrb[0].mxu0
        %v2731 = vadd.f32 0.0, %v2730
        %v2732 = vpop.f32.mrb[0].mxu0
        %2733 = vmatprep.mubr.bf16.mxu0 0
        %2734 = vmatmul.mubr.bf16.gmra.mrb[0].mxu0 %v1208
        %v2735 = vpop.f32.mrb[0].mxu0
        %v2736 = vadd.f32 0.0, %v2735
        %v2737 = vpop.f32.mrb[0].mxu0
        %v2738 = vpop.f32.mrb[0].mxu0
        %v2739 = vadd.f32 0.0, %v2738
        %v2740 = vpop.f32.mrb[0].mxu0
        %2741 = vmatprep.mubr.bf16.mxu0 0
        %2742 = vmatmul.mubr.bf16.gmra.mrb[0].mxu0 %v1211
        %v2743 = vpop.f32.mrb[0].mxu0
        %v2744 = vadd.f32 0.0, %v2743
        %v2745 = vpop.f32.mrb[0].mxu0
        %v2746 = vpop.f32.mrb[0].mxu0
        %v2747 = vadd.f32 0.0, %v2746
        %v2748 = vpop.f32.mrb[0].mxu0
        %2749 = vmatprep.mubr.bf16.mxu0 0
        %2750 = vmatmul.mubr.bf16.gmra.mrb[0].mxu0 %v1214
        %v2751 = vpop.f32.mrb[0].mxu0
        %v2752 = vadd.f32 0.0, %v2751
        %v2753 = vpop.f32.mrb[0].mxu0
        %v2754 = vpop.f32.mrb[0].mxu0
        %v2755 = vadd.f32 0.0, %v2754
        %v2756 = vpop.f32.mrb[0].mxu0
        %2757 = vmatprep.mubr.bf16.mxu0 0
        %2758 = vmatmul.mubr.bf16.gmra.mrb[0].mxu0 %v1217
        %v2759 = vpop.f32.mrb[0].mxu0
        %v2760 = vadd.f32 0.0, %v2759
        %v2761 = vpop.f32.mrb[0].mxu0
        %v2762 = vpop.f32.mrb[0].mxu0
        %v2763 = vadd.f32 0.0, %v2762
        %v2764 = vpop.f32.mrb[0].mxu0
        %2765 = vmatprep.mubr.bf16.mxu0 0
        %2766 = vmatmul.mubr.bf16.gmra.mrb[0].mxu0 %v1220
        %v2767 = vpop.f32.mrb[0].mxu0
        %v2768 = vadd.f32 0.0, %v2767
        %v2769 = vpop.f32.mrb[0].mxu0
        %v2770 = vpop.f32.mrb[0].mxu0
        %v2771 = vadd.f32 0.0, %v2770
        %v2772 = vpop.f32.mrb[0].mxu0
        %2773 = vmatprep.mubr.bf16.mxu0 0
        %2774 = vmatmul.mubr.bf16.gmra.mrb[0].mxu0 %v1223
        %v2775 = vpop.f32.mrb[0].mxu0
        %v2776 = vadd.f32 0.0, %v2775
        %v2777 = vpop.f32.mrb[0].mxu0
        %v2778 = vpop.f32.mrb[0].mxu0
        %v2779 = vadd.f32 0.0, %v2778
        %v2780 = vpop.f32.mrb[0].mxu0
        %2781 = vmatprep.mubr.bf16.mxu0 0
        %2782 = vmatmul.mubr.bf16.gmra.mrb[0].mxu0 %v1226
        %v2783 = vpop.f32.mrb[0].mxu0
        %v2784 = vadd.f32 0.0, %v2783
        %v2785 = vpop.f32.mrb[0].mxu0
        %v2786 = vpop.f32.mrb[0].mxu0
        %v2787 = vadd.f32 0.0, %v2786
        %v2788 = vpop.f32.mrb[0].mxu0
        %2789 = vmatprep.mubr.bf16.mxu0 0
        %2790 = vmatmul.mubr.bf16.gmra.mrb[0].mxu0 %v1229
        %v2791 = vpop.f32.mrb[0].mxu0
        %v2792 = vadd.f32 0.0, %v2791
        %v2793 = vpop.f32.mrb[0].mxu0
        %v2794 = vpop.f32.mrb[0].mxu0
        %v2795 = vadd.f32 0.0, %v2794
        %v2796 = vpop.f32.mrb[0].mxu0
        %2797 = vmatprep.mubr.bf16.mxu0 0
        %2798 = vmatmul.mubr.bf16.gmra.mrb[0].mxu0 %v1232
        %v2799 = vpop.f32.mrb[0].mxu0
        %v2800 = vadd.f32 0.0, %v2799
        %v2801 = vpop.f32.mrb[0].mxu0
        %v2802 = vpop.f32.mrb[0].mxu0
        %v2803 = vadd.f32 0.0, %v2802
        %v2804 = vpop.f32.mrb[0].mxu0
        %2805 = vmatprep.mubr.bf16.mxu0 0
        %2806 = vmatmul.mubr.bf16.gmra.mrb[0].mxu0 %v1235
        %v2807 = vpop.f32.mrb[0].mxu0
        %v2808 = vadd.f32 0.0, %v2807
        %v2809 = vpop.f32.mrb[0].mxu0
        %v2810 = vpop.f32.mrb[0].mxu0
        %v2811 = vadd.f32 0.0, %v2810
        %v2812 = vpop.f32.mrb[0].mxu0
        %2813 = vmatprep.mubr.bf16.mxu0 0
        %2814 = vmatmul.mubr.bf16.gmra.mrb[0].mxu0 %v1238
        %v2815 = vpop.f32.mrb[0].mxu0
        %v2816 = vadd.f32 0.0, %v2815
        %v2817 = vpop.f32.mrb[0].mxu0
        %v2818 = vpop.f32.mrb[0].mxu0
        %v2819 = vadd.f32 0.0, %v2818
        %v2820 = vpop.f32.mrb[0].mxu0
        %2821 = vmatprep.mubr.bf16.mxu0 0
        %2822 = vmatmul.mubr.bf16.gmra.mrb[0].mxu0 %v1241
        %v2823 = vpop.f32.mrb[0].mxu0
        %v2824 = vadd.f32 0.0, %v2823
        %v2825 = vpop.f32.mrb[0].mxu0
        %v2826 = vpop.f32.mrb[0].mxu0
        %v2827 = vadd.f32 0.0, %v2826
        %v2828 = vpop.f32.mrb[0].mxu0
        %2829 = vmatprep.mubr.bf16.mxu0 0
        %2830 = vmatmul.mubr.bf16.gmra.mrb[0].mxu0 %v1244
        %v2831 = vpop.f32.mrb[0].mxu0
        %v2832 = vadd.f32 0.0, %v2831
        %v2833 = vpop.f32.mrb[0].mxu0
        %v2834 = vpop.f32.mrb[0].mxu0
        %v2835 = vadd.f32 0.0, %v2834
        %v2836 = vpop.f32.mrb[0].mxu0
        %2837 = vmatprep.mubr.bf16.mxu0 0
        %2838 = vmatmul.mubr.bf16.gmra.mrb[0].mxu0 %v1247
        %v2839 = vpop.f32.mrb[0].mxu0
        %v2840 = vadd.f32 0.0, %v2839
        %v2841 = vpop.f32.mrb[0].mxu0
        %v2842 = vpop.f32.mrb[0].mxu0
        %v2843 = vadd.f32 0.0, %v2842
        %v2844 = vpop.f32.mrb[0].mxu0
        %2845 = vmatprep.mubr.bf16.mxu0 0
        %2846 = vmatmul.mubr.bf16.gmra.mrb[0].mxu0 %v1250
        %v2847 = vpop.f32.mrb[0].mxu0
        %v2848 = vadd.f32 0.0, %v2847
        %v2849 = vpop.f32.mrb[0].mxu0
        %v2850 = vpop.f32.mrb[0].mxu0
        %v2851 = vadd.f32 0.0, %v2850
        %v2852 = vpop.f32.mrb[0].mxu0
        %2853 = vmatprep.mubr.bf16.mxu0 0
        %2854 = vmatmul.mubr.bf16.gmra.mrb[0].mxu0 %v1253
        %v2855 = vpop.f32.mrb[0].mxu0
        %v2856 = vadd.f32 0.0, %v2855
        %v2857 = vpop.f32.mrb[0].mxu0
        %v2858 = vpop.f32.mrb[0].mxu0
        %v2859 = vpop.f32.mrb[0].mxu0
        %2860 = vdwg.mxu0
        %v2861 = vrot.slane %v2696, 4
        %v2862 = vrot.slane %v2699, 4
        %v2863 = vrot.slane %v2704, 4
        %v2864 = vsel %vm1459, %v2861, %v2856
        %v2865 = vsel %vm1459, %v2862, %v2861
        %v2866 = vsel %vm1459, %v2863, %v2862
        %vm2908 = vcmask 1044480
        %v2909 = vrot.slane %v2704, 3
        %v2910 = vrot.slane %v2707, 3
        %v2911 = vsel %vm2908, %v2909, %v2910
        %v2912 = vrot.slane %v2712, 3
        %v2913 = vsel %vm2908, %v2910, %v2912
        %v2914 = vrot.slane %v2715, 3
        %v2915 = vsel %vm2908, %v2912, %v2914
        %v2916 = vrot.slane %v2720, 3
        %v2917 = vsel %vm2908, %v2914, %v2916
        %v2918 = vrot.slane %v2723, 3
        %v2919 = vsel %vm2908, %v2916, %v2918
        %v2920 = vrot.slane %v2728, 3
        %v2921 = vsel %vm2908, %v2918, %v2920
        %v2922 = vrot.slane %v2731, 3
        %v2923 = vsel %vm2908, %v2920, %v2922
        %v2924 = vrot.slane %v2736, 3
        %v2925 = vsel %vm2908, %v2922, %v2924
        %v2926 = vrot.slane %v2739, 3
        %v2927 = vsel %vm2908, %v2924, %v2926
        %v2928 = vrot.slane %v2744, 3
        %v2929 = vsel %vm2908, %v2926, %v2928
        %v2930 = vrot.slane %v2747, 3
        %v2931 = vsel %vm2908, %v2928, %v2930
        %v2932 = vrot.slane %v2752, 3
        %v2933 = vsel %vm2908, %v2930, %v2932
        %v2934 = vrot.slane %v2755, 3
        %v2935 = vsel %vm2908, %v2932, %v2934
        %v2936 = vrot.slane %v2760, 3
        %v2937 = vsel %vm2908, %v2934, %v2936
        %v2938 = vrot.slane %v2763, 3
        %v2939 = vsel %vm2908, %v2936, %v2938
        %v2940 = vrot.slane %v2768, 3
        %v2941 = vsel %vm2908, %v2938, %v2940
        %v2942 = vrot.slane %v2771, 3
        %v2943 = vsel %vm2908, %v2940, %v2942
        %v2944 = vrot.slane %v2776, 3
        %v2945 = vsel %vm2908, %v2942, %v2944
        %v2946 = vrot.slane %v2779, 3
        %v2947 = vsel %vm2908, %v2944, %v2946
        %v2948 = vrot.slane %v2784, 3
        %v2949 = vsel %vm2908, %v2946, %v2948
        %v2950 = vrot.slane %v2787, 3
        %v2951 = vsel %vm2908, %v2948, %v2950
        %v2952 = vrot.slane %v2792, 3
        %v2953 = vsel %vm2908, %v2950, %v2952
        %v2954 = vrot.slane %v2795, 3
        %v2955 = vsel %vm2908, %v2952, %v2954
        %v2956 = vrot.slane %v2800, 3
        %v2957 = vsel %vm2908, %v2954, %v2956
        %v2958 = vrot.slane %v2803, 3
        %v2959 = vsel %vm2908, %v2956, %v2958
        %v2960 = vrot.slane %v2808, 3
        %v2961 = vsel %vm2908, %v2958, %v2960
        %v2962 = vrot.slane %v2811, 3
        %v2963 = vsel %vm2908, %v2960, %v2962
        %v2964 = vrot.slane %v2816, 3
        %v2965 = vsel %vm2908, %v2962, %v2964
        %v2966 = vrot.slane %v2819, 3
        %v2967 = vsel %vm2908, %v2964, %v2966
        %v2968 = vrot.slane %v2824, 3
        %v2969 = vsel %vm2908, %v2966, %v2968
        %v2970 = vrot.slane %v2827, 3
        %v2971 = vsel %vm2908, %v2968, %v2970
        %v2972 = vrot.slane %v2832, 3
        %v2973 = vsel %vm2908, %v2970, %v2972
        %v2974 = vrot.slane %v2835, 3
        %v2975 = vsel %vm2908, %v2972, %v2974
        %v2976 = vrot.slane %v2840, 3
        %v2977 = vsel %vm2908, %v2974, %v2976
        %v2978 = vrot.slane %v2843, 3
        %v2979 = vsel %vm2908, %v2976, %v2978
        %v2980 = vrot.slane %v2848, 3
        %v2981 = vsel %vm2908, %v2978, %v2980
        %v2982 = vrot.slane %v2851, 3
        %v2983 = vsel %vm2908, %v2980, %v2982
        %v2984 = vrot.slane %v2864, 3
        %v2985 = vsel %vm2908, %v2982, %v2984
        %v2986 = vrot.slane %v2865, 3
        %v2987 = vsel %vm2908, %v2984, %v2986
        %v2988 = vrot.slane %v2866, 3
        %v2989 = vsel %vm2908, %v2986, %v2988
        %v3031 = vadd.f32 %v2615, %v2911
        %v3032 = vadd.f32 %v2616, %v2913
        %v3033 = vadd.f32 %v2617, %v2915
        %v3034 = vadd.f32 %v2618, %v2917
        %v3035 = vadd.f32 %v2619, %v2919
        %v3036 = vadd.f32 %v2620, %v2921
        %v3037 = vadd.f32 %v2621, %v2923
        %v3038 = vadd.f32 %v2622, %v2925
        %v3039 = vadd.f32 %v2623, %v2927
        %v3040 = vadd.f32 %v2624, %v2929
        %v3041 = vadd.f32 %v2625, %v2931
        %v3042 = vadd.f32 %v2626, %v2933
        %v3043 = vadd.f32 %v2627, %v2935
        %v3044 = vadd.f32 %v2628, %v2937
        %v3045 = vadd.f32 %v2629, %v2939
        %v3046 = vadd.f32 %v2630, %v2941
        %v3047 = vadd.f32 %v2631, %v2943
        %v3048 = vadd.f32 %v2632, %v2945
        %v3049 = vadd.f32 %v2633, %v2947
        %v3050 = vadd.f32 %v2634, %v2949
        %v3051 = vadd.f32 %v2635, %v2951
        %v3052 = vadd.f32 %v2636, %v2953
        %v3053 = vadd.f32 %v2637, %v2955
        %v3054 = vadd.f32 %v2638, %v2957
        %v3055 = vadd.f32 %v2639, %v2959
        %v3056 = vadd.f32 %v2640, %v2961
        %v3057 = vadd.f32 %v2641, %v2963
        %v3058 = vadd.f32 %v2642, %v2965
        %v3059 = vadd.f32 %v2643, %v2967
        %v3060 = vadd.f32 %v2644, %v2969
        %v3061 = vadd.f32 %v2645, %v2971
        %v3062 = vadd.f32 %v2646, %v2973
        %v3063 = vadd.f32 %v2647, %v2975
        %v3064 = vadd.f32 %v2648, %v2977
        %v3065 = vadd.f32 %v2649, %v2979
        %v3066 = vadd.f32 %v2650, %v2981
        %v3067 = vadd.f32 %v2651, %v2983
        %v3068 = vadd.f32 %v2652, %v2985
        %v3069 = vadd.f32 %v2653, %v2987
        %v3070 = vadd.f32 %v2654, %v2989
        %v3071 = vadd.f32 %v2655, %v2988
        %s3072 = scalar_lea.vmem %s1, 10
        %v3073 = vld [vmem:[%s3072] sm:$0x3]
        %v3075 = vsel %vm1255, %v3073, 0
        %3077 = vmatprep.subr.bf16.mxu0 0
        %3078 = vmatpush1.bf16.msra.mxu0 %v3075
        %3079 = vmatprep.subr.bf16.mxu0 0
        %3080 = vmatpush1.bf16.msra.mxu0 0
        %3081 = vmatprep.subr.bf16.mxu0 0
        %3082 = vmatpush1.bf16.msra.mxu0 0
        %3083 = vmatprep.subr.bf16.mxu0 0
        %3084 = vmatpush1.bf16.msra.mxu0 0
        %3085 = vmatprep.subr.bf16.mxu0 0
        %3086 = vmatpush1.bf16.msra.mxu0 0
        %3087 = vmatprep.subr.bf16.mxu0 0
        %3088 = vmatpush1.bf16.msra.mxu0 0
        %3089 = vmatprep.subr.bf16.mxu0 0
        %3090 = vmatpush1.bf16.msra.mxu0 0
        %3091 = vmatprep.subr.bf16.mxu0 0
        %3092 = vmatpush1.bf16.msra.mxu0 0
        %3093 = vmatprep.subr.bf16.mxu0 0
        %3094 = vmatpush1.bf16.msra.mxu0 0
        %3095 = vmatprep.subr.bf16.mxu0 0
        %3096 = vmatpush1.bf16.msra.mxu0 0
        %3097 = vmatprep.subr.bf16.mxu0 0
        %3098 = vmatpush1.bf16.msra.mxu0 0
        %3099 = vmatprep.subr.bf16.mxu0 0
        %3100 = vmatpush1.bf16.msra.mxu0 0
        %3101 = vmatprep.subr.bf16.mxu0 0
        %3102 = vmatpush1.bf16.msra.mxu0 0
        %3103 = vmatprep.subr.bf16.mxu0 0
        %3104 = vmatpush1.bf16.msra.mxu0 0
        %3105 = vmatprep.subr.bf16.mxu0 0
        %3106 = vmatpush1.bf16.msra.mxu0 0
        %3107 = vmatprep.subr.bf16.mxu0 0
        %3108 = vmatpush1.bf16.msra.mxu0 0
        %3109 = vmatprep.mubr.bf16.mxu0 0
        %3110 = vmatmul.mubr.bf16.gmra.mrb[0].mxu0 %v1193
        %v3111 = vpop.f32.mrb[0].mxu0
        %v3112 = vadd.f32 0.0, %v3111
        %v3113 = vpop.f32.mrb[0].mxu0
        %v3114 = vpop.f32.mrb[0].mxu0
        %v3115 = vadd.f32 0.0, %v3114
        %v3116 = vpop.f32.mrb[0].mxu0
        %3117 = vmatprep.mubr.bf16.mxu0 0
        %3118 = vmatmul.mubr.bf16.gmra.mrb[0].mxu0 %v1196
        %v3119 = vpop.f32.mrb[0].mxu0
        %v3120 = vadd.f32 0.0, %v3119
        %v3121 = vpop.f32.mrb[0].mxu0
        %v3122 = vpop.f32.mrb[0].mxu0
        %v3123 = vadd.f32 0.0, %v3122
        %v3124 = vpop.f32.mrb[0].mxu0
        %3125 = vmatprep.mubr.bf16.mxu0 0
        %3126 = vmatmul.mubr.bf16.gmra.mrb[0].mxu0 %v1199
        %v3127 = vpop.f32.mrb[0].mxu0
        %v3128 = vadd.f32 0.0, %v3127
        %v3129 = vpop.f32.mrb[0].mxu0
        %v3130 = vpop.f32.mrb[0].mxu0
        %v3131 = vadd.f32 0.0, %v3130
        %v3132 = vpop.f32.mrb[0].mxu0
        %3133 = vmatprep.mubr.bf16.mxu0 0
        %3134 = vmatmul.mubr.bf16.gmra.mrb[0].mxu0 %v1202
        %v3135 = vpop.f32.mrb[0].mxu0
        %v3136 = vadd.f32 0.0, %v3135
        %v3137 = vpop.f32.mrb[0].mxu0
        %v3138 = vpop.f32.mrb[0].mxu0
        %v3139 = vadd.f32 0.0, %v3138
        %v3140 = vpop.f32.mrb[0].mxu0
        %3141 = vmatprep.mubr.bf16.mxu0 0
        %3142 = vmatmul.mubr.bf16.gmra.mrb[0].mxu0 %v1205
        %v3143 = vpop.f32.mrb[0].mxu0
        %v3144 = vadd.f32 0.0, %v3143
        %v3145 = vpop.f32.mrb[0].mxu0
        %v3146 = vpop.f32.mrb[0].mxu0
        %v3147 = vadd.f32 0.0, %v3146
        %v3148 = vpop.f32.mrb[0].mxu0
        %3149 = vmatprep.mubr.bf16.mxu0 0
        %3150 = vmatmul.mubr.bf16.gmra.mrb[0].mxu0 %v1208
        %v3151 = vpop.f32.mrb[0].mxu0
        %v3152 = vadd.f32 0.0, %v3151
        %v3153 = vpop.f32.mrb[0].mxu0
        %v3154 = vpop.f32.mrb[0].mxu0
        %v3155 = vadd.f32 0.0, %v3154
        %v3156 = vpop.f32.mrb[0].mxu0
        %3157 = vmatprep.mubr.bf16.mxu0 0
        %3158 = vmatmul.mubr.bf16.gmra.mrb[0].mxu0 %v1211
        %v3159 = vpop.f32.mrb[0].mxu0
        %v3160 = vadd.f32 0.0, %v3159
        %v3161 = vpop.f32.mrb[0].mxu0
        %v3162 = vpop.f32.mrb[0].mxu0
        %v3163 = vadd.f32 0.0, %v3162
        %v3164 = vpop.f32.mrb[0].mxu0
        %3165 = vmatprep.mubr.bf16.mxu0 0
        %3166 = vmatmul.mubr.bf16.gmra.mrb[0].mxu0 %v1214
        %v3167 = vpop.f32.mrb[0].mxu0
        %v3168 = vadd.f32 0.0, %v3167
        %v3169 = vpop.f32.mrb[0].mxu0
        %v3170 = vpop.f32.mrb[0].mxu0
        %v3171 = vadd.f32 0.0, %v3170
        %v3172 = vpop.f32.mrb[0].mxu0
        %3173 = vmatprep.mubr.bf16.mxu0 0
        %3174 = vmatmul.mubr.bf16.gmra.mrb[0].mxu0 %v1217
        %v3175 = vpop.f32.mrb[0].mxu0
        %v3176 = vadd.f32 0.0, %v3175
        %v3177 = vpop.f32.mrb[0].mxu0
        %v3178 = vpop.f32.mrb[0].mxu0
        %v3179 = vadd.f32 0.0, %v3178
        %v3180 = vpop.f32.mrb[0].mxu0
        %3181 = vmatprep.mubr.bf16.mxu0 0
        %3182 = vmatmul.mubr.bf16.gmra.mrb[0].mxu0 %v1220
        %v3183 = vpop.f32.mrb[0].mxu0
        %v3184 = vadd.f32 0.0, %v3183
        %v3185 = vpop.f32.mrb[0].mxu0
        %v3186 = vpop.f32.mrb[0].mxu0
        %v3187 = vadd.f32 0.0, %v3186
        %v3188 = vpop.f32.mrb[0].mxu0
        %3189 = vmatprep.mubr.bf16.mxu0 0
        %3190 = vmatmul.mubr.bf16.gmra.mrb[0].mxu0 %v1223
        %v3191 = vpop.f32.mrb[0].mxu0
        %v3192 = vadd.f32 0.0, %v3191
        %v3193 = vpop.f32.mrb[0].mxu0
        %v3194 = vpop.f32.mrb[0].mxu0
        %v3195 = vadd.f32 0.0, %v3194
        %v3196 = vpop.f32.mrb[0].mxu0
        %3197 = vmatprep.mubr.bf16.mxu0 0
        %3198 = vmatmul.mubr.bf16.gmra.mrb[0].mxu0 %v1226
        %v3199 = vpop.f32.mrb[0].mxu0
        %v3200 = vadd.f32 0.0, %v3199
        %v3201 = vpop.f32.mrb[0].mxu0
        %v3202 = vpop.f32.mrb[0].mxu0
        %v3203 = vadd.f32 0.0, %v3202
        %v3204 = vpop.f32.mrb[0].mxu0
        %3205 = vmatprep.mubr.bf16.mxu0 0
        %3206 = vmatmul.mubr.bf16.gmra.mrb[0].mxu0 %v1229
        %v3207 = vpop.f32.mrb[0].mxu0
        %v3208 = vadd.f32 0.0, %v3207
        %v3209 = vpop.f32.mrb[0].mxu0
        %v3210 = vpop.f32.mrb[0].mxu0
        %v3211 = vadd.f32 0.0, %v3210
        %v3212 = vpop.f32.mrb[0].mxu0
        %3213 = vmatprep.mubr.bf16.mxu0 0
        %3214 = vmatmul.mubr.bf16.gmra.mrb[0].mxu0 %v1232
        %v3215 = vpop.f32.mrb[0].mxu0
        %v3216 = vadd.f32 0.0, %v3215
        %v3217 = vpop.f32.mrb[0].mxu0
        %v3218 = vpop.f32.mrb[0].mxu0
        %v3219 = vadd.f32 0.0, %v3218
        %v3220 = vpop.f32.mrb[0].mxu0
        %3221 = vmatprep.mubr.bf16.mxu0 0
        %3222 = vmatmul.mubr.bf16.gmra.mrb[0].mxu0 %v1235
        %v3223 = vpop.f32.mrb[0].mxu0
        %v3224 = vadd.f32 0.0, %v3223
        %v3225 = vpop.f32.mrb[0].mxu0
        %v3226 = vpop.f32.mrb[0].mxu0
        %v3227 = vadd.f32 0.0, %v3226
        %v3228 = vpop.f32.mrb[0].mxu0
        %3229 = vmatprep.mubr.bf16.mxu0 0
        %3230 = vmatmul.mubr.bf16.gmra.mrb[0].mxu0 %v1238
        %v3231 = vpop.f32.mrb[0].mxu0
        %v3232 = vadd.f32 0.0, %v3231
        %v3233 = vpop.f32.mrb[0].mxu0
        %v3234 = vpop.f32.mrb[0].mxu0
        %v3235 = vadd.f32 0.0, %v3234
        %v3236 = vpop.f32.mrb[0].mxu0
        %3237 = vmatprep.mubr.bf16.mxu0 0
        %3238 = vmatmul.mubr.bf16.gmra.mrb[0].mxu0 %v1241
        %v3239 = vpop.f32.mrb[0].mxu0
        %v3240 = vadd.f32 0.0, %v3239
        %v3241 = vpop.f32.mrb[0].mxu0
        %v3242 = vpop.f32.mrb[0].mxu0
        %v3243 = vadd.f32 0.0, %v3242
        %v3244 = vpop.f32.mrb[0].mxu0
        %3245 = vmatprep.mubr.bf16.mxu0 0
        %3246 = vmatmul.mubr.bf16.gmra.mrb[0].mxu0 %v1244
        %v3247 = vpop.f32.mrb[0].mxu0
        %v3248 = vadd.f32 0.0, %v3247
        %v3249 = vpop.f32.mrb[0].mxu0
        %v3250 = vpop.f32.mrb[0].mxu0
        %v3251 = vadd.f32 0.0, %v3250
        %v3252 = vpop.f32.mrb[0].mxu0
        %3253 = vmatprep.mubr.bf16.mxu0 0
        %3254 = vmatmul.mubr.bf16.gmra.mrb[0].mxu0 %v1247
        %v3255 = vpop.f32.mrb[0].mxu0
        %v3256 = vadd.f32 0.0, %v3255
        %v3257 = vpop.f32.mrb[0].mxu0
        %v3258 = vpop.f32.mrb[0].mxu0
        %v3259 = vadd.f32 0.0, %v3258
        %v3260 = vpop.f32.mrb[0].mxu0
        %3261 = vmatprep.mubr.bf16.mxu0 0
        %3262 = vmatmul.mubr.bf16.gmra.mrb[0].mxu0 %v1250
        %v3263 = vpop.f32.mrb[0].mxu0
        %v3264 = vadd.f32 0.0, %v3263
        %v3265 = vpop.f32.mrb[0].mxu0
        %v3266 = vpop.f32.mrb[0].mxu0
        %v3267 = vadd.f32 0.0, %v3266
        %v3268 = vpop.f32.mrb[0].mxu0
        %3269 = vmatprep.mubr.bf16.mxu0 0
        %3270 = vmatmul.mubr.bf16.gmra.mrb[0].mxu0 %v1253
        %v3271 = vpop.f32.mrb[0].mxu0
        %v3272 = vadd.f32 0.0, %v3271
        %v3273 = vpop.f32.mrb[0].mxu0
        %v3274 = vpop.f32.mrb[0].mxu0
        %v3275 = vpop.f32.mrb[0].mxu0
        %3276 = vdwg.mxu0
        %v3277 = vrot.slane %v3112, 4
        %v3278 = vrot.slane %v3115, 4
        %v3279 = vrot.slane %v3120, 4
        %v3280 = vsel %vm1459, %v3277, %v3272
        %v3281 = vsel %vm1459, %v3278, %v3277
        %v3282 = vsel %vm1459, %v3279, %v3278
        %vm3324 = vcmask 1043456
        %v3325 = vrot.slane %v3120, 4
        %v3326 = vrot.slane %v3123, 4
        %v3327 = vsel %vm3324, %v3325, %v3326
        %v3328 = vrot.slane %v3128, 4
        %v3329 = vsel %vm3324, %v3326, %v3328
        %v3330 = vrot.slane %v3131, 4
        %v3331 = vsel %vm3324, %v3328, %v3330
        %v3332 = vrot.slane %v3136, 4
        %v3333 = vsel %vm3324, %v3330, %v3332
        %v3334 = vrot.slane %v3139, 4
        %v3335 = vsel %vm3324, %v3332, %v3334
        %v3336 = vrot.slane %v3144, 4
        %v3337 = vsel %vm3324, %v3334, %v3336
        %v3338 = vrot.slane %v3147, 4
        %v3339 = vsel %vm3324, %v3336, %v3338
        %v3340 = vrot.slane %v3152, 4
        %v3341 = vsel %vm3324, %v3338, %v3340
        %v3342 = vrot.slane %v3155, 4
        %v3343 = vsel %vm3324, %v3340, %v3342
        %v3344 = vrot.slane %v3160, 4
        %v3345 = vsel %vm3324, %v3342, %v3344
        %v3346 = vrot.slane %v3163, 4
        %v3347 = vsel %vm3324, %v3344, %v3346
        %v3348 = vrot.slane %v3168, 4
        %v3349 = vsel %vm3324, %v3346, %v3348
        %v3350 = vrot.slane %v3171, 4
        %v3351 = vsel %vm3324, %v3348, %v3350
        %v3352 = vrot.slane %v3176, 4
        %v3353 = vsel %vm3324, %v3350, %v3352
        %v3354 = vrot.slane %v3179, 4
        %v3355 = vsel %vm3324, %v3352, %v3354
        %v3356 = vrot.slane %v3184, 4
        %v3357 = vsel %vm3324, %v3354, %v3356
        %v3358 = vrot.slane %v3187, 4
        %v3359 = vsel %vm3324, %v3356, %v3358
        %v3360 = vrot.slane %v3192, 4
        %v3361 = vsel %vm3324, %v3358, %v3360
        %v3362 = vrot.slane %v3195, 4
        %v3363 = vsel %vm3324, %v3360, %v3362
        %v3364 = vrot.slane %v3200, 4
        %v3365 = vsel %vm3324, %v3362, %v3364
        %v3366 = vrot.slane %v3203, 4
        %v3367 = vsel %vm3324, %v3364, %v3366
        %v3368 = vrot.slane %v3208, 4
        %v3369 = vsel %vm3324, %v3366, %v3368
        %v3370 = vrot.slane %v3211, 4
        %v3371 = vsel %vm3324, %v3368, %v3370
        %v3372 = vrot.slane %v3216, 4
        %v3373 = vsel %vm3324, %v3370, %v3372
        %v3374 = vrot.slane %v3219, 4
        %v3375 = vsel %vm3324, %v3372, %v3374
        %v3376 = vrot.slane %v3224, 4
        %v3377 = vsel %vm3324, %v3374, %v3376
        %v3378 = vrot.slane %v3227, 4
        %v3379 = vsel %vm3324, %v3376, %v3378
        %v3380 = vrot.slane %v3232, 4
        %v3381 = vsel %vm3324, %v3378, %v3380
        %v3382 = vrot.slane %v3235, 4
        %v3383 = vsel %vm3324, %v3380, %v3382
        %v3384 = vrot.slane %v3240, 4
        %v3385 = vsel %vm3324, %v3382, %v3384
        %v3386 = vrot.slane %v3243, 4
        %v3387 = vsel %vm3324, %v3384, %v3386
        %v3388 = vrot.slane %v3248, 4
        %v3389 = vsel %vm3324, %v3386, %v3388
        %v3390 = vrot.slane %v3251, 4
        %v3391 = vsel %vm3324, %v3388, %v3390
        %v3392 = vrot.slane %v3256, 4
        %v3393 = vsel %vm3324, %v3390, %v3392
        %v3394 = vrot.slane %v3259, 4
        %v3395 = vsel %vm3324, %v3392, %v3394
        %v3396 = vrot.slane %v3264, 4
        %v3397 = vsel %vm3324, %v3394, %v3396
        %v3398 = vrot.slane %v3267, 4
        %v3399 = vsel %vm3324, %v3396, %v3398
        %v3400 = vrot.slane %v3280, 4
        %v3401 = vsel %vm3324, %v3398, %v3400
        %v3402 = vrot.slane %v3281, 4
        %v3403 = vsel %vm3324, %v3400, %v3402
        %v3404 = vrot.slane %v3282, 4
        %v3405 = vsel %vm3324, %v3402, %v3404
        %v3447 = vadd.f32 %v3031, %v3327
        %v3448 = vadd.f32 %v3032, %v3329
        %v3449 = vadd.f32 %v3033, %v3331
        %v3450 = vadd.f32 %v3034, %v3333
        %v3451 = vadd.f32 %v3035, %v3335
        %v3452 = vadd.f32 %v3036, %v3337
        %v3453 = vadd.f32 %v3037, %v3339
        %v3454 = vadd.f32 %v3038, %v3341
        %v3455 = vadd.f32 %v3039, %v3343
        %v3456 = vadd.f32 %v3040, %v3345
        %v3457 = vadd.f32 %v3041, %v3347
        %v3458 = vadd.f32 %v3042, %v3349
        %v3459 = vadd.f32 %v3043, %v3351
        %v3460 = vadd.f32 %v3044, %v3353
        %v3461 = vadd.f32 %v3045, %v3355
        %v3462 = vadd.f32 %v3046, %v3357
        %v3463 = vadd.f32 %v3047, %v3359
        %v3464 = vadd.f32 %v3048, %v3361
        %v3465 = vadd.f32 %v3049, %v3363
        %v3466 = vadd.f32 %v3050, %v3365
        %v3467 = vadd.f32 %v3051, %v3367
        %v3468 = vadd.f32 %v3052, %v3369
        %v3469 = vadd.f32 %v3053, %v3371
        %v3470 = vadd.f32 %v3054, %v3373
        %v3471 = vadd.f32 %v3055, %v3375
        %v3472 = vadd.f32 %v3056, %v3377
        %v3473 = vadd.f32 %v3057, %v3379
        %v3474 = vadd.f32 %v3058, %v3381
        %v3475 = vadd.f32 %v3059, %v3383
        %v3476 = vadd.f32 %v3060, %v3385
        %v3477 = vadd.f32 %v3061, %v3387
        %v3478 = vadd.f32 %v3062, %v3389
        %v3479 = vadd.f32 %v3063, %v3391
        %v3480 = vadd.f32 %v3064, %v3393
        %v3481 = vadd.f32 %v3065, %v3395
        %v3482 = vadd.f32 %v3066, %v3397
        %v3483 = vadd.f32 %v3067, %v3399
        %v3484 = vadd.f32 %v3068, %v3401
        %v3485 = vadd.f32 %v3069, %v3403
        %v3486 = vadd.f32 %v3070, %v3405
        %v3487 = vadd.f32 %v3071, %v3404
        %s3488 = scalar_lea.vmem %s1, 12
        %v3489 = vld [vmem:[%s3488] sm:$0x3]
        %v3491 = vsel %vm1255, %v3489, 0
        %3493 = vmatprep.subr.bf16.mxu0 0
        %3494 = vmatpush1.bf16.msra.mxu0 %v3491
        %3495 = vmatprep.subr.bf16.mxu0 0
        %3496 = vmatpush1.bf16.msra.mxu0 0
        %3497 = vmatprep.subr.bf16.mxu0 0
        %3498 = vmatpush1.bf16.msra.mxu0 0
        %3499 = vmatprep.subr.bf16.mxu0 0
        %3500 = vmatpush1.bf16.msra.mxu0 0
        %3501 = vmatprep.subr.bf16.mxu0 0
        %3502 = vmatpush1.bf16.msra.mxu0 0
        %3503 = vmatprep.subr.bf16.mxu0 0
        %3504 = vmatpush1.bf16.msra.mxu0 0
        %3505 = vmatprep.subr.bf16.mxu0 0
        %3506 = vmatpush1.bf16.msra.mxu0 0
        %3507 = vmatprep.subr.bf16.mxu0 0
        %3508 = vmatpush1.bf16.msra.mxu0 0
        %3509 = vmatprep.subr.bf16.mxu0 0
        %3510 = vmatpush1.bf16.msra.mxu0 0
        %3511 = vmatprep.subr.bf16.mxu0 0
        %3512 = vmatpush1.bf16.msra.mxu0 0
        %3513 = vmatprep.subr.bf16.mxu0 0
        %3514 = vmatpush1.bf16.msra.mxu0 0
        %3515 = vmatprep.subr.bf16.mxu0 0
        %3516 = vmatpush1.bf16.msra.mxu0 0
        %3517 = vmatprep.subr.bf16.mxu0 0
        %3518 = vmatpush1.bf16.msra.mxu0 0
        %3519 = vmatprep.subr.bf16.mxu0 0
        %3520 = vmatpush1.bf16.msra.mxu0 0
        %3521 = vmatprep.subr.bf16.mxu0 0
        %3522 = vmatpush1.bf16.msra.mxu0 0
        %3523 = vmatprep.subr.bf16.mxu0 0
        %3524 = vmatpush1.bf16.msra.mxu0 0
        %3525 = vmatprep.mubr.bf16.mxu0 0
        %3526 = vmatmul.mubr.bf16.gmra.mrb[0].mxu0 %v1193
        %v3527 = vpop.f32.mrb[0].mxu0
        %v3528 = vadd.f32 0.0, %v3527
        %v3529 = vpop.f32.mrb[0].mxu0
        %v3530 = vpop.f32.mrb[0].mxu0
        %v3531 = vadd.f32 0.0, %v3530
        %v3532 = vpop.f32.mrb[0].mxu0
        %3533 = vmatprep.mubr.bf16.mxu0 0
        %3534 = vmatmul.mubr.bf16.gmra.mrb[0].mxu0 %v1196
        %v3535 = vpop.f32.mrb[0].mxu0
        %v3536 = vadd.f32 0.0, %v3535
        %v3537 = vpop.f32.mrb[0].mxu0
        %v3538 = vpop.f32.mrb[0].mxu0
        %v3539 = vadd.f32 0.0, %v3538
        %v3540 = vpop.f32.mrb[0].mxu0
        %3541 = vmatprep.mubr.bf16.mxu0 0
        %3542 = vmatmul.mubr.bf16.gmra.mrb[0].mxu0 %v1199
        %v3543 = vpop.f32.mrb[0].mxu0
        %v3544 = vadd.f32 0.0, %v3543
        %v3545 = vpop.f32.mrb[0].mxu0
        %v3546 = vpop.f32.mrb[0].mxu0
        %v3547 = vadd.f32 0.0, %v3546
        %v3548 = vpop.f32.mrb[0].mxu0
        %3549 = vmatprep.mubr.bf16.mxu0 0
        %3550 = vmatmul.mubr.bf16.gmra.mrb[0].mxu0 %v1202
        %v3551 = vpop.f32.mrb[0].mxu0
        %v3552 = vadd.f32 0.0, %v3551
        %v3553 = vpop.f32.mrb[0].mxu0
        %v3554 = vpop.f32.mrb[0].mxu0
        %v3555 = vadd.f32 0.0, %v3554
        %v3556 = vpop.f32.mrb[0].mxu0
        %3557 = vmatprep.mubr.bf16.mxu0 0
        %3558 = vmatmul.mubr.bf16.gmra.mrb[0].mxu0 %v1205
        %v3559 = vpop.f32.mrb[0].mxu0
        %v3560 = vadd.f32 0.0, %v3559
        %v3561 = vpop.f32.mrb[0].mxu0
        %v3562 = vpop.f32.mrb[0].mxu0
        %v3563 = vadd.f32 0.0, %v3562
        %v3564 = vpop.f32.mrb[0].mxu0
        %3565 = vmatprep.mubr.bf16.mxu0 0
        %3566 = vmatmul.mubr.bf16.gmra.mrb[0].mxu0 %v1208
        %v3567 = vpop.f32.mrb[0].mxu0
        %v3568 = vadd.f32 0.0, %v3567
        %v3569 = vpop.f32.mrb[0].mxu0
        %v3570 = vpop.f32.mrb[0].mxu0
        %v3571 = vadd.f32 0.0, %v3570
        %v3572 = vpop.f32.mrb[0].mxu0
        %3573 = vmatprep.mubr.bf16.mxu0 0
        %3574 = vmatmul.mubr.bf16.gmra.mrb[0].mxu0 %v1211
        %v3575 = vpop.f32.mrb[0].mxu0
        %v3576 = vadd.f32 0.0, %v3575
        %v3577 = vpop.f32.mrb[0].mxu0
        %v3578 = vpop.f32.mrb[0].mxu0
        %v3579 = vadd.f32 0.0, %v3578
        %v3580 = vpop.f32.mrb[0].mxu0
        %3581 = vmatprep.mubr.bf16.mxu0 0
        %3582 = vmatmul.mubr.bf16.gmra.mrb[0].mxu0 %v1214
        %v3583 = vpop.f32.mrb[0].mxu0
        %v3584 = vadd.f32 0.0, %v3583
        %v3585 = vpop.f32.mrb[0].mxu0
        %v3586 = vpop.f32.mrb[0].mxu0
        %v3587 = vadd.f32 0.0, %v3586
        %v3588 = vpop.f32.mrb[0].mxu0
        %3589 = vmatprep.mubr.bf16.mxu0 0
        %3590 = vmatmul.mubr.bf16.gmra.mrb[0].mxu0 %v1217
        %v3591 = vpop.f32.mrb[0].mxu0
        %v3592 = vadd.f32 0.0, %v3591
        %v3593 = vpop.f32.mrb[0].mxu0
        %v3594 = vpop.f32.mrb[0].mxu0
        %v3595 = vadd.f32 0.0, %v3594
        %v3596 = vpop.f32.mrb[0].mxu0
        %3597 = vmatprep.mubr.bf16.mxu0 0
        %3598 = vmatmul.mubr.bf16.gmra.mrb[0].mxu0 %v1220
        %v3599 = vpop.f32.mrb[0].mxu0
        %v3600 = vadd.f32 0.0, %v3599
        %v3601 = vpop.f32.mrb[0].mxu0
        %v3602 = vpop.f32.mrb[0].mxu0
        %v3603 = vadd.f32 0.0, %v3602
        %v3604 = vpop.f32.mrb[0].mxu0
        %3605 = vmatprep.mubr.bf16.mxu0 0
        %3606 = vmatmul.mubr.bf16.gmra.mrb[0].mxu0 %v1223
        %v3607 = vpop.f32.mrb[0].mxu0
        %v3608 = vadd.f32 0.0, %v3607
        %v3609 = vpop.f32.mrb[0].mxu0
        %v3610 = vpop.f32.mrb[0].mxu0
        %v3611 = vadd.f32 0.0, %v3610
        %v3612 = vpop.f32.mrb[0].mxu0
        %3613 = vmatprep.mubr.bf16.mxu0 0
        %3614 = vmatmul.mubr.bf16.gmra.mrb[0].mxu0 %v1226
        %v3615 = vpop.f32.mrb[0].mxu0
        %v3616 = vadd.f32 0.0, %v3615
        %v3617 = vpop.f32.mrb[0].mxu0
        %v3618 = vpop.f32.mrb[0].mxu0
        %v3619 = vadd.f32 0.0, %v3618
        %v3620 = vpop.f32.mrb[0].mxu0
        %3621 = vmatprep.mubr.bf16.mxu0 0
        %3622 = vmatmul.mubr.bf16.gmra.mrb[0].mxu0 %v1229
        %v3623 = vpop.f32.mrb[0].mxu0
        %v3624 = vadd.f32 0.0, %v3623
        %v3625 = vpop.f32.mrb[0].mxu0
        %v3626 = vpop.f32.mrb[0].mxu0
        %v3627 = vadd.f32 0.0, %v3626
        %v3628 = vpop.f32.mrb[0].mxu0
        %3629 = vmatprep.mubr.bf16.mxu0 0
        %3630 = vmatmul.mubr.bf16.gmra.mrb[0].mxu0 %v1232
        %v3631 = vpop.f32.mrb[0].mxu0
        %v3632 = vadd.f32 0.0, %v3631
        %v3633 = vpop.f32.mrb[0].mxu0
        %v3634 = vpop.f32.mrb[0].mxu0
        %v3635 = vadd.f32 0.0, %v3634
        %v3636 = vpop.f32.mrb[0].mxu0
        %3637 = vmatprep.mubr.bf16.mxu0 0
        %3638 = vmatmul.mubr.bf16.gmra.mrb[0].mxu0 %v1235
        %v3639 = vpop.f32.mrb[0].mxu0
        %v3640 = vadd.f32 0.0, %v3639
        %v3641 = vpop.f32.mrb[0].mxu0
        %v3642 = vpop.f32.mrb[0].mxu0
        %v3643 = vadd.f32 0.0, %v3642
        %v3644 = vpop.f32.mrb[0].mxu0
        %3645 = vmatprep.mubr.bf16.mxu0 0
        %3646 = vmatmul.mubr.bf16.gmra.mrb[0].mxu0 %v1238
        %v3647 = vpop.f32.mrb[0].mxu0
        %v3648 = vadd.f32 0.0, %v3647
        %v3649 = vpop.f32.mrb[0].mxu0
        %v3650 = vpop.f32.mrb[0].mxu0
        %v3651 = vadd.f32 0.0, %v3650
        %v3652 = vpop.f32.mrb[0].mxu0
        %3653 = vmatprep.mubr.bf16.mxu0 0
        %3654 = vmatmul.mubr.bf16.gmra.mrb[0].mxu0 %v1241
        %v3655 = vpop.f32.mrb[0].mxu0
        %v3656 = vadd.f32 0.0, %v3655
        %v3657 = vpop.f32.mrb[0].mxu0
        %v3658 = vpop.f32.mrb[0].mxu0
        %v3659 = vadd.f32 0.0, %v3658
        %v3660 = vpop.f32.mrb[0].mxu0
        %3661 = vmatprep.mubr.bf16.mxu0 0
        %3662 = vmatmul.mubr.bf16.gmra.mrb[0].mxu0 %v1244
        %v3663 = vpop.f32.mrb[0].mxu0
        %v3664 = vadd.f32 0.0, %v3663
        %v3665 = vpop.f32.mrb[0].mxu0
        %v3666 = vpop.f32.mrb[0].mxu0
        %v3667 = vadd.f32 0.0, %v3666
        %v3668 = vpop.f32.mrb[0].mxu0
        %3669 = vmatprep.mubr.bf16.mxu0 0
        %3670 = vmatmul.mubr.bf16.gmra.mrb[0].mxu0 %v1247
        %v3671 = vpop.f32.mrb[0].mxu0
        %v3672 = vadd.f32 0.0, %v3671
        %v3673 = vpop.f32.mrb[0].mxu0
        %v3674 = vpop.f32.mrb[0].mxu0
        %v3675 = vadd.f32 0.0, %v3674
        %v3676 = vpop.f32.mrb[0].mxu0
        %3677 = vmatprep.mubr.bf16.mxu0 0
        %3678 = vmatmul.mubr.bf16.gmra.mrb[0].mxu0 %v1250
        %v3679 = vpop.f32.mrb[0].mxu0
        %v3680 = vadd.f32 0.0, %v3679
        %v3681 = vpop.f32.mrb[0].mxu0
        %v3682 = vpop.f32.mrb[0].mxu0
        %v3683 = vadd.f32 0.0, %v3682
        %v3684 = vpop.f32.mrb[0].mxu0
        %3685 = vmatprep.mubr.bf16.mxu0 0
        %3686 = vmatmul.mubr.bf16.gmra.mrb[0].mxu0 %v1253
        %v3687 = vpop.f32.mrb[0].mxu0
        %v3688 = vadd.f32 0.0, %v3687
        %v3689 = vpop.f32.mrb[0].mxu0
        %v3690 = vpop.f32.mrb[0].mxu0
        %v3691 = vpop.f32.mrb[0].mxu0
        %3692 = vdwg.mxu0
        %v3693 = vrot.slane %v3528, 4
        %v3694 = vrot.slane %v3531, 4
        %v3695 = vrot.slane %v3536, 4
        %v3696 = vrot.slane %v3539, 4
        %v3697 = vrot.slane %v3544, 4
        %v3698 = vsel %vm1459, %v3693, %v3688
        %v3699 = vsel %vm1459, %v3694, %v3693
        %v3700 = vsel %vm1459, %v3695, %v3694
        %v3701 = vsel %vm1459, %v3696, %v3695
        %v3702 = vsel %vm1459, %v3697, %v3696
        %v3744 = vrot.slane %v3544, 4
        %v3745 = vrot.slane %v3547, 4
        %v3746 = vsel %vm3324, %v3744, %v3745
        %v3747 = vrot.slane %v3552, 4
        %v3748 = vsel %vm3324, %v3745, %v3747
        %v3749 = vrot.slane %v3555, 4
        %v3750 = vsel %vm3324, %v3747, %v3749
        %v3751 = vrot.slane %v3560, 4
        %v3752 = vsel %vm3324, %v3749, %v3751
        %v3753 = vrot.slane %v3563, 4
        %v3754 = vsel %vm3324, %v3751, %v3753
        %v3755 = vrot.slane %v3568, 4
        %v3756 = vsel %vm3324, %v3753, %v3755
        %v3757 = vrot.slane %v3571, 4
        %v3758 = vsel %vm3324, %v3755, %v3757
        %v3759 = vrot.slane %v3576, 4
        %v3760 = vsel %vm3324, %v3757, %v3759
        %v3761 = vrot.slane %v3579, 4
        %v3762 = vsel %vm3324, %v3759, %v3761
        %v3763 = vrot.slane %v3584, 4
        %v3764 = vsel %vm3324, %v3761, %v3763
        %v3765 = vrot.slane %v3587, 4
        %v3766 = vsel %vm3324, %v3763, %v3765
        %v3767 = vrot.slane %v3592, 4
        %v3768 = vsel %vm3324, %v3765, %v3767
        %v3769 = vrot.slane %v3595, 4
        %v3770 = vsel %vm3324, %v3767, %v3769
        %v3771 = vrot.slane %v3600, 4
        %v3772 = vsel %vm3324, %v3769, %v3771
        %v3773 = vrot.slane %v3603, 4
        %v3774 = vsel %vm3324, %v3771, %v3773
        %v3775 = vrot.slane %v3608, 4
        %v3776 = vsel %vm3324, %v3773, %v3775
        %v3777 = vrot.slane %v3611, 4
        %v3778 = vsel %vm3324, %v3775, %v3777
        %v3779 = vrot.slane %v3616, 4
        %v3780 = vsel %vm3324, %v3777, %v3779
        %v3781 = vrot.slane %v3619, 4
        %v3782 = vsel %vm3324, %v3779, %v3781
        %v3783 = vrot.slane %v3624, 4
        %v3784 = vsel %vm3324, %v3781, %v3783
        %v3785 = vrot.slane %v3627, 4
        %v3786 = vsel %vm3324, %v3783, %v3785
        %v3787 = vrot.slane %v3632, 4
        %v3788 = vsel %vm3324, %v3785, %v3787
        %v3789 = vrot.slane %v3635, 4
        %v3790 = vsel %vm3324, %v3787, %v3789
        %v3791 = vrot.slane %v3640, 4
        %v3792 = vsel %vm3324, %v3789, %v3791
        %v3793 = vrot.slane %v3643, 4
        %v3794 = vsel %vm3324, %v3791, %v3793
        %v3795 = vrot.slane %v3648, 4
        %v3796 = vsel %vm3324, %v3793, %v3795
        %v3797 = vrot.slane %v3651, 4
        %v3798 = vsel %vm3324, %v3795, %v3797
        %v3799 = vrot.slane %v3656, 4
        %v3800 = vsel %vm3324, %v3797, %v3799
        %v3801 = vrot.slane %v3659, 4
        %v3802 = vsel %vm3324, %v3799, %v3801
        %v3803 = vrot.slane %v3664, 4
        %v3804 = vsel %vm3324, %v3801, %v3803
        %v3805 = vrot.slane %v3667, 4
        %v3806 = vsel %vm3324, %v3803, %v3805
        %v3807 = vrot.slane %v3672, 4
        %v3808 = vsel %vm3324, %v3805, %v3807
        %v3809 = vrot.slane %v3675, 4
        %v3810 = vsel %vm3324, %v3807, %v3809
        %v3811 = vrot.slane %v3680, 4
        %v3812 = vsel %vm3324, %v3809, %v3811
        %v3813 = vrot.slane %v3683, 4
        %v3814 = vsel %vm3324, %v3811, %v3813
        %v3815 = vrot.slane %v3698, 4
        %v3816 = vsel %vm3324, %v3813, %v3815
        %v3817 = vrot.slane %v3699, 4
        %v3818 = vsel %vm3324, %v3815, %v3817
        %v3819 = vrot.slane %v3700, 4
        %v3820 = vsel %vm3324, %v3817, %v3819
        %v3821 = vrot.slane %v3701, 4
        %v3822 = vsel %vm3324, %v3819, %v3821
        %v3823 = vrot.slane %v3702, 4
        %v3824 = vsel %vm3324, %v3821, %v3823
        %v3866 = vadd.f32 %v3447, %v3746
        %v3867 = vadd.f32 %v3448, %v3748
        %v3868 = vadd.f32 %v3449, %v3750
        %v3869 = vadd.f32 %v3450, %v3752
        %v3870 = vadd.f32 %v3451, %v3754
        %v3871 = vadd.f32 %v3452, %v3756
        %v3872 = vadd.f32 %v3453, %v3758
        %v3873 = vadd.f32 %v3454, %v3760
        %v3874 = vadd.f32 %v3455, %v3762
        %v3875 = vadd.f32 %v3456, %v3764
        %v3876 = vadd.f32 %v3457, %v3766
        %v3877 = vadd.f32 %v3458, %v3768
        %v3878 = vadd.f32 %v3459, %v3770
        %v3879 = vadd.f32 %v3460, %v3772
        %v3880 = vadd.f32 %v3461, %v3774
        %v3881 = vadd.f32 %v3462, %v3776
        %v3882 = vadd.f32 %v3463, %v3778
        %v3883 = vadd.f32 %v3464, %v3780
        %v3884 = vadd.f32 %v3465, %v3782
        %v3885 = vadd.f32 %v3466, %v3784
        %v3886 = vadd.f32 %v3467, %v3786
        %v3887 = vadd.f32 %v3468, %v3788
        %v3888 = vadd.f32 %v3469, %v3790
        %v3889 = vadd.f32 %v3470, %v3792
        %v3890 = vadd.f32 %v3471, %v3794
        %v3891 = vadd.f32 %v3472, %v3796
        %v3892 = vadd.f32 %v3473, %v3798
        %v3893 = vadd.f32 %v3474, %v3800
        %v3894 = vadd.f32 %v3475, %v3802
        %v3895 = vadd.f32 %v3476, %v3804
        %v3896 = vadd.f32 %v3477, %v3806
        %v3897 = vadd.f32 %v3478, %v3808
        %v3898 = vadd.f32 %v3479, %v3810
        %v3899 = vadd.f32 %v3480, %v3812
        %v3900 = vadd.f32 %v3481, %v3814
        %v3901 = vadd.f32 %v3482, %v3816
        %v3902 = vadd.f32 %v3483, %v3818
        %v3903 = vadd.f32 %v3484, %v3820
        %v3904 = vadd.f32 %v3485, %v3822
        %v3905 = vadd.f32 %v3486, %v3824
        %v3906 = vadd.f32 %v3487, %v3823
        %s3907 = scalar_lea.vmem %s1, 14
        %v3908 = vld [vmem:[%s3907] sm:$0x3]
        %v3910 = vsel %vm1255, %v3908, 0
        %3912 = vmatprep.subr.bf16.mxu0 0
        %3913 = vmatpush1.bf16.msra.mxu0 %v3910
        %3914 = vmatprep.subr.bf16.mxu0 0
        %3915 = vmatpush1.bf16.msra.mxu0 0
        %3916 = vmatprep.subr.bf16.mxu0 0
        %3917 = vmatpush1.bf16.msra.mxu0 0
        %3918 = vmatprep.subr.bf16.mxu0 0
        %3919 = vmatpush1.bf16.msra.mxu0 0
        %3920 = vmatprep.subr.bf16.mxu0 0
        %3921 = vmatpush1.bf16.msra.mxu0 0
        %3922 = vmatprep.subr.bf16.mxu0 0
        %3923 = vmatpush1.bf16.msra.mxu0 0
        %3924 = vmatprep.subr.bf16.mxu0 0
        %3925 = vmatpush1.bf16.msra.mxu0 0
        %3926 = vmatprep.subr.bf16.mxu0 0
        %3927 = vmatpush1.bf16.msra.mxu0 0
        %3928 = vmatprep.subr.bf16.mxu0 0
        %3929 = vmatpush1.bf16.msra.mxu0 0
        %3930 = vmatprep.subr.bf16.mxu0 0
        %3931 = vmatpush1.bf16.msra.mxu0 0
        %3932 = vmatprep.subr.bf16.mxu0 0
        %3933 = vmatpush1.bf16.msra.mxu0 0
        %3934 = vmatprep.subr.bf16.mxu0 0
        %3935 = vmatpush1.bf16.msra.mxu0 0
        %3936 = vmatprep.subr.bf16.mxu0 0
        %3937 = vmatpush1.bf16.msra.mxu0 0
        %3938 = vmatprep.subr.bf16.mxu0 0
        %3939 = vmatpush1.bf16.msra.mxu0 0
        %3940 = vmatprep.subr.bf16.mxu0 0
        %3941 = vmatpush1.bf16.msra.mxu0 0
        %3942 = vmatprep.subr.bf16.mxu0 0
        %3943 = vmatpush1.bf16.msra.mxu0 0
        %3944 = vmatprep.mubr.bf16.mxu0 0
        %3945 = vmatmul.mubr.bf16.gmra.mrb[0].mxu0 %v1193
        %v3946 = vpop.f32.mrb[0].mxu0
        %v3947 = vadd.f32 0.0, %v3946
        %v3948 = vpop.f32.mrb[0].mxu0
        %v3949 = vpop.f32.mrb[0].mxu0
        %v3950 = vadd.f32 0.0, %v3949
        %v3951 = vpop.f32.mrb[0].mxu0
        %3952 = vmatprep.mubr.bf16.mxu0 0
        %3953 = vmatmul.mubr.bf16.gmra.mrb[0].mxu0 %v1196
        %v3954 = vpop.f32.mrb[0].mxu0
        %v3955 = vadd.f32 0.0, %v3954
        %v3956 = vpop.f32.mrb[0].mxu0
        %v3957 = vpop.f32.mrb[0].mxu0
        %v3958 = vadd.f32 0.0, %v3957
        %v3959 = vpop.f32.mrb[0].mxu0
        %3960 = vmatprep.mubr.bf16.mxu0 0
        %3961 = vmatmul.mubr.bf16.gmra.mrb[0].mxu0 %v1199
        %v3962 = vpop.f32.mrb[0].mxu0
        %v3963 = vadd.f32 0.0, %v3962
        %v3964 = vpop.f32.mrb[0].mxu0
        %v3965 = vpop.f32.mrb[0].mxu0
        %v3966 = vadd.f32 0.0, %v3965
        %v3967 = vpop.f32.mrb[0].mxu0
        %3968 = vmatprep.mubr.bf16.mxu0 0
        %3969 = vmatmul.mubr.bf16.gmra.mrb[0].mxu0 %v1202
        %v3970 = vpop.f32.mrb[0].mxu0
        %v3971 = vadd.f32 0.0, %v3970
        %v3972 = vpop.f32.mrb[0].mxu0
        %v3973 = vpop.f32.mrb[0].mxu0
        %v3974 = vadd.f32 0.0, %v3973
        %v3975 = vpop.f32.mrb[0].mxu0
        %3976 = vmatprep.mubr.bf16.mxu0 0
        %3977 = vmatmul.mubr.bf16.gmra.mrb[0].mxu0 %v1205
        %v3978 = vpop.f32.mrb[0].mxu0
        %v3979 = vadd.f32 0.0, %v3978
        %v3980 = vpop.f32.mrb[0].mxu0
        %v3981 = vpop.f32.mrb[0].mxu0
        %v3982 = vadd.f32 0.0, %v3981
        %v3983 = vpop.f32.mrb[0].mxu0
        %3984 = vmatprep.mubr.bf16.mxu0 0
        %3985 = vmatmul.mubr.bf16.gmra.mrb[0].mxu0 %v1208
        %v3986 = vpop.f32.mrb[0].mxu0
        %v3987 = vadd.f32 0.0, %v3986
        %v3988 = vpop.f32.mrb[0].mxu0
        %v3989 = vpop.f32.mrb[0].mxu0
        %v3990 = vadd.f32 0.0, %v3989
        %v3991 = vpop.f32.mrb[0].mxu0
        %3992 = vmatprep.mubr.bf16.mxu0 0
        %3993 = vmatmul.mubr.bf16.gmra.mrb[0].mxu0 %v1211
        %v3994 = vpop.f32.mrb[0].mxu0
        %v3995 = vadd.f32 0.0, %v3994
        %v3996 = vpop.f32.mrb[0].mxu0
        %v3997 = vpop.f32.mrb[0].mxu0
        %v3998 = vadd.f32 0.0, %v3997
        %v3999 = vpop.f32.mrb[0].mxu0
        %4000 = vmatprep.mubr.bf16.mxu0 0
        %4001 = vmatmul.mubr.bf16.gmra.mrb[0].mxu0 %v1214
        %v4002 = vpop.f32.mrb[0].mxu0
        %v4003 = vadd.f32 0.0, %v4002
        %v4004 = vpop.f32.mrb[0].mxu0
        %v4005 = vpop.f32.mrb[0].mxu0
        %v4006 = vadd.f32 0.0, %v4005
        %v4007 = vpop.f32.mrb[0].mxu0
        %4008 = vmatprep.mubr.bf16.mxu0 0
        %4009 = vmatmul.mubr.bf16.gmra.mrb[0].mxu0 %v1217
        %v4010 = vpop.f32.mrb[0].mxu0
        %v4011 = vadd.f32 0.0, %v4010
        %v4012 = vpop.f32.mrb[0].mxu0
        %v4013 = vpop.f32.mrb[0].mxu0
        %v4014 = vadd.f32 0.0, %v4013
        %v4015 = vpop.f32.mrb[0].mxu0
        %4016 = vmatprep.mubr.bf16.mxu0 0
        %4017 = vmatmul.mubr.bf16.gmra.mrb[0].mxu0 %v1220
        %v4018 = vpop.f32.mrb[0].mxu0
        %v4019 = vadd.f32 0.0, %v4018
        %v4020 = vpop.f32.mrb[0].mxu0
        %v4021 = vpop.f32.mrb[0].mxu0
        %v4022 = vadd.f32 0.0, %v4021
        %v4023 = vpop.f32.mrb[0].mxu0
        %4024 = vmatprep.mubr.bf16.mxu0 0
        %4025 = vmatmul.mubr.bf16.gmra.mrb[0].mxu0 %v1223
        %v4026 = vpop.f32.mrb[0].mxu0
        %v4027 = vadd.f32 0.0, %v4026
        %v4028 = vpop.f32.mrb[0].mxu0
        %v4029 = vpop.f32.mrb[0].mxu0
        %v4030 = vadd.f32 0.0, %v4029
        %v4031 = vpop.f32.mrb[0].mxu0
        %4032 = vmatprep.mubr.bf16.mxu0 0
        %4033 = vmatmul.mubr.bf16.gmra.mrb[0].mxu0 %v1226
        %v4034 = vpop.f32.mrb[0].mxu0
        %v4035 = vadd.f32 0.0, %v4034
        %v4036 = vpop.f32.mrb[0].mxu0
        %v4037 = vpop.f32.mrb[0].mxu0
        %v4038 = vadd.f32 0.0, %v4037
        %v4039 = vpop.f32.mrb[0].mxu0
        %4040 = vmatprep.mubr.bf16.mxu0 0
        %4041 = vmatmul.mubr.bf16.gmra.mrb[0].mxu0 %v1229
        %v4042 = vpop.f32.mrb[0].mxu0
        %v4043 = vadd.f32 0.0, %v4042
        %v4044 = vpop.f32.mrb[0].mxu0
        %v4045 = vpop.f32.mrb[0].mxu0
        %v4046 = vadd.f32 0.0, %v4045
        %v4047 = vpop.f32.mrb[0].mxu0
        %4048 = vmatprep.mubr.bf16.mxu0 0
        %4049 = vmatmul.mubr.bf16.gmra.mrb[0].mxu0 %v1232
        %v4050 = vpop.f32.mrb[0].mxu0
        %v4051 = vadd.f32 0.0, %v4050
        %v4052 = vpop.f32.mrb[0].mxu0
        %v4053 = vpop.f32.mrb[0].mxu0
        %v4054 = vadd.f32 0.0, %v4053
        %v4055 = vpop.f32.mrb[0].mxu0
        %4056 = vmatprep.mubr.bf16.mxu0 0
        %4057 = vmatmul.mubr.bf16.gmra.mrb[0].mxu0 %v1235
        %v4058 = vpop.f32.mrb[0].mxu0
        %v4059 = vadd.f32 0.0, %v4058
        %v4060 = vpop.f32.mrb[0].mxu0
        %v4061 = vpop.f32.mrb[0].mxu0
        %v4062 = vadd.f32 0.0, %v4061
        %v4063 = vpop.f32.mrb[0].mxu0
        %4064 = vmatprep.mubr.bf16.mxu0 0
        %4065 = vmatmul.mubr.bf16.gmra.mrb[0].mxu0 %v1238
        %v4066 = vpop.f32.mrb[0].mxu0
        %v4067 = vadd.f32 0.0, %v4066
        %v4068 = vpop.f32.mrb[0].mxu0
        %v4069 = vpop.f32.mrb[0].mxu0
        %v4070 = vadd.f32 0.0, %v4069
        %v4071 = vpop.f32.mrb[0].mxu0
        %4072 = vmatprep.mubr.bf16.mxu0 0
        %4073 = vmatmul.mubr.bf16.gmra.mrb[0].mxu0 %v1241
        %v4074 = vpop.f32.mrb[0].mxu0
        %v4075 = vadd.f32 0.0, %v4074
        %v4076 = vpop.f32.mrb[0].mxu0
        %v4077 = vpop.f32.mrb[0].mxu0
        %v4078 = vadd.f32 0.0, %v4077
        %v4079 = vpop.f32.mrb[0].mxu0
        %4080 = vmatprep.mubr.bf16.mxu0 0
        %4081 = vmatmul.mubr.bf16.gmra.mrb[0].mxu0 %v1244
        %v4082 = vpop.f32.mrb[0].mxu0
        %v4083 = vadd.f32 0.0, %v4082
        %v4084 = vpop.f32.mrb[0].mxu0
        %v4085 = vpop.f32.mrb[0].mxu0
        %v4086 = vadd.f32 0.0, %v4085
        %v4087 = vpop.f32.mrb[0].mxu0
        %4088 = vmatprep.mubr.bf16.mxu0 0
        %4089 = vmatmul.mubr.bf16.gmra.mrb[0].mxu0 %v1247
        %v4090 = vpop.f32.mrb[0].mxu0
        %v4091 = vadd.f32 0.0, %v4090
        %v4092 = vpop.f32.mrb[0].mxu0
        %v4093 = vpop.f32.mrb[0].mxu0
        %v4094 = vadd.f32 0.0, %v4093
        %v4095 = vpop.f32.mrb[0].mxu0
        %4096 = vmatprep.mubr.bf16.mxu0 0
        %4097 = vmatmul.mubr.bf16.gmra.mrb[0].mxu0 %v1250
        %v4098 = vpop.f32.mrb[0].mxu0
        %v4099 = vadd.f32 0.0, %v4098
        %v4100 = vpop.f32.mrb[0].mxu0
        %v4101 = vpop.f32.mrb[0].mxu0
        %v4102 = vadd.f32 0.0, %v4101
        %v4103 = vpop.f32.mrb[0].mxu0
        %4104 = vmatprep.mubr.bf16.mxu0 0
        %4105 = vmatmul.mubr.bf16.gmra.mrb[0].mxu0 %v1253
        %v4106 = vpop.f32.mrb[0].mxu0
        %v4107 = vadd.f32 0.0, %v4106
        %v4108 = vpop.f32.mrb[0].mxu0
        %v4109 = vpop.f32.mrb[0].mxu0
        %v4110 = vpop.f32.mrb[0].mxu0
        %4111 = vdwg.mxu0
        %v4112 = vrot.slane %v3947, 4
        %v4113 = vrot.slane %v3950, 4
        %v4114 = vrot.slane %v3955, 4
        %v4115 = vrot.slane %v3958, 4
        %v4116 = vrot.slane %v3963, 4
        %v4117 = vrot.slane %v3966, 4
        %v4118 = vsel %vm1459, %v4112, %v4107
        %v4119 = vsel %vm1459, %v4113, %v4112
        %v4120 = vsel %vm1459, %v4114, %v4113
        %v4121 = vsel %vm1459, %v4115, %v4114
        %v4122 = vsel %vm1459, %v4116, %v4115
        %v4123 = vsel %vm1459, %v4117, %v4116
        %vm4166 = vcmask 1042432
        %v4167 = vrot.slane %v3963, 5
        %v4168 = vrot.slane %v3966, 5
        %v4169 = vsel %vm4166, %v4167, %v4168
        %v4170 = vrot.slane %v3971, 5
        %v4171 = vsel %vm4166, %v4168, %v4170
        %v4172 = vrot.slane %v3974, 5
        %v4173 = vsel %vm4166, %v4170, %v4172
        %v4174 = vrot.slane %v3979, 5
        %v4175 = vsel %vm4166, %v4172, %v4174
        %v4176 = vrot.slane %v3982, 5
        %v4177 = vsel %vm4166, %v4174, %v4176
        %v4178 = vrot.slane %v3987, 5
        %v4179 = vsel %vm4166, %v4176, %v4178
        %v4180 = vrot.slane %v3990, 5
        %v4181 = vsel %vm4166, %v4178, %v4180
        %v4182 = vrot.slane %v3995, 5
        %v4183 = vsel %vm4166, %v4180, %v4182
        %v4184 = vrot.slane %v3998, 5
        %v4185 = vsel %vm4166, %v4182, %v4184
        %v4186 = vrot.slane %v4003, 5
        %v4187 = vsel %vm4166, %v4184, %v4186
        %v4188 = vrot.slane %v4006, 5
        %v4189 = vsel %vm4166, %v4186, %v4188
        %v4190 = vrot.slane %v4011, 5
        %v4191 = vsel %vm4166, %v4188, %v4190
        %v4192 = vrot.slane %v4014, 5
        %v4193 = vsel %vm4166, %v4190, %v4192
        %v4194 = vrot.slane %v4019, 5
        %v4195 = vsel %vm4166, %v4192, %v4194
        %v4196 = vrot.slane %v4022, 5
        %v4197 = vsel %vm4166, %v4194, %v4196
        %v4198 = vrot.slane %v4027, 5
        %v4199 = vsel %vm4166, %v4196, %v4198
        %v4200 = vrot.slane %v4030, 5
        %v4201 = vsel %vm4166, %v4198, %v4200
        %v4202 = vrot.slane %v4035, 5
        %v4203 = vsel %vm4166, %v4200, %v4202
        %v4204 = vrot.slane %v4038, 5
        %v4205 = vsel %vm4166, %v4202, %v4204
        %v4206 = vrot.slane %v4043, 5
        %v4207 = vsel %vm4166, %v4204, %v4206
        %v4208 = vrot.slane %v4046, 5
        %v4209 = vsel %vm4166, %v4206, %v4208
        %v4210 = vrot.slane %v4051, 5
        %v4211 = vsel %vm4166, %v4208, %v4210
        %v4212 = vrot.slane %v4054, 5
        %v4213 = vsel %vm4166, %v4210, %v4212
        %v4214 = vrot.slane %v4059, 5
        %v4215 = vsel %vm4166, %v4212, %v4214
        %v4216 = vrot.slane %v4062, 5
        %v4217 = vsel %vm4166, %v4214, %v4216
        %v4218 = vrot.slane %v4067, 5
        %v4219 = vsel %vm4166, %v4216, %v4218
        %v4220 = vrot.slane %v4070, 5
        %v4221 = vsel %vm4166, %v4218, %v4220
        %v4222 = vrot.slane %v4075, 5
        %v4223 = vsel %vm4166, %v4220, %v4222
        %v4224 = vrot.slane %v4078, 5
        %v4225 = vsel %vm4166, %v4222, %v4224
        %v4226 = vrot.slane %v4083, 5
        %v4227 = vsel %vm4166, %v4224, %v4226
        %v4228 = vrot.slane %v4086, 5
        %v4229 = vsel %vm4166, %v4226, %v4228
        %v4230 = vrot.slane %v4091, 5
        %v4231 = vsel %vm4166, %v4228, %v4230
        %v4232 = vrot.slane %v4094, 5
        %v4233 = vsel %vm4166, %v4230, %v4232
        %v4234 = vrot.slane %v4099, 5
        %v4235 = vsel %vm4166, %v4232, %v4234
        %v4236 = vrot.slane %v4102, 5
        %v4237 = vsel %vm4166, %v4234, %v4236
        %v4238 = vrot.slane %v4118, 5
        %v4239 = vsel %vm4166, %v4236, %v4238
        %v4240 = vrot.slane %v4119, 5
        %v4241 = vsel %vm4166, %v4238, %v4240
        %v4242 = vrot.slane %v4120, 5
        %v4243 = vsel %vm4166, %v4240, %v4242
        %v4244 = vrot.slane %v4121, 5
        %v4245 = vsel %vm4166, %v4242, %v4244
        %v4246 = vrot.slane %v4122, 5
        %v4247 = vsel %vm4166, %v4244, %v4246
        %v4248 = vrot.slane %v4123, 5
        %v4249 = vsel %vm4166, %v4246, %v4248
        %v4291 = vadd.f32 %v3866, %v4169
        %v4292 = vadd.f32 %v3867, %v4171
        %v4293 = vadd.f32 %v3868, %v4173
        %v4294 = vadd.f32 %v3869, %v4175
        %v4295 = vadd.f32 %v3870, %v4177
        %v4296 = vadd.f32 %v3871, %v4179
        %v4297 = vadd.f32 %v3872, %v4181
        %v4298 = vadd.f32 %v3873, %v4183
        %v4299 = vadd.f32 %v3874, %v4185
        %v4300 = vadd.f32 %v3875, %v4187
        %v4301 = vadd.f32 %v3876, %v4189
        %v4302 = vadd.f32 %v3877, %v4191
        %v4303 = vadd.f32 %v3878, %v4193
        %v4304 = vadd.f32 %v3879, %v4195
        %v4305 = vadd.f32 %v3880, %v4197
        %v4306 = vadd.f32 %v3881, %v4199
        %v4307 = vadd.f32 %v3882, %v4201
        %v4308 = vadd.f32 %v3883, %v4203
        %v4309 = vadd.f32 %v3884, %v4205
        %v4310 = vadd.f32 %v3885, %v4207
        %v4311 = vadd.f32 %v3886, %v4209
        %v4312 = vadd.f32 %v3887, %v4211
        %v4313 = vadd.f32 %v3888, %v4213
        %v4314 = vadd.f32 %v3889, %v4215
        %v4315 = vadd.f32 %v3890, %v4217
        %v4316 = vadd.f32 %v3891, %v4219
        %v4317 = vadd.f32 %v3892, %v4221
        %v4318 = vadd.f32 %v3893, %v4223
        %v4319 = vadd.f32 %v3894, %v4225
        %v4320 = vadd.f32 %v3895, %v4227
        %v4321 = vadd.f32 %v3896, %v4229
        %v4322 = vadd.f32 %v3897, %v4231
        %v4323 = vadd.f32 %v3898, %v4233
        %v4324 = vadd.f32 %v3899, %v4235
        %v4325 = vadd.f32 %v3900, %v4237
        %v4326 = vadd.f32 %v3901, %v4239
        %v4327 = vadd.f32 %v3902, %v4241
        %v4328 = vadd.f32 %v3903, %v4243
        %v4329 = vadd.f32 %v3904, %v4245
        %v4330 = vadd.f32 %v3905, %v4247
        %v4331 = vadd.f32 %v3906, %v4249
        %s4332 = scalar_lea.vmem %s1, 16
        %v4333 = vld [vmem:[%s4332] sm:$0x3]
        %v4335 = vsel %vm1255, %v4333, 0
        %4337 = vmatprep.subr.bf16.mxu0 0
        %4338 = vmatpush1.bf16.msra.mxu0 %v4335
        %4339 = vmatprep.subr.bf16.mxu0 0
        %4340 = vmatpush1.bf16.msra.mxu0 0
        %4341 = vmatprep.subr.bf16.mxu0 0
        %4342 = vmatpush1.bf16.msra.mxu0 0
        %4343 = vmatprep.subr.bf16.mxu0 0
        %4344 = vmatpush1.bf16.msra.mxu0 0
        %4345 = vmatprep.subr.bf16.mxu0 0
        %4346 = vmatpush1.bf16.msra.mxu0 0
        %4347 = vmatprep.subr.bf16.mxu0 0
        %4348 = vmatpush1.bf16.msra.mxu0 0
        %4349 = vmatprep.subr.bf16.mxu0 0
        %4350 = vmatpush1.bf16.msra.mxu0 0
        %4351 = vmatprep.subr.bf16.mxu0 0
        %4352 = vmatpush1.bf16.msra.mxu0 0
        %4353 = vmatprep.subr.bf16.mxu0 0
        %4354 = vmatpush1.bf16.msra.mxu0 0
        %4355 = vmatprep.subr.bf16.mxu0 0
        %4356 = vmatpush1.bf16.msra.mxu0 0
        %4357 = vmatprep.subr.bf16.mxu0 0
        %4358 = vmatpush1.bf16.msra.mxu0 0
        %4359 = vmatprep.subr.bf16.mxu0 0
        %4360 = vmatpush1.bf16.msra.mxu0 0
        %4361 = vmatprep.subr.bf16.mxu0 0
        %4362 = vmatpush1.bf16.msra.mxu0 0
        %4363 = vmatprep.subr.bf16.mxu0 0
        %4364 = vmatpush1.bf16.msra.mxu0 0
        %4365 = vmatprep.subr.bf16.mxu0 0
        %4366 = vmatpush1.bf16.msra.mxu0 0
        %4367 = vmatprep.subr.bf16.mxu0 0
        %4368 = vmatpush1.bf16.msra.mxu0 0
        %4369 = vmatprep.mubr.bf16.mxu0 0
        %4370 = vmatmul.mubr.bf16.gmra.mrb[0].mxu0 %v1193
        %v4371 = vpop.f32.mrb[0].mxu0
        %v4372 = vadd.f32 0.0, %v4371
        %v4373 = vpop.f32.mrb[0].mxu0
        %v4374 = vpop.f32.mrb[0].mxu0
        %v4375 = vadd.f32 0.0, %v4374
        %v4376 = vpop.f32.mrb[0].mxu0
        %4377 = vmatprep.mubr.bf16.mxu0 0
        %4378 = vmatmul.mubr.bf16.gmra.mrb[0].mxu0 %v1196
        %v4379 = vpop.f32.mrb[0].mxu0
        %v4380 = vadd.f32 0.0, %v4379
        %v4381 = vpop.f32.mrb[0].mxu0
        %v4382 = vpop.f32.mrb[0].mxu0
        %v4383 = vadd.f32 0.0, %v4382
        %v4384 = vpop.f32.mrb[0].mxu0
        %4385 = vmatprep.mubr.bf16.mxu0 0
        %4386 = vmatmul.mubr.bf16.gmra.mrb[0].mxu0 %v1199
        %v4387 = vpop.f32.mrb[0].mxu0
        %v4388 = vadd.f32 0.0, %v4387
        %v4389 = vpop.f32.mrb[0].mxu0
        %v4390 = vpop.f32.mrb[0].mxu0
        %v4391 = vadd.f32 0.0, %v4390
        %v4392 = vpop.f32.mrb[0].mxu0
        %4393 = vmatprep.mubr.bf16.mxu0 0
        %4394 = vmatmul.mubr.bf16.gmra.mrb[0].mxu0 %v1202
        %v4395 = vpop.f32.mrb[0].mxu0
        %v4396 = vadd.f32 0.0, %v4395
        %v4397 = vpop.f32.mrb[0].mxu0
        %v4398 = vpop.f32.mrb[0].mxu0
        %v4399 = vadd.f32 0.0, %v4398
        %v4400 = vpop.f32.mrb[0].mxu0
        %4401 = vmatprep.mubr.bf16.mxu0 0
        %4402 = vmatmul.mubr.bf16.gmra.mrb[0].mxu0 %v1205
        %v4403 = vpop.f32.mrb[0].mxu0
        %v4404 = vadd.f32 0.0, %v4403
        %v4405 = vpop.f32.mrb[0].mxu0
        %v4406 = vpop.f32.mrb[0].mxu0
        %v4407 = vadd.f32 0.0, %v4406
        %v4408 = vpop.f32.mrb[0].mxu0
        %4409 = vmatprep.mubr.bf16.mxu0 0
        %4410 = vmatmul.mubr.bf16.gmra.mrb[0].mxu0 %v1208
        %v4411 = vpop.f32.mrb[0].mxu0
        %v4412 = vadd.f32 0.0, %v4411
        %v4413 = vpop.f32.mrb[0].mxu0
        %v4414 = vpop.f32.mrb[0].mxu0
        %v4415 = vadd.f32 0.0, %v4414
        %v4416 = vpop.f32.mrb[0].mxu0
        %4417 = vmatprep.mubr.bf16.mxu0 0
        %4418 = vmatmul.mubr.bf16.gmra.mrb[0].mxu0 %v1211
        %v4419 = vpop.f32.mrb[0].mxu0
        %v4420 = vadd.f32 0.0, %v4419
        %v4421 = vpop.f32.mrb[0].mxu0
        %v4422 = vpop.f32.mrb[0].mxu0
        %v4423 = vadd.f32 0.0, %v4422
        %v4424 = vpop.f32.mrb[0].mxu0
        %4425 = vmatprep.mubr.bf16.mxu0 0
        %4426 = vmatmul.mubr.bf16.gmra.mrb[0].mxu0 %v1214
        %v4427 = vpop.f32.mrb[0].mxu0
        %v4428 = vadd.f32 0.0, %v4427
        %v4429 = vpop.f32.mrb[0].mxu0
        %v4430 = vpop.f32.mrb[0].mxu0
        %v4431 = vadd.f32 0.0, %v4430
        %v4432 = vpop.f32.mrb[0].mxu0
        %4433 = vmatprep.mubr.bf16.mxu0 0
        %4434 = vmatmul.mubr.bf16.gmra.mrb[0].mxu0 %v1217
        %v4435 = vpop.f32.mrb[0].mxu0
        %v4436 = vadd.f32 0.0, %v4435
        %v4437 = vpop.f32.mrb[0].mxu0
        %v4438 = vpop.f32.mrb[0].mxu0
        %v4439 = vadd.f32 0.0, %v4438
        %v4440 = vpop.f32.mrb[0].mxu0
        %4441 = vmatprep.mubr.bf16.mxu0 0
        %4442 = vmatmul.mubr.bf16.gmra.mrb[0].mxu0 %v1220
        %v4443 = vpop.f32.mrb[0].mxu0
        %v4444 = vadd.f32 0.0, %v4443
        %v4445 = vpop.f32.mrb[0].mxu0
        %v4446 = vpop.f32.mrb[0].mxu0
        %v4447 = vadd.f32 0.0, %v4446
        %v4448 = vpop.f32.mrb[0].mxu0
        %4449 = vmatprep.mubr.bf16.mxu0 0
        %4450 = vmatmul.mubr.bf16.gmra.mrb[0].mxu0 %v1223
        %v4451 = vpop.f32.mrb[0].mxu0
        %v4452 = vadd.f32 0.0, %v4451
        %v4453 = vpop.f32.mrb[0].mxu0
        %v4454 = vpop.f32.mrb[0].mxu0
        %v4455 = vadd.f32 0.0, %v4454
        %v4456 = vpop.f32.mrb[0].mxu0
        %4457 = vmatprep.mubr.bf16.mxu0 0
        %4458 = vmatmul.mubr.bf16.gmra.mrb[0].mxu0 %v1226
        %v4459 = vpop.f32.mrb[0].mxu0
        %v4460 = vadd.f32 0.0, %v4459
        %v4461 = vpop.f32.mrb[0].mxu0
        %v4462 = vpop.f32.mrb[0].mxu0
        %v4463 = vadd.f32 0.0, %v4462
        %v4464 = vpop.f32.mrb[0].mxu0
        %4465 = vmatprep.mubr.bf16.mxu0 0
        %4466 = vmatmul.mubr.bf16.gmra.mrb[0].mxu0 %v1229
        %v4467 = vpop.f32.mrb[0].mxu0
        %v4468 = vadd.f32 0.0, %v4467
        %v4469 = vpop.f32.mrb[0].mxu0
        %v4470 = vpop.f32.mrb[0].mxu0
        %v4471 = vadd.f32 0.0, %v4470
        %v4472 = vpop.f32.mrb[0].mxu0
        %4473 = vmatprep.mubr.bf16.mxu0 0
        %4474 = vmatmul.mubr.bf16.gmra.mrb[0].mxu0 %v1232
        %v4475 = vpop.f32.mrb[0].mxu0
        %v4476 = vadd.f32 0.0, %v4475
        %v4477 = vpop.f32.mrb[0].mxu0
        %v4478 = vpop.f32.mrb[0].mxu0
        %v4479 = vadd.f32 0.0, %v4478
        %v4480 = vpop.f32.mrb[0].mxu0
        %4481 = vmatprep.mubr.bf16.mxu0 0
        %4482 = vmatmul.mubr.bf16.gmra.mrb[0].mxu0 %v1235
        %v4483 = vpop.f32.mrb[0].mxu0
        %v4484 = vadd.f32 0.0, %v4483
        %v4485 = vpop.f32.mrb[0].mxu0
        %v4486 = vpop.f32.mrb[0].mxu0
        %v4487 = vadd.f32 0.0, %v4486
        %v4488 = vpop.f32.mrb[0].mxu0
        %4489 = vmatprep.mubr.bf16.mxu0 0
        %4490 = vmatmul.mubr.bf16.gmra.mrb[0].mxu0 %v1238
        %v4491 = vpop.f32.mrb[0].mxu0
        %v4492 = vadd.f32 0.0, %v4491
        %v4493 = vpop.f32.mrb[0].mxu0
        %v4494 = vpop.f32.mrb[0].mxu0
        %v4495 = vadd.f32 0.0, %v4494
        %v4496 = vpop.f32.mrb[0].mxu0
        %4497 = vmatprep.mubr.bf16.mxu0 0
        %4498 = vmatmul.mubr.bf16.gmra.mrb[0].mxu0 %v1241
        %v4499 = vpop.f32.mrb[0].mxu0
        %v4500 = vadd.f32 0.0, %v4499
        %v4501 = vpop.f32.mrb[0].mxu0
        %v4502 = vpop.f32.mrb[0].mxu0
        %v4503 = vadd.f32 0.0, %v4502
        %v4504 = vpop.f32.mrb[0].mxu0
        %4505 = vmatprep.mubr.bf16.mxu0 0
        %4506 = vmatmul.mubr.bf16.gmra.mrb[0].mxu0 %v1244
        %v4507 = vpop.f32.mrb[0].mxu0
        %v4508 = vadd.f32 0.0, %v4507
        %v4509 = vpop.f32.mrb[0].mxu0
        %v4510 = vpop.f32.mrb[0].mxu0
        %v4511 = vadd.f32 0.0, %v4510
        %v4512 = vpop.f32.mrb[0].mxu0
        %4513 = vmatprep.mubr.bf16.mxu0 0
        %4514 = vmatmul.mubr.bf16.gmra.mrb[0].mxu0 %v1247
        %v4515 = vpop.f32.mrb[0].mxu0
        %v4516 = vadd.f32 0.0, %v4515
        %v4517 = vpop.f32.mrb[0].mxu0
        %v4518 = vpop.f32.mrb[0].mxu0
        %v4519 = vadd.f32 0.0, %v4518
        %v4520 = vpop.f32.mrb[0].mxu0
        %4521 = vmatprep.mubr.bf16.mxu0 0
        %4522 = vmatmul.mubr.bf16.gmra.mrb[0].mxu0 %v1250
        %v4523 = vpop.f32.mrb[0].mxu0
        %v4524 = vadd.f32 0.0, %v4523
        %v4525 = vpop.f32.mrb[0].mxu0
        %v4526 = vpop.f32.mrb[0].mxu0
        %v4527 = vadd.f32 0.0, %v4526
        %v4528 = vpop.f32.mrb[0].mxu0
        %4529 = vmatprep.mubr.bf16.mxu0 0
        %4530 = vmatmul.mubr.bf16.gmra.mrb[0].mxu0 %v1253
        %v4531 = vpop.f32.mrb[0].mxu0
        %v4532 = vadd.f32 0.0, %v4531
        %v4533 = vpop.f32.mrb[0].mxu0
        %v4534 = vpop.f32.mrb[0].mxu0
        %v4535 = vpop.f32.mrb[0].mxu0
        %4536 = vdwg.mxu0
        %v4537 = vrot.slane %v4372, 4
        %v4538 = vrot.slane %v4375, 4
        %v4539 = vrot.slane %v4380, 4
        %v4540 = vrot.slane %v4383, 4
        %v4541 = vrot.slane %v4388, 4
        %v4542 = vrot.slane %v4391, 4
        %v4543 = vsel %vm1459, %v4537, %v4532
        %v4544 = vsel %vm1459, %v4538, %v4537
        %v4545 = vsel %vm1459, %v4539, %v4538
        %v4546 = vsel %vm1459, %v4540, %v4539
        %v4547 = vsel %vm1459, %v4541, %v4540
        %v4548 = vsel %vm1459, %v4542, %v4541
        %v4591 = vrot.slane %v4388, 6
        %v4592 = vrot.slane %v4391, 6
        %v4593 = vsel %vm1255, %v4591, %v4592
        %v4594 = vrot.slane %v4396, 6
        %v4595 = vsel %vm1255, %v4592, %v4594
        %v4596 = vrot.slane %v4399, 6
        %v4597 = vsel %vm1255, %v4594, %v4596
        %v4598 = vrot.slane %v4404, 6
        %v4599 = vsel %vm1255, %v4596, %v4598
        %v4600 = vrot.slane %v4407, 6
        %v4601 = vsel %vm1255, %v4598, %v4600
        %v4602 = vrot.slane %v4412, 6
        %v4603 = vsel %vm1255, %v4600, %v4602
        %v4604 = vrot.slane %v4415, 6
        %v4605 = vsel %vm1255, %v4602, %v4604
        %v4606 = vrot.slane %v4420, 6
        %v4607 = vsel %vm1255, %v4604, %v4606
        %v4608 = vrot.slane %v4423, 6
        %v4609 = vsel %vm1255, %v4606, %v4608
        %v4610 = vrot.slane %v4428, 6
        %v4611 = vsel %vm1255, %v4608, %v4610
        %v4612 = vrot.slane %v4431, 6
        %v4613 = vsel %vm1255, %v4610, %v4612
        %v4614 = vrot.slane %v4436, 6
        %v4615 = vsel %vm1255, %v4612, %v4614
        %v4616 = vrot.slane %v4439, 6
        %v4617 = vsel %vm1255, %v4614, %v4616
        %v4618 = vrot.slane %v4444, 6
        %v4619 = vsel %vm1255, %v4616, %v4618
        %v4620 = vrot.slane %v4447, 6
        %v4621 = vsel %vm1255, %v4618, %v4620
        %v4622 = vrot.slane %v4452, 6
        %v4623 = vsel %vm1255, %v4620, %v4622
        %v4624 = vrot.slane %v4455, 6
        %v4625 = vsel %vm1255, %v4622, %v4624
        %v4626 = vrot.slane %v4460, 6
        %v4627 = vsel %vm1255, %v4624, %v4626
        %v4628 = vrot.slane %v4463, 6
        %v4629 = vsel %vm1255, %v4626, %v4628
        %v4630 = vrot.slane %v4468, 6
        %v4631 = vsel %vm1255, %v4628, %v4630
        %v4632 = vrot.slane %v4471, 6
        %v4633 = vsel %vm1255, %v4630, %v4632
        %v4634 = vrot.slane %v4476, 6
        %v4635 = vsel %vm1255, %v4632, %v4634
        %v4636 = vrot.slane %v4479, 6
        %v4637 = vsel %vm1255, %v4634, %v4636
        %v4638 = vrot.slane %v4484, 6
        %v4639 = vsel %vm1255, %v4636, %v4638
        %v4640 = vrot.slane %v4487, 6
        %v4641 = vsel %vm1255, %v4638, %v4640
        %v4642 = vrot.slane %v4492, 6
        %v4643 = vsel %vm1255, %v4640, %v4642
        %v4644 = vrot.slane %v4495, 6
        %v4645 = vsel %vm1255, %v4642, %v4644
        %v4646 = vrot.slane %v4500, 6
        %v4647 = vsel %vm1255, %v4644, %v4646
        %v4648 = vrot.slane %v4503, 6
        %v4649 = vsel %vm1255, %v4646, %v4648
        %v4650 = vrot.slane %v4508, 6
        %v4651 = vsel %vm1255, %v4648, %v4650
        %v4652 = vrot.slane %v4511, 6
        %v4653 = vsel %vm1255, %v4650, %v4652
        %v4654 = vrot.slane %v4516, 6
        %v4655 = vsel %vm1255, %v4652, %v4654
        %v4656 = vrot.slane %v4519, 6
        %v4657 = vsel %vm1255, %v4654, %v4656
        %v4658 = vrot.slane %v4524, 6
        %v4659 = vsel %vm1255, %v4656, %v4658
        %v4660 = vrot.slane %v4527, 6
        %v4661 = vsel %vm1255, %v4658, %v4660
        %v4662 = vrot.slane %v4543, 6
        %v4663 = vsel %vm1255, %v4660, %v4662
        %v4664 = vrot.slane %v4544, 6
        %v4665 = vsel %vm1255, %v4662, %v4664
        %v4666 = vrot.slane %v4545, 6
        %v4667 = vsel %vm1255, %v4664, %v4666
        %v4668 = vrot.slane %v4546, 6
        %v4669 = vsel %vm1255, %v4666, %v4668
        %v4670 = vrot.slane %v4547, 6
        %v4671 = vsel %vm1255, %v4668, %v4670
        %v4672 = vrot.slane %v4548, 6
        %v4673 = vsel %vm1255, %v4670, %v4672
        %v4715 = vadd.f32 %v4291, %v4593
        %v4716 = vadd.f32 %v4292, %v4595
        %v4717 = vadd.f32 %v4293, %v4597
        %v4718 = vadd.f32 %v4294, %v4599
        %v4719 = vadd.f32 %v4295, %v4601
        %v4720 = vadd.f32 %v4296, %v4603
        %v4721 = vadd.f32 %v4297, %v4605
        %v4722 = vadd.f32 %v4298, %v4607
        %v4723 = vadd.f32 %v4299, %v4609
        %v4724 = vadd.f32 %v4300, %v4611
        %v4725 = vadd.f32 %v4301, %v4613
        %v4726 = vadd.f32 %v4302, %v4615
        %v4727 = vadd.f32 %v4303, %v4617
        %v4728 = vadd.f32 %v4304, %v4619
        %v4729 = vadd.f32 %v4305, %v4621
        %v4730 = vadd.f32 %v4306, %v4623
        %v4731 = vadd.f32 %v4307, %v4625
        %v4732 = vadd.f32 %v4308, %v4627
        %v4733 = vadd.f32 %v4309, %v4629
        %v4734 = vadd.f32 %v4310, %v4631
        %v4735 = vadd.f32 %v4311, %v4633
        %v4736 = vadd.f32 %v4312, %v4635
        %v4737 = vadd.f32 %v4313, %v4637
        %v4738 = vadd.f32 %v4314, %v4639
        %v4739 = vadd.f32 %v4315, %v4641
        %v4740 = vadd.f32 %v4316, %v4643
        %v4741 = vadd.f32 %v4317, %v4645
        %v4742 = vadd.f32 %v4318, %v4647
        %v4743 = vadd.f32 %v4319, %v4649
        %v4744 = vadd.f32 %v4320, %v4651
        %v4745 = vadd.f32 %v4321, %v4653
        %v4746 = vadd.f32 %v4322, %v4655
        %v4747 = vadd.f32 %v4323, %v4657
        %v4748 = vadd.f32 %v4324, %v4659
        %v4749 = vadd.f32 %v4325, %v4661
        %v4750 = vadd.f32 %v4326, %v4663
        %v4751 = vadd.f32 %v4327, %v4665
        %v4752 = vadd.f32 %v4328, %v4667
        %v4753 = vadd.f32 %v4329, %v4669
        %v4754 = vadd.f32 %v4330, %v4671
        %v4755 = vadd.f32 %v4331, %v4673
        %v4756 = vld [vmem:[%s2] sm:$0x1]
        %v4758 = vlaneseq
        %v4759 = vshrl.u32 %v4758, 7
        %v4760 = vsub.s32 0, %v4759
        %v4761 = vrot.slane %v4756, %v4760
        %v4763 = vadd.f32 %v4715, %v4761
        %v4764 = vadd.f32 %v4716, %v4761
        %v4765 = vadd.f32 %v4717, %v4761
        %v4766 = vadd.f32 %v4718, %v4761
        %v4767 = vadd.f32 %v4719, %v4761
        %v4768 = vadd.f32 %v4720, %v4761
        %v4769 = vadd.f32 %v4721, %v4761
        %v4770 = vadd.f32 %v4722, %v4761
        %v4771 = vadd.f32 %v4723, %v4761
        %v4772 = vadd.f32 %v4724, %v4761
        %v4773 = vadd.f32 %v4725, %v4761
        %v4774 = vadd.f32 %v4726, %v4761
        %v4775 = vadd.f32 %v4727, %v4761
        %v4776 = vadd.f32 %v4728, %v4761
        %v4777 = vadd.f32 %v4729, %v4761
        %v4778 = vadd.f32 %v4730, %v4761
        %v4779 = vadd.f32 %v4731, %v4761
        %v4780 = vadd.f32 %v4732, %v4761
        %v4781 = vadd.f32 %v4733, %v4761
        %v4782 = vadd.f32 %v4734, %v4761
        %v4783 = vadd.f32 %v4735, %v4761
        %v4784 = vadd.f32 %v4736, %v4761
        %v4785 = vadd.f32 %v4737, %v4761
        %v4786 = vadd.f32 %v4738, %v4761
        %v4787 = vadd.f32 %v4739, %v4761
        %v4788 = vadd.f32 %v4740, %v4761
        %v4789 = vadd.f32 %v4741, %v4761
        %v4790 = vadd.f32 %v4742, %v4761
        %v4791 = vadd.f32 %v4743, %v4761
        %v4792 = vadd.f32 %v4744, %v4761
        %v4793 = vadd.f32 %v4745, %v4761
        %v4794 = vadd.f32 %v4746, %v4761
        %v4795 = vadd.f32 %v4747, %v4761
        %v4796 = vadd.f32 %v4748, %v4761
        %v4797 = vadd.f32 %v4749, %v4761
        %v4798 = vadd.f32 %v4750, %v4761
        %v4799 = vadd.f32 %v4751, %v4761
        %v4800 = vadd.f32 %v4752, %v4761
        %v4801 = vadd.f32 %v4753, %v4761
        %v4802 = vadd.f32 %v4754, %v4761
        %v4803 = vadd.f32 %v4755, %v4761
        %v4804 = vmax.f32 %v4763, 0.0
        %v4805 = vmax.f32 %v4764, 0.0
        %v4806 = vmax.f32 %v4765, 0.0
        %v4807 = vmax.f32 %v4766, 0.0
        %v4808 = vmax.f32 %v4767, 0.0
        %v4809 = vmax.f32 %v4768, 0.0
        %v4810 = vmax.f32 %v4769, 0.0
        %v4811 = vmax.f32 %v4770, 0.0
        %v4812 = vmax.f32 %v4771, 0.0
        %v4813 = vmax.f32 %v4772, 0.0
        %v4814 = vmax.f32 %v4773, 0.0
        %v4815 = vmax.f32 %v4774, 0.0
        %v4816 = vmax.f32 %v4775, 0.0
        %v4817 = vmax.f32 %v4776, 0.0
        %v4818 = vmax.f32 %v4777, 0.0
        %v4819 = vmax.f32 %v4778, 0.0
        %v4820 = vmax.f32 %v4779, 0.0
        %v4821 = vmax.f32 %v4780, 0.0
        %v4822 = vmax.f32 %v4781, 0.0
        %v4823 = vmax.f32 %v4782, 0.0
        %v4824 = vmax.f32 %v4783, 0.0
        %v4825 = vmax.f32 %v4784, 0.0
        %v4826 = vmax.f32 %v4785, 0.0
        %v4827 = vmax.f32 %v4786, 0.0
        %v4828 = vmax.f32 %v4787, 0.0
        %v4829 = vmax.f32 %v4788, 0.0
        %v4830 = vmax.f32 %v4789, 0.0
        %v4831 = vmax.f32 %v4790, 0.0
        %v4832 = vmax.f32 %v4791, 0.0
        %v4833 = vmax.f32 %v4792, 0.0
        %v4834 = vmax.f32 %v4793, 0.0
        %v4835 = vmax.f32 %v4794, 0.0
        %v4836 = vmax.f32 %v4795, 0.0
        %v4837 = vmax.f32 %v4796, 0.0
        %v4838 = vmax.f32 %v4797, 0.0
        %v4839 = vmax.f32 %v4798, 0.0
        %v4840 = vmax.f32 %v4799, 0.0
        %v4841 = vmax.f32 %v4800, 0.0
        %v4842 = vmax.f32 %v4801, 0.0
        %v4843 = vmax.f32 %v4802, 0.0
        %v4844 = vmax.f32 %v4803, 0.0
        %v4845 = vsel %vm1003, 1, 0
        %v4846 = vsel %vm1004, 1, 0
        %v4847 = vsel %vm1005, 1, 0
        %v4848 = vsel %vm1006, 1, 0
        %v4849 = vsel %vm1007, 1, 0
        %v4850 = vsel %vm1008, 1, 0
        %v4851 = vsel %vm1009, 1, 0
        %v4852 = vsel %vm1010, 1, 0
        %v4853 = vsel %vm1011, 1, 0
        %v4854 = vsel %vm1012, 1, 0
        %v4855 = vsel %vm1013, 1, 0
        %v4856 = vsel %vm1014, 1, 0
        %v4857 = vsel %vm1015, 1, 0
        %v4858 = vsel %vm1016, 1, 0
        %v4859 = vsel %vm1017, 1, 0
        %v4860 = vsel %vm1018, 1, 0
        %v4861 = vsel %vm1019, 1, 0
        %v4862 = vsel %vm1020, 1, 0
        %v4863 = vsel %vm1021, 1, 0
        %v4864 = vsel %vm1022, 1, 0
        %v4865 = vsel %vm1023, 1, 0
        %v4866 = vsel %vm1024, 1, 0
        %v4867 = vsel %vm1025, 1, 0
        %v4868 = vsel %vm1026, 1, 0
        %v4869 = vsel %vm1027, 1, 0
        %v4870 = vsel %vm1028, 1, 0
        %v4871 = vsel %vm1029, 1, 0
        %v4872 = vsel %vm1030, 1, 0
        %v4873 = vsel %vm1031, 1, 0
        %v4874 = vsel %vm1032, 1, 0
        %v4875 = vsel %vm1033, 1, 0
        %v4876 = vsel %vm1034, 1, 0
        %v4877 = vsel %vm1035, 1, 0
        %v4878 = vsel %vm1036, 1, 0
        %v4879 = vsel %vm1037, 1, 0
        %v4880 = vsel %vm1038, 1, 0
        %v4881 = vsel %vm1039, 1, 0
        %v4882 = vsel %vm1040, 1, 0
        %v4883 = vsel %vm1041, 1, 0
        %v4884 = vsel %vm1042, 1, 0
        %v4885 = vsel %vm1043, 1, 0
        %vm4886 = vcmp.eq.s32.totalorder %v4845, 1
        %vm4887 = vcmp.eq.s32.totalorder %v4846, 1
        %vm4888 = vcmp.eq.s32.totalorder %v4847, 1
        %vm4889 = vcmp.eq.s32.totalorder %v4848, 1
        %vm4890 = vcmp.eq.s32.totalorder %v4849, 1
        %vm4891 = vcmp.eq.s32.totalorder %v4850, 1
        %vm4892 = vcmp.eq.s32.totalorder %v4851, 1
        %vm4893 = vcmp.eq.s32.totalorder %v4852, 1
        %vm4894 = vcmp.eq.s32.totalorder %v4853, 1
        %vm4895 = vcmp.eq.s32.totalorder %v4854, 1
        %vm4896 = vcmp.eq.s32.totalorder %v4855, 1
        %vm4897 = vcmp.eq.s32.totalorder %v4856, 1
        %vm4898 = vcmp.eq.s32.totalorder %v4857, 1
        %vm4899 = vcmp.eq.s32.totalorder %v4858, 1
        %vm4900 = vcmp.eq.s32.totalorder %v4859, 1
        %vm4901 = vcmp.eq.s32.totalorder %v4860, 1
        %vm4902 = vcmp.eq.s32.totalorder %v4861, 1
        %vm4903 = vcmp.eq.s32.totalorder %v4862, 1
        %vm4904 = vcmp.eq.s32.totalorder %v4863, 1
        %vm4905 = vcmp.eq.s32.totalorder %v4864, 1
        %vm4906 = vcmp.eq.s32.totalorder %v4865, 1
        %vm4907 = vcmp.eq.s32.totalorder %v4866, 1
        %vm4908 = vcmp.eq.s32.totalorder %v4867, 1
        %vm4909 = vcmp.eq.s32.totalorder %v4868, 1
        %vm4910 = vcmp.eq.s32.totalorder %v4869, 1
        %vm4911 = vcmp.eq.s32.totalorder %v4870, 1
        %vm4912 = vcmp.eq.s32.totalorder %v4871, 1
        %vm4913 = vcmp.eq.s32.totalorder %v4872, 1
        %vm4914 = vcmp.eq.s32.totalorder %v4873, 1
        %vm4915 = vcmp.eq.s32.totalorder %v4874, 1
        %vm4916 = vcmp.eq.s32.totalorder %v4875, 1
        %vm4917 = vcmp.eq.s32.totalorder %v4876, 1
        %vm4918 = vcmp.eq.s32.totalorder %v4877, 1
        %vm4919 = vcmp.eq.s32.totalorder %v4878, 1
        %vm4920 = vcmp.eq.s32.totalorder %v4879, 1
        %vm4921 = vcmp.eq.s32.totalorder %v4880, 1
        %vm4922 = vcmp.eq.s32.totalorder %v4881, 1
        %vm4923 = vcmp.eq.s32.totalorder %v4882, 1
        %vm4924 = vcmp.eq.s32.totalorder %v4883, 1
        %vm4925 = vcmp.eq.s32.totalorder %v4884, 1
        %vm4926 = vcmp.eq.s32.totalorder %v4885, 1
        %v4927 = vsel %vm4886, %v4804, 0.0
        %v4928 = vsel %vm4887, %v4805, 0.0
        %v4929 = vsel %vm4888, %v4806, 0.0
        %v4930 = vsel %vm4889, %v4807, 0.0
        %v4931 = vsel %vm4890, %v4808, 0.0
        %v4932 = vsel %vm4891, %v4809, 0.0
        %v4933 = vsel %vm4892, %v4810, 0.0
        %v4934 = vsel %vm4893, %v4811, 0.0
        %v4935 = vsel %vm4894, %v4812, 0.0
        %v4936 = vsel %vm4895, %v4813, 0.0
        %v4937 = vsel %vm4896, %v4814, 0.0
        %v4938 = vsel %vm4897, %v4815, 0.0
        %v4939 = vsel %vm4898, %v4816, 0.0
        %v4940 = vsel %vm4899, %v4817, 0.0
        %v4941 = vsel %vm4900, %v4818, 0.0
        %v4942 = vsel %vm4901, %v4819, 0.0
        %v4943 = vsel %vm4902, %v4820, 0.0
        %v4944 = vsel %vm4903, %v4821, 0.0
        %v4945 = vsel %vm4904, %v4822, 0.0
        %v4946 = vsel %vm4905, %v4823, 0.0
        %v4947 = vsel %vm4906, %v4824, 0.0
        %v4948 = vsel %vm4907, %v4825, 0.0
        %v4949 = vsel %vm4908, %v4826, 0.0
        %v4950 = vsel %vm4909, %v4827, 0.0
        %v4951 = vsel %vm4910, %v4828, 0.0
        %v4952 = vsel %vm4911, %v4829, 0.0
        %v4953 = vsel %vm4912, %v4830, 0.0
        %v4954 = vsel %vm4913, %v4831, 0.0
        %v4955 = vsel %vm4914, %v4832, 0.0
        %v4956 = vsel %vm4915, %v4833, 0.0
        %v4957 = vsel %vm4916, %v4834, 0.0
        %v4958 = vsel %vm4917, %v4835, 0.0
        %v4959 = vsel %vm4918, %v4836, 0.0
        %v4960 = vsel %vm4919, %v4837, 0.0
        %v4961 = vsel %vm4920, %v4838, 0.0
        %v4962 = vsel %vm4921, %v4839, 0.0
        %v4963 = vsel %vm4922, %v4840, 0.0
        %v4964 = vsel %vm4923, %v4841, 0.0
        %v4965 = vsel %vm4924, %v4842, 0.0
        %v4966 = vsel %vm4925, %v4843, 0.0
        %v4967 = vsel %vm4926, %v4844, 0.0
        %vm4968 = vcmask 261120
        %v4969 = vsel %vm4968, %v4927, 0.0
        %v4970 = vsel %vm4968, %v4928, 0.0
        %v4971 = vadd.f32 %v4969, %v4970
        %v4972 = vsel %vm4968, %v4929, 0.0
        %v4973 = vadd.f32 %v4971, %v4972
        %v4974 = vsel %vm4968, %v4930, 0.0
        %v4975 = vadd.f32 %v4973, %v4974
        %v4976 = vsel %vm4968, %v4931, 0.0
        %v4977 = vadd.f32 %v4975, %v4976
        %v4978 = vsel %vm4968, %v4932, 0.0
        %v4979 = vadd.f32 %v4977, %v4978
        %v4980 = vsel %vm4968, %v4933, 0.0
        %v4981 = vadd.f32 %v4979, %v4980
        %v4982 = vsel %vm4968, %v4934, 0.0
        %v4983 = vadd.f32 %v4981, %v4982
        %v4984 = vsel %vm4968, %v4935, 0.0
        %v4985 = vadd.f32 %v4983, %v4984
        %v4986 = vsel %vm4968, %v4936, 0.0
        %v4987 = vadd.f32 %v4985, %v4986
        %v4988 = vsel %vm4968, %v4937, 0.0
        %v4989 = vadd.f32 %v4987, %v4988
        %v4990 = vsel %vm4968, %v4938, 0.0
        %v4991 = vadd.f32 %v4989, %v4990
        %v4992 = vsel %vm4968, %v4939, 0.0
        %v4993 = vadd.f32 %v4991, %v4992
        %v4994 = vsel %vm4968, %v4940, 0.0
        %v4995 = vadd.f32 %v4993, %v4994
        %v4996 = vsel %vm4968, %v4941, 0.0
        %v4997 = vadd.f32 %v4995, %v4996
        %v4998 = vsel %vm4968, %v4942, 0.0
        %v4999 = vadd.f32 %v4997, %v4998
        %v5000 = vsel %vm4968, %v4943, 0.0
        %v5001 = vadd.f32 %v4999, %v5000
        %v5002 = vsel %vm4968, %v4944, 0.0
        %v5003 = vadd.f32 %v5001, %v5002
        %v5004 = vsel %vm4968, %v4945, 0.0
        %v5005 = vadd.f32 %v5003, %v5004
        %v5006 = vsel %vm4968, %v4946, 0.0
        %v5007 = vadd.f32 %v5005, %v5006
        %v5008 = vsel %vm4968, %v4947, 0.0
        %v5009 = vadd.f32 %v5007, %v5008
        %v5010 = vsel %vm4968, %v4948, 0.0
        %v5011 = vadd.f32 %v5009, %v5010
        %v5012 = vsel %vm4968, %v4949, 0.0
        %v5013 = vadd.f32 %v5011, %v5012
        %v5014 = vsel %vm4968, %v4950, 0.0
        %v5015 = vadd.f32 %v5013, %v5014
        %v5016 = vsel %vm4968, %v4951, 0.0
        %v5017 = vadd.f32 %v5015, %v5016
        %v5018 = vsel %vm4968, %v4952, 0.0
        %v5019 = vadd.f32 %v5017, %v5018
        %v5020 = vsel %vm4968, %v4953, 0.0
        %v5021 = vadd.f32 %v5019, %v5020
        %v5022 = vsel %vm4968, %v4954, 0.0
        %v5023 = vadd.f32 %v5021, %v5022
        %v5024 = vsel %vm4968, %v4955, 0.0
        %v5025 = vadd.f32 %v5023, %v5024
        %v5026 = vsel %vm4968, %v4956, 0.0
        %v5027 = vadd.f32 %v5025, %v5026
        %v5028 = vsel %vm4968, %v4957, 0.0
        %v5029 = vadd.f32 %v5027, %v5028
        %v5030 = vsel %vm4968, %v4958, 0.0
        %v5031 = vadd.f32 %v5029, %v5030
        %v5032 = vsel %vm4968, %v4959, 0.0
        %v5033 = vadd.f32 %v5031, %v5032
        %v5034 = vsel %vm4968, %v4960, 0.0
        %v5035 = vadd.f32 %v5033, %v5034
        %v5036 = vsel %vm4968, %v4961, 0.0
        %v5037 = vadd.f32 %v5035, %v5036
        %v5038 = vsel %vm4968, %v4962, 0.0
        %v5039 = vadd.f32 %v5037, %v5038
        %v5040 = vsel %vm4968, %v4963, 0.0
        %v5041 = vadd.f32 %v5039, %v5040
        %v5042 = vsel %vm4968, %v4964, 0.0
        %v5043 = vadd.f32 %v5041, %v5042
        %v5044 = vsel %vm4968, %v4965, 0.0
        %v5045 = vadd.f32 %v5043, %v5044
        %v5046 = vsel %vm4968, %v4966, 0.0
        %v5047 = vadd.f32 %v5045, %v5046
        %vm5048 = vcmask 257024
        %v5049 = vsel %vm5048, %v4967, 0.0
        %v5050 = vadd.f32 %v5047, %v5049
        %v5051 = vrot.slane %v5050, 4
        %v5052 = vadd.f32 %v5050, %v5051
        %v5053 = vrot.slane %v5052, 2
        %v5054 = vadd.f32 %v5052, %v5053
        %v5055 = vrot.slane %v5054, 1
        %v5056 = vadd.f32 %v5054, %v5055
        %v5057 = vmul.f32 %v5056, 0.00390625
        %v5058 = vld [vmem:[%s3] sm:$0xff]
        %v5059 = vld [vmem:[%s3 + $0x8] sm:$0xff]
        %v5060 = vld [vmem:[%s3 + $0x10] sm:$0xff]
        %v5061 = vld [vmem:[%s3 + $0x18] sm:$0xff]
        %v5062 = vld [vmem:[%s4] sm:$0x1]
        %v5064 = vsel %vm4968, %v5057, 0
        %5066 = vmatprep.subr.mxu0 0.0
        %5067 = vmatpush1.msra.mxu0 %v5058
        %5068 = vmatprep.subr.mxu0 0.0
        %5069 = vmatpush1.msra.mxu0 %v5059
        %5070 = vmatprep.subr.mxu0 0.0
        %5071 = vmatpush1.msra.mxu0 %v5060
        %5072 = vmatprep.subr.mxu0 0.0
        %5073 = vmatpush1.msra.mxu0 %v5061
        %5074 = vmatprep.subr.mxu0 0.0
        %5075 = vmatpush1.msra.mxu0 0.0
        %5076 = vmatprep.subr.mxu0 0.0
        %5077 = vmatpush1.msra.mxu0 0.0
        %5078 = vmatprep.subr.mxu0 0.0
        %5079 = vmatpush1.msra.mxu0 0.0
        %5080 = vmatprep.subr.mxu0 0.0
        %5081 = vmatpush1.msra.mxu0 0.0
        %5082 = vmatprep.subr.mxu0 0.0
        %5083 = vmatpush1.msra.mxu0 0.0
        %5084 = vmatprep.subr.mxu0 0.0
        %5085 = vmatpush1.msra.mxu0 0.0
        %5086 = vmatprep.subr.mxu0 0.0
        %5087 = vmatpush1.msra.mxu0 0.0
        %5088 = vmatprep.subr.mxu0 0.0
        %5089 = vmatpush1.msra.mxu0 0.0
        %5090 = vmatprep.subr.mxu0 0.0
        %5091 = vmatpush1.msra.mxu0 0.0
        %5092 = vmatprep.subr.mxu0 0.0
        %5093 = vmatpush1.msra.mxu0 0.0
        %5094 = vmatprep.subr.mxu0 0.0
        %5095 = vmatpush1.msra.mxu0 0.0
        %5096 = vmatprep.subr.mxu0 0.0
        %5097 = vmatpush1.msra.mxu0 0.0
        %5098 = vmatprep.subr.mxu0 0.0
        %5099 = vmatpush1.msra.mxu0 0.0
        %5100 = vmatprep.subr.mxu0 0.0
        %5101 = vmatpush1.msra.mxu0 0.0
        %5102 = vmatprep.subr.mxu0 0.0
        %5103 = vmatpush1.msra.mxu0 0.0
        %5104 = vmatprep.subr.mxu0 0.0
        %5105 = vmatpush1.msra.mxu0 0.0
        %5106 = vmatprep.subr.mxu0 0.0
        %5107 = vmatpush1.msra.mxu0 0.0
        %5108 = vmatprep.subr.mxu0 0.0
        %5109 = vmatpush1.msra.mxu0 0.0
        %5110 = vmatprep.subr.mxu0 0.0
        %5111 = vmatpush1.msra.mxu0 0.0
        %5112 = vmatprep.subr.mxu0 0.0
        %5113 = vmatpush1.msra.mxu0 0.0
        %5114 = vmatprep.subr.mxu0 0.0
        %5115 = vmatpush1.msra.mxu0 0.0
        %5116 = vmatprep.subr.mxu0 0.0
        %5117 = vmatpush1.msra.mxu0 0.0
        %5118 = vmatprep.subr.mxu0 0.0
        %5119 = vmatpush1.msra.mxu0 0.0
        %5120 = vmatprep.subr.mxu0 0.0
        %5121 = vmatpush1.msra.mxu0 0.0
        %5122 = vmatprep.subr.mxu0 0.0
        %5123 = vmatpush1.msra.mxu0 0.0
        %5124 = vmatprep.subr.mxu0 0.0
        %5125 = vmatpush1.msra.mxu0 0.0
        %5126 = vmatprep.subr.mxu0 0.0
        %5127 = vmatpush1.msra.mxu0 0.0
        %5128 = vmatprep.subr.mxu0 0.0
        %5129 = vmatpush1.msra.mxu0 0.0
        %5130 = vmatprep.mubr.f32.mxu0 0.0
        %5131 = vmatmul.mubr.f32.gmra.mrb[0].mxu0 %v5064
        %v5132 = vpop.f32.mrb[0].mxu0
        %v5133 = vadd.f32 %v5062, %v5132
        %v5134 = vpop.f32.mrb[0].mxu0
        %5135 = vdwg.mxu0
        %5136 = vst [vmem:[%s216] sm:$0x1] %v5133
        %s5137 = sand.u32 %s137, 1
        %s5138 = scalar_lea.sflag [#allocation3], %s5137
        %s5139 = sand.u32 %s137, 1
        %s5140 = scalar_lea.vmem [#allocation2], %s5139
        // Predicated region
        $region41: #{build_model_forward.1} parent=39 // pred_check
          %p5141 = pneg %p147
        $region42: #{build_model_forward.1} parent=39 // pred_check_branch
          %5143 = sbr.rel (%p5141) target = $region44
        $region43: #{build_model_forward.1} parent=39 // pred_region
          %s5145 = ssub.s32 16, 16
          %5146 = vsyncadd %s5138, %s5145
          %s5147 = smul.addr %s19, 16
          %s5148 = scalar_lea.hbm %s5, %s5147
          %s5150 = sshll.u32 %s5140, 4
          %s5151 = int_to_ptr.vmem [resolvable:$true] %s5150
          %5153 = dma.vmem_to_hbm [thread:$0]  %s5151, 16, %s5148, %s5138
        $region44: #{build_model_forward.1} parent=39 // pred_fallthru
          _
      $region40: #{build_model_forward.1} parent=5 // pred_fallthru
        _
      %p5154 = scmp.le.s32.totalorder 2, %s14
      // Predicated region
      $region45: #{build_model_forward.1} parent=5 // pred_check
        %p5155 = pneg %p5154
      $region46: #{build_model_forward.1} parent=5 // pred_check_branch
        %5157 = sbr.rel (%p5155) target = $region48
      $region47: #{build_model_forward.1} parent=5 // pred_region
        %s5158 = ssub.s32 %s14, 2
        // Predicated region
        $region49: #{build_model_forward.1} parent=47 // pred_check
          %p5159 = pneg %p153
        $region50: #{build_model_forward.1} parent=47 // pred_check_branch
          %5161 = sbr.rel (%p5159) target = $region52
        $region51: #{build_model_forward.1} parent=47 // pred_region
          %s5162 = sand.u32 %s138, 1
          %s5163 = scalar_lea.sflag [#allocation3], %s5162
          %s5164 = sand.u32 %s138, 1
          %s5165 = scalar_lea.vmem [#allocation2], %s5164
          %5166 = dma.done %s5163, 16
        $region52: #{build_model_forward.1} parent=47 // pred_fallthru
          _
      $region48: #{build_model_forward.1} parent=5 // pred_fallthru
        _
    $region6: #{build_model_forward.1} parent=1 // loop_footer
      %s18 = sadd.s32 1, %s14
    $region7: #{build_model_forward.1} parent=1 // loop_footer_branch
      %13 = sbr.rel target = $region3
    $region8: #{build_model_forward.1} parent=1 // loop_exit
      _
    %5167 = vsyncpa [#allocation3], 1
    %s5168 = scalar_lea.sflag [#allocation3], 1
    %5169 = vsyncpa %s5168, 1

</llo_original>
